<compile_context>
chip_gen: v6e
topology: v6e:2x2x1
jax: 0.10.0
libtpu: 0.0.40
codegen_flags: <defaults>
</compile_context>

<pallas_src>
import functools

import jax
import jax.numpy as jnp
from jax import lax
from jax.experimental import pallas as pl
from jax.experimental.pallas import tpu as pltpu


def _round_up(x, m):
    return ((x + m - 1) // m) * m


# ----------------------------- Pallas kernel ------------------------------- #

def _fused_res_block_kernel(x_ref, w1_ref, w2_ref, b1_ref, b2s_ref, mask_ref,
                            o_ref, y1_buf, stage_ref, *,
                            deltas, guard, lc, cin_p, cout_p):
    """One batch sample per grid step; whole residual block fused, VMEM resident.

    x_ref   : (cin_p, ltot)              bf16  channel-major flat padded volume + guards
    w1_ref  : (cout_p, 27*cin_p)         bf16  conv1 weights, BN1 scale folded
    w2_ref  : (cout_p, 27*cout_p+cin_p)  bf16  conv2 weights (BN2 folded) ++ 1x1 sample (BNs folded)
    b1_ref  : (cout_p, 1)                f32   folded BN1 bias
    b2s_ref : (cout_p, 1)                f32   folded BN2 bias + folded BNs bias (pre-summed)
    mask_ref: (1, lc)                    bf16  1.0 on interior voxels (conv2 zero padding)
    o_ref   : (cout_p, lc)               f32   lane-dense, channel-major output
    y1_buf  : (cout_p, ltot)             bf16  VMEM scratch for y1 (+ halo guards)
    stage_ref: (max(27*cin_p, 27*cout_p+cin_p), lc) bf16  fused-K staging buffer
    """
    ltot = x_ref.shape[1]
    nt = len(deltas)
    k1 = nt * cin_p            # conv1 fused contraction depth
    k2 = nt * cout_p           # conv2 tap contraction depth (x-center rows appended after)

    # ---- stage conv1 taps: in-VMEM im2col, each lane-shifted slice extracted once
    for t, dlt in enumerate(deltas):
        stage_ref[t * cin_p:(t + 1) * cin_p, :] = x_ref[:, guard + dlt:guard + dlt + lc]

    # ---- conv1 (BN1 scale folded) as ONE K=27*cin_p matmul, + bias + ReLU ----
    acc1 = jnp.dot(w1_ref[...], stage_ref[0:k1, :],
                   preferred_element_type=jnp.float32)
    y1 = jnp.maximum(acc1 + b1_ref[...], 0.0)
    # zero padded-border / lane-tail in bf16 (emulates conv2's zero padding)
    y1b = y1.astype(y1_buf.dtype) * mask_ref[...]

    # clear only the halo/guard stripes (interior fully overwritten below);
    # intentionally NOT gated on program_id==0 (megacore 'parallel' sharding).
    if guard > 0:
        y1_buf[:, 0:guard] = jnp.zeros((cout_p, guard), y1_buf.dtype)
    tail = ltot - (guard + lc)
    if tail > 0:
        y1_buf[:, guard + lc:] = jnp.zeros((cout_p, tail), y1_buf.dtype)
    y1_buf[:, guard:guard + lc] = y1b

    # ---- stage conv2 taps of y1, plus centered x rows for the folded 1x1 sample conv
    for t, dlt in enumerate(deltas):
        stage_ref[t * cout_p:(t + 1) * cout_p, :] = \
            y1_buf[:, guard + dlt:guard + dlt + lc]
    stage_ref[k2:k2 + cin_p, :] = x_ref[:, guard:guard + lc]

    # ---- conv2(+BN2) + 1x1 sample(+BNs) + mergeAdd in ONE K=27*cout_p+cin_p matmul
    acc2 = jnp.dot(w2_ref[...], stage_ref[0:k2 + cin_p, :],
                   preferred_element_type=jnp.float32)
    o_ref[...] = jnp.maximum(acc2 + b2s_ref[...], 0.0).astype(o_ref.dtype)


# --------------------------------- wrapper ---------------------------------- #

def _fold_bn(gamma, beta, mean, var, eps=1e-5):
    scale = gamma / jnp.sqrt(var + eps)
    bias = beta - mean * scale
    return scale, bias


def unit_res_basic_forward(x_ncdhw, params, *, kernel_size=3, pad_size=1, stride_size=1):
    """Forward of unitResBasic.  x: (N, Cin, D, H, W) f32 -> (N, Cout, D, H, W) f32."""
    assert stride_size == 1 and kernel_size == 2 * pad_size + 1, (
        "only the default k=3/pad=1/stride=1 configuration is implemented")

    N, Cin, D, H, W = x_ncdhw.shape
    Cout = params["w1"].shape[0]
    k, p = kernel_size, pad_size
    Dp, Hp, Wp = D + 2 * p, H + 2 * p, W + 2 * p
    Do, Ho, Wo = D, H, W                                   # "same" conv output sizes
    pvol = Dp * Hp * Wp

    cin_p = _round_up(Cin, 8)
    cout_p = _round_up(Cout, 8)
    lc = _round_up(pvol, 128)                              # lane-dense compute width
    k3 = k ** 3

    # Per-tap flat lane shifts in the row-major padded-volume coordinate system.
    deltas = tuple((kd - p) * Hp * Wp + (kh - p) * Wp + (kw - p)
                   for kd in range(k) for kh in range(k) for kw in range(k))
    guard = _round_up(max(0, -min(deltas)), 128)
    ltot = _round_up(guard + lc + max(0, max(deltas)), 128)

    # ---- activations: NCDHW -> channel-major flat padded volume + guards ----
    xpad = jnp.pad(x_ncdhw, ((0, 0), (0, cin_p - Cin), (p, p), (p, p), (p, p)))
    xflat = xpad.reshape(N, cin_p, pvol)
    xbuf = jnp.pad(xflat, ((0, 0), (0, 0), (guard, ltot - guard - pvol)))
    xbuf = xbuf.astype(jnp.bfloat16)

    # ---- fold BN scales into conv weights (trace time, off the hot path) ----
    s1, b1 = _fold_bn(params["bn1_gamma"], params["bn1_beta"],
                      params["bn1_mean"], params["bn1_var"])
    s2, b2 = _fold_bn(params["bn2_gamma"], params["bn2_beta"],
                      params["bn2_mean"], params["bn2_var"])
    ss, bs = _fold_bn(params["bns_gamma"], params["bns_beta"],
                      params["bns_mean"], params["bns_var"])

    def prep_w_taps(w, scale, ci_pad):
        # (Cout, Cin, kd, kh, kw) -> (cout_p, k^3 * ci_pad) with column order
        # [tap][cin], matching the staging-buffer row order in the kernel.
        co, ci = w.shape[0], w.shape[1]
        w = w * scale[:, None, None, None, None]             # fold BN scale
        w = jnp.transpose(w, (0, 2, 3, 4, 1))                # (Cout, kd, kh, kw, Cin)
        w = jnp.pad(w, ((0, cout_p - co), (0, 0), (0, 0), (0, 0), (0, ci_pad - ci)))
        return w.reshape(cout_p, k3 * ci_pad).astype(jnp.bfloat16)

    w1f = prep_w_taps(params["w1"], s1, cin_p)               # (cout_p, 27*cin_p)
    w2_taps = prep_w_taps(params["w2"], s2, cout_p)          # (cout_p, 27*cout_p)

    if Cin != Cout or stride_size != 1:                      # module has a sample layer
        wsm = params["ws"].reshape(Cout, Cin) * ss[:, None]  # fold BNs scale
        bsv = bs
    else:                                                    # identity residual
        # TODO(synk): add identity residual in f32 instead of a bf16 eye matmul.
        wsm = jnp.eye(Cout, Cin, dtype=jnp.float32)
        bsv = jnp.zeros((Cout,), jnp.float32)
    wsm = jnp.pad(wsm, ((0, cout_p - Cout), (0, cin_p - Cin))).astype(jnp.bfloat16)
    # conv2 weights ++ 1x1 sample weights -> one fused contraction (K = 27*cout_p + cin_p)
    w2f = jnp.concatenate([w2_taps, wsm], axis=1)

    def prep_b(b):
        return jnp.pad(b, (0, cout_p - Cout)).reshape(cout_p, 1).astype(jnp.float32)

    b1v = prep_b(b1)
    b2sv = prep_b(b2 + bsv)                                  # conv2 + sample bias pre-summed

    # interior mask (1 on real output voxels, 0 on padded border / lane tail), bf16
    l = jnp.arange(lc, dtype=jnp.int32)
    d = l // (Hp * Wp)
    r = l % (Hp * Wp)
    h = r // Wp
    w_ = r % Wp
    interior = ((l < pvol) & (d >= p) & (d < p + Do)
                & (h >= p) & (h < p + Ho) & (w_ >= p) & (w_ < p + Wo))
    mask = interior.astype(jnp.bfloat16).reshape(1, lc)

    stage_rows = max(k3 * cin_p, k3 * cout_p + cin_p)

    kern = functools.partial(_fused_res_block_kernel, deltas=deltas, guard=guard,
                             lc=lc, cin_p=cin_p, cout_p=cout_p)
    out_flat = pl.pallas_call(
        kern,
        out_shape=jax.ShapeDtypeStruct((N, cout_p, lc), jnp.float32),
        grid=(N,),
        in_specs=[
            pl.BlockSpec((None, cin_p, ltot), lambda n: (n, 0, 0)),          # x (one sample)
            pl.BlockSpec((cout_p, k3 * cin_p), lambda n: (0, 0)),            # fused w1
            pl.BlockSpec((cout_p, k3 * cout_p + cin_p), lambda n: (0, 0)),   # fused w2 ++ ws
            pl.BlockSpec((cout_p, 1), lambda n: (0, 0)),                     # b1
            pl.BlockSpec((cout_p, 1), lambda n: (0, 0)),                     # b2 + bs
            pl.BlockSpec((1, lc), lambda n: (0, 0)),                         # interior mask
        ],
        out_specs=pl.BlockSpec((None, cout_p, lc), lambda n: (n, 0, 0)),
        scratch_shapes=[
            pltpu.VMEM((cout_p, ltot), jnp.bfloat16),      # y1 (+ halo guards)
            pltpu.VMEM((stage_rows, lc), jnp.bfloat16),    # fused-K staging (reused)
        ],
        compiler_params=pltpu.CompilerParams(
            dimension_semantics=("parallel",),             # batch steps across TCs
            vmem_limit_bytes=32 * 1024 * 1024),
    )(xbuf, w1f, w2f, b1v, b2sv, mask)

    # channel-major output is already NCDHW; drop padded-border garbage and crop.
    out = out_flat[:, :Cout, :pvol].reshape(N, Cout, Dp, Hp, Wp)
    return out[:, :, p:p + Do, p:p + Ho, p:p + Wo]


# ------------------------- pure-JAX reference (check) ----------------------- #

def _reference_forward(x, params, k, p):
    def conv(inp, w, pad):
        return lax.conv_general_dilated(
            inp, w, window_strides=(1, 1, 1), padding=[(pad, pad)] * 3,
            dimension_numbers=("NCDHW", "OIDHW", "NCDHW"),
            precision=lax.Precision.HIGHEST)

    def bn(y, g, b, m, v, eps=1e-5):
        g, b, m, v = (a.reshape(1, -1, 1, 1, 1) for a in (g, b, m, v))
        return (y - m) * (g / jnp.sqrt(v + eps)) + b

    y1 = jax.nn.relu(bn(conv(x, params["w1"], p), params["bn1_gamma"],
                        params["bn1_beta"], params["bn1_mean"], params["bn1_var"]))
    y2 = bn(conv(y1, params["w2"], p), params["bn2_gamma"],
            params["bn2_beta"], params["bn2_mean"], params["bn2_var"])
    res = bn(conv(x, params["ws"], 0), params["bns_gamma"],
             params["bns_beta"], params["bns_mean"], params["bns_var"])
    return jax.nn.relu(y2 + res)


# --------------------------------- main ------------------------------------- #

def make_params(key, in_num, out_num, k):
    ks = jax.random.split(key, 11)
    f32 = jnp.float32
    return {
        # Conv3d weights in PyTorch layout (Cout, Cin, kD, kH, kW), bias=False
        "w1": 0.1 * jax.random.normal(ks[0], (out_num, in_num, k, k, k), f32),
        "w2": 0.1 * jax.random.normal(ks[1], (out_num, out_num, k, k, k), f32),
        "ws": 0.1 * jax.random.normal(ks[2], (out_num, in_num, 1, 1, 1), f32),
        # BatchNorm3d parameters / running stats (inference mode)
        "bn1_gamma": 1.0 + 0.1 * jax.random.normal(ks[3], (out_num,), f32),
        "bn1_beta": 0.1 * jax.random.normal(ks[4], (out_num,), f32),
        "bn1_mean": 0.05 * jax.random.normal(ks[5], (out_num,), f32),
        "bn1_var": 0.5 + jax.random.uniform(ks[6], (out_num,), f32),
        "bn2_gamma": 1.0 + 0.1 * jax.random.normal(ks[7], (out_num,), f32),
        "bn2_beta": 0.1 * jax.random.normal(ks[8], (out_num,), f32),
        "bn2_mean": 0.05 * jax.random.normal(ks[9], (out_num,), f32),
        "bn2_var": 0.5 + jax.random.uniform(ks[10], (out_num,), f32),
        "bns_gamma": jnp.ones((out_num,), f32),
        "bns_beta": jnp.zeros((out_num,), f32),
        "bns_mean": jnp.zeros((out_num,), f32),
        "bns_var": jnp.ones((out_num,), f32),
    }


if __name__ == "__main__":
    key = jax.random.PRNGKey(0)
    kx, kp = jax.random.split(key)

    N, Cin, Cout, Dd, Hh, Ww = 2, 4, 8, 8, 8, 8
    kernel_size, pad_size, stride_size = 3, 1, 1

    x = jax.random.normal(kx, (N, Cin, Dd, Hh, Ww), jnp.float32)   # NCDHW like PyTorch
    params = make_params(kp, Cin, Cout, kernel_size)

    fwd = jax.jit(functools.partial(unit_res_basic_forward,
                                    kernel_size=kernel_size,
                                    pad_size=pad_size,
                                    stride_size=stride_size))
    out = fwd(x, params)
    out = jax.block_until_ready(out)
    assert out.shape == (N, Cout, Dd, Hh, Ww), out.shape
    assert bool(jnp.all(out >= 0.0))                               # final ReLU

    # correctness vs. pure-JAX reference (bf16 weights/activations in the kernel)
    ref = _reference_forward(x, params, kernel_size, pad_size)
    err = float(jnp.max(jnp.abs(out - ref)))
    assert err < 0.15, f"max abs error vs reference: {err}"

    print("KERNEL_OK")
</pallas_src>

<mosaic_0001>
module attributes {stable_mosaic.version = 11 : i64} {
  func.func @_fused_res_block_kernel(%arg0: i32, %arg1: memref<1x8x1280xbf16, #tpu.memory_space<vmem>>, %arg2: memref<8x216xbf16, #tpu.memory_space<vmem>>, %arg3: memref<8x224xbf16, #tpu.memory_space<vmem>>, %arg4: memref<8x1xf32, #tpu.memory_space<vmem>>, %arg5: memref<8x1xf32, #tpu.memory_space<vmem>>, %arg6: memref<1x1024xbf16, #tpu.memory_space<vmem>>, %arg7: memref<1x8x1024xf32, #tpu.memory_space<vmem>>, %arg8: memref<8x1280xbf16, #tpu.memory_space<vmem>>, %arg9: memref<224x1024xbf16, #tpu.memory_space<vmem>>) attributes {dimension_semantics = [#tpu.dimension_semantics<parallel>], iteration_bounds = array<i64: 2>, scalar_prefetch = 0 : i64, scratch_operands = 2 : i64, tpu.core_type = #tpu.core_type<tc>, window_params = [{transform_indices = @transform_0, window_bounds = array<i64: 1, 8, 1280>}, {pipeline_mode = #tpu.pipeline_mode<synchronous>, transform_indices = @transform_1, window_bounds = array<i64: 8, 216>}, {pipeline_mode = #tpu.pipeline_mode<synchronous>, transform_indices = @transform_2, window_bounds = array<i64: 8, 224>}, {pipeline_mode = #tpu.pipeline_mode<synchronous>, transform_indices = @transform_3, window_bounds = array<i64: 8, 1>}, {pipeline_mode = #tpu.pipeline_mode<synchronous>, transform_indices = @transform_4, window_bounds = array<i64: 8, 1>}, {pipeline_mode = #tpu.pipeline_mode<synchronous>, transform_indices = @transform_5, window_bounds = array<i64: 1, 1024>}, {transform_indices = @transform_6, window_bounds = array<i64: 1, 8, 1024>}]} {
    %c0 = arith.constant 0 : index
    %c0_0 = arith.constant 0 : index
    %c17 = arith.constant 17 : index
    %0 = vector.load %arg1[%c0, %c0_0, %c17] : memref<1x8x1280xbf16, #tpu.memory_space<vmem>>, vector<1x8x1024xbf16>
    %1 = vector.shape_cast %0 : vector<1x8x1024xbf16> to vector<8x1024xbf16>
    %c0_1 = arith.constant 0 : index
    %c0_2 = arith.constant 0 : index
    %2 = vector.load %arg9[%c0_1, %c0_2] : memref<224x1024xbf16, #tpu.memory_space<vmem>>, vector<8x1024xbf16>
    tpu.vector_store %arg9[%c0_1, %c0_2], %1 {strides = array<i32>} : memref<224x1024xbf16, #tpu.memory_space<vmem>>, vector<8x1024xbf16>,
    %c0_3 = arith.constant 0 : index
    %c0_4 = arith.constant 0 : index
    %c18 = arith.constant 18 : index
    %3 = vector.load %arg1[%c0_3, %c0_4, %c18] : memref<1x8x1280xbf16, #tpu.memory_space<vmem>>, vector<1x8x1024xbf16>
    %4 = vector.shape_cast %3 : vector<1x8x1024xbf16> to vector<8x1024xbf16>
    %c8 = arith.constant 8 : index
    %c0_5 = arith.constant 0 : index
    %5 = vector.load %arg9[%c8, %c0_5] : memref<224x1024xbf16, #tpu.memory_space<vmem>>, vector<8x1024xbf16>
    tpu.vector_store %arg9[%c8, %c0_5], %4 {strides = array<i32>} : memref<224x1024xbf16, #tpu.memory_space<vmem>>, vector<8x1024xbf16>,
    %c0_6 = arith.constant 0 : index
    %c0_7 = arith.constant 0 : index
    %c19 = arith.constant 19 : index
    %6 = vector.load %arg1[%c0_6, %c0_7, %c19] : memref<1x8x1280xbf16, #tpu.memory_space<vmem>>, vector<1x8x1024xbf16>
    %7 = vector.shape_cast %6 : vector<1x8x1024xbf16> to vector<8x1024xbf16>
    %c16 = arith.constant 16 : index
    %c0_8 = arith.constant 0 : index
    %8 = vector.load %arg9[%c16, %c0_8] : memref<224x1024xbf16, #tpu.memory_space<vmem>>, vector<8x1024xbf16>
    tpu.vector_store %arg9[%c16, %c0_8], %7 {strides = array<i32>} : memref<224x1024xbf16, #tpu.memory_space<vmem>>, vector<8x1024xbf16>,
    %c0_9 = arith.constant 0 : index
    %c0_10 = arith.constant 0 : index
    %c27 = arith.constant 27 : index
    %9 = vector.load %arg1[%c0_9, %c0_10, %c27] : memref<1x8x1280xbf16, #tpu.memory_space<vmem>>, vector<1x8x1024xbf16>
    %10 = vector.shape_cast %9 : vector<1x8x1024xbf16> to vector<8x1024xbf16>
    %c24 = arith.constant 24 : index
    %c0_11 = arith.constant 0 : index
    %11 = vector.load %arg9[%c24, %c0_11] : memref<224x1024xbf16, #tpu.memory_space<vmem>>, vector<8x1024xbf16>
    tpu.vector_store %arg9[%c24, %c0_11], %10 {strides = array<i32>} : memref<224x1024xbf16, #tpu.memory_space<vmem>>, vector<8x1024xbf16>,
    %c0_12 = arith.constant 0 : index
    %c0_13 = arith.constant 0 : index
    %c28 = arith.constant 28 : index
    %12 = vector.load %arg1[%c0_12, %c0_13, %c28] : memref<1x8x1280xbf16, #tpu.memory_space<vmem>>, vector<1x8x1024xbf16>
    %13 = vector.shape_cast %12 : vector<1x8x1024xbf16> to vector<8x1024xbf16>
    %c32 = arith.constant 32 : index
    %c0_14 = arith.constant 0 : index
    %14 = vector.load %arg9[%c32, %c0_14] : memref<224x1024xbf16, #tpu.memory_space<vmem>>, vector<8x1024xbf16>
    tpu.vector_store %arg9[%c32, %c0_14], %13 {strides = array<i32>} : memref<224x1024xbf16, #tpu.memory_space<vmem>>, vector<8x1024xbf16>,
    %c0_15 = arith.constant 0 : index
    %c0_16 = arith.constant 0 : index
    %c29 = arith.constant 29 : index
    %15 = vector.load %arg1[%c0_15, %c0_16, %c29] : memref<1x8x1280xbf16, #tpu.memory_space<vmem>>, vector<1x8x1024xbf16>
    %16 = vector.shape_cast %15 : vector<1x8x1024xbf16> to vector<8x1024xbf16>
    %c40 = arith.constant 40 : index
    %c0_17 = arith.constant 0 : index
    %17 = vector.load %arg9[%c40, %c0_17] : memref<224x1024xbf16, #tpu.memory_space<vmem>>, vector<8x1024xbf16>
    tpu.vector_store %arg9[%c40, %c0_17], %16 {strides = array<i32>} : memref<224x1024xbf16, #tpu.memory_space<vmem>>, vector<8x1024xbf16>,
    %c0_18 = arith.constant 0 : index
    %c0_19 = arith.constant 0 : index
    %c37 = arith.constant 37 : index
    %18 = vector.load %arg1[%c0_18, %c0_19, %c37] : memref<1x8x1280xbf16, #tpu.memory_space<vmem>>, vector<1x8x1024xbf16>
    %19 = vector.shape_cast %18 : vector<1x8x1024xbf16> to vector<8x1024xbf16>
    %c48 = arith.constant 48 : index
    %c0_20 = arith.constant 0 : index
    %20 = vector.load %arg9[%c48, %c0_20] : memref<224x1024xbf16, #tpu.memory_space<vmem>>, vector<8x1024xbf16>
    tpu.vector_store %arg9[%c48, %c0_20], %19 {strides = array<i32>} : memref<224x1024xbf16, #tpu.memory_space<vmem>>, vector<8x1024xbf16>,
    %c0_21 = arith.constant 0 : index
    %c0_22 = arith.constant 0 : index
    %c38 = arith.constant 38 : index
    %21 = vector.load %arg1[%c0_21, %c0_22, %c38] : memref<1x8x1280xbf16, #tpu.memory_space<vmem>>, vector<1x8x1024xbf16>
    %22 = vector.shape_cast %21 : vector<1x8x1024xbf16> to vector<8x1024xbf16>
    %c56 = arith.constant 56 : index
    %c0_23 = arith.constant 0 : index
    %23 = vector.load %arg9[%c56, %c0_23] : memref<224x1024xbf16, #tpu.memory_space<vmem>>, vector<8x1024xbf16>
    tpu.vector_store %arg9[%c56, %c0_23], %22 {strides = array<i32>} : memref<224x1024xbf16, #tpu.memory_space<vmem>>, vector<8x1024xbf16>,
    %c0_24 = arith.constant 0 : index
    %c0_25 = arith.constant 0 : index
    %c39 = arith.constant 39 : index
    %24 = vector.load %arg1[%c0_24, %c0_25, %c39] : memref<1x8x1280xbf16, #tpu.memory_space<vmem>>, vector<1x8x1024xbf16>
    %25 = vector.shape_cast %24 : vector<1x8x1024xbf16> to vector<8x1024xbf16>
    %c64 = arith.constant 64 : index
    %c0_26 = arith.constant 0 : index
    %26 = vector.load %arg9[%c64, %c0_26] : memref<224x1024xbf16, #tpu.memory_space<vmem>>, vector<8x1024xbf16>
    tpu.vector_store %arg9[%c64, %c0_26], %25 {strides = array<i32>} : memref<224x1024xbf16, #tpu.memory_space<vmem>>, vector<8x1024xbf16>,
    %c0_27 = arith.constant 0 : index
    %c0_28 = arith.constant 0 : index
    %c117 = arith.constant 117 : index
    %27 = vector.load %arg1[%c0_27, %c0_28, %c117] : memref<1x8x1280xbf16, #tpu.memory_space<vmem>>, vector<1x8x1024xbf16>
    %28 = vector.shape_cast %27 : vector<1x8x1024xbf16> to vector<8x1024xbf16>
    %c72 = arith.constant 72 : index
    %c0_29 = arith.constant 0 : index
    %29 = vector.load %arg9[%c72, %c0_29] : memref<224x1024xbf16, #tpu.memory_space<vmem>>, vector<8x1024xbf16>
    tpu.vector_store %arg9[%c72, %c0_29], %28 {strides = array<i32>} : memref<224x1024xbf16, #tpu.memory_space<vmem>>, vector<8x1024xbf16>,
    %c0_30 = arith.constant 0 : index
    %c0_31 = arith.constant 0 : index
    %c118 = arith.constant 118 : index
    %30 = vector.load %arg1[%c0_30, %c0_31, %c118] : memref<1x8x1280xbf16, #tpu.memory_space<vmem>>, vector<1x8x1024xbf16>
    %31 = vector.shape_cast %30 : vector<1x8x1024xbf16> to vector<8x1024xbf16>
    %c80 = arith.constant 80 : index
    %c0_32 = arith.constant 0 : index
    %32 = vector.load %arg9[%c80, %c0_32] : memref<224x1024xbf16, #tpu.memory_space<vmem>>, vector<8x1024xbf16>
    tpu.vector_store %arg9[%c80, %c0_32], %31 {strides = array<i32>} : memref<224x1024xbf16, #tpu.memory_space<vmem>>, vector<8x1024xbf16>,
    %c0_33 = arith.constant 0 : index
    %c0_34 = arith.constant 0 : index
    %c119 = arith.constant 119 : index
    %33 = vector.load %arg1[%c0_33, %c0_34, %c119] : memref<1x8x1280xbf16, #tpu.memory_space<vmem>>, vector<1x8x1024xbf16>
    %34 = vector.shape_cast %33 : vector<1x8x1024xbf16> to vector<8x1024xbf16>
    %c88 = arith.constant 88 : index
    %c0_35 = arith.constant 0 : index
    %35 = vector.load %arg9[%c88, %c0_35] : memref<224x1024xbf16, #tpu.memory_space<vmem>>, vector<8x1024xbf16>
    tpu.vector_store %arg9[%c88, %c0_35], %34 {strides = array<i32>} : memref<224x1024xbf16, #tpu.memory_space<vmem>>, vector<8x1024xbf16>,
    %c0_36 = arith.constant 0 : index
    %c0_37 = arith.constant 0 : index
    %c127 = arith.constant 127 : index
    %36 = vector.load %arg1[%c0_36, %c0_37, %c127] : memref<1x8x1280xbf16, #tpu.memory_space<vmem>>, vector<1x8x1024xbf16>
    %37 = vector.shape_cast %36 : vector<1x8x1024xbf16> to vector<8x1024xbf16>
    %c96 = arith.constant 96 : index
    %c0_38 = arith.constant 0 : index
    %38 = vector.load %arg9[%c96, %c0_38] : memref<224x1024xbf16, #tpu.memory_space<vmem>>, vector<8x1024xbf16>
    tpu.vector_store %arg9[%c96, %c0_38], %37 {strides = array<i32>} : memref<224x1024xbf16, #tpu.memory_space<vmem>>, vector<8x1024xbf16>,
    %c0_39 = arith.constant 0 : index
    %c0_40 = arith.constant 0 : index
    %c128 = arith.constant 128 : index
    %39 = vector.load %arg1[%c0_39, %c0_40, %c128] : memref<1x8x1280xbf16, #tpu.memory_space<vmem>>, vector<1x8x1024xbf16>
    %40 = vector.shape_cast %39 : vector<1x8x1024xbf16> to vector<8x1024xbf16>
    %c104 = arith.constant 104 : index
    %c0_41 = arith.constant 0 : index
    %41 = vector.load %arg9[%c104, %c0_41] : memref<224x1024xbf16, #tpu.memory_space<vmem>>, vector<8x1024xbf16>
    tpu.vector_store %arg9[%c104, %c0_41], %40 {strides = array<i32>} : memref<224x1024xbf16, #tpu.memory_space<vmem>>, vector<8x1024xbf16>,
    %c0_42 = arith.constant 0 : index
    %c0_43 = arith.constant 0 : index
    %c129 = arith.constant 129 : index
    %42 = vector.load %arg1[%c0_42, %c0_43, %c129] : memref<1x8x1280xbf16, #tpu.memory_space<vmem>>, vector<1x8x1024xbf16>
    %43 = vector.shape_cast %42 : vector<1x8x1024xbf16> to vector<8x1024xbf16>
    %c112 = arith.constant 112 : index
    %c0_44 = arith.constant 0 : index
    %44 = vector.load %arg9[%c112, %c0_44] : memref<224x1024xbf16, #tpu.memory_space<vmem>>, vector<8x1024xbf16>
    tpu.vector_store %arg9[%c112, %c0_44], %43 {strides = array<i32>} : memref<224x1024xbf16, #tpu.memory_space<vmem>>, vector<8x1024xbf16>,
    %c0_45 = arith.constant 0 : index
    %c0_46 = arith.constant 0 : index
    %c137 = arith.constant 137 : index
    %45 = vector.load %arg1[%c0_45, %c0_46, %c137] : memref<1x8x1280xbf16, #tpu.memory_space<vmem>>, vector<1x8x1024xbf16>
    %46 = vector.shape_cast %45 : vector<1x8x1024xbf16> to vector<8x1024xbf16>
    %c120 = arith.constant 120 : index
    %c0_47 = arith.constant 0 : index
    %47 = vector.load %arg9[%c120, %c0_47] : memref<224x1024xbf16, #tpu.memory_space<vmem>>, vector<8x1024xbf16>
    tpu.vector_store %arg9[%c120, %c0_47], %46 {strides = array<i32>} : memref<224x1024xbf16, #tpu.memory_space<vmem>>, vector<8x1024xbf16>,
    %c0_48 = arith.constant 0 : index
    %c0_49 = arith.constant 0 : index
    %c138 = arith.constant 138 : index
    %48 = vector.load %arg1[%c0_48, %c0_49, %c138] : memref<1x8x1280xbf16, #tpu.memory_space<vmem>>, vector<1x8x1024xbf16>
    %49 = vector.shape_cast %48 : vector<1x8x1024xbf16> to vector<8x1024xbf16>
    %c128_50 = arith.constant 128 : index
    %c0_51 = arith.constant 0 : index
    %50 = vector.load %arg9[%c128_50, %c0_51] : memref<224x1024xbf16, #tpu.memory_space<vmem>>, vector<8x1024xbf16>
    tpu.vector_store %arg9[%c128_50, %c0_51], %49 {strides = array<i32>} : memref<224x1024xbf16, #tpu.memory_space<vmem>>, vector<8x1024xbf16>,
    %c0_52 = arith.constant 0 : index
    %c0_53 = arith.constant 0 : index
    %c139 = arith.constant 139 : index
    %51 = vector.load %arg1[%c0_52, %c0_53, %c139] : memref<1x8x1280xbf16, #tpu.memory_space<vmem>>, vector<1x8x1024xbf16>
    %52 = vector.shape_cast %51 : vector<1x8x1024xbf16> to vector<8x1024xbf16>
    %c136 = arith.constant 136 : index
    %c0_54 = arith.constant 0 : index
    %53 = vector.load %arg9[%c136, %c0_54] : memref<224x1024xbf16, #tpu.memory_space<vmem>>, vector<8x1024xbf16>
    tpu.vector_store %arg9[%c136, %c0_54], %52 {strides = array<i32>} : memref<224x1024xbf16, #tpu.memory_space<vmem>>, vector<8x1024xbf16>,
    %c0_55 = arith.constant 0 : index
    %c0_56 = arith.constant 0 : index
    %c217 = arith.constant 217 : index
    %54 = vector.load %arg1[%c0_55, %c0_56, %c217] : memref<1x8x1280xbf16, #tpu.memory_space<vmem>>, vector<1x8x1024xbf16>
    %55 = vector.shape_cast %54 : vector<1x8x1024xbf16> to vector<8x1024xbf16>
    %c144 = arith.constant 144 : index
    %c0_57 = arith.constant 0 : index
    %56 = vector.load %arg9[%c144, %c0_57] : memref<224x1024xbf16, #tpu.memory_space<vmem>>, vector<8x1024xbf16>
    tpu.vector_store %arg9[%c144, %c0_57], %55 {strides = array<i32>} : memref<224x1024xbf16, #tpu.memory_space<vmem>>, vector<8x1024xbf16>,
    %c0_58 = arith.constant 0 : index
    %c0_59 = arith.constant 0 : index
    %c218 = arith.constant 218 : index
    %57 = vector.load %arg1[%c0_58, %c0_59, %c218] : memref<1x8x1280xbf16, #tpu.memory_space<vmem>>, vector<1x8x1024xbf16>
    %58 = vector.shape_cast %57 : vector<1x8x1024xbf16> to vector<8x1024xbf16>
    %c152 = arith.constant 152 : index
    %c0_60 = arith.constant 0 : index
    %59 = vector.load %arg9[%c152, %c0_60] : memref<224x1024xbf16, #tpu.memory_space<vmem>>, vector<8x1024xbf16>
    tpu.vector_store %arg9[%c152, %c0_60], %58 {strides = array<i32>} : memref<224x1024xbf16, #tpu.memory_space<vmem>>, vector<8x1024xbf16>,
    %c0_61 = arith.constant 0 : index
    %c0_62 = arith.constant 0 : index
    %c219 = arith.constant 219 : index
    %60 = vector.load %arg1[%c0_61, %c0_62, %c219] : memref<1x8x1280xbf16, #tpu.memory_space<vmem>>, vector<1x8x1024xbf16>
    %61 = vector.shape_cast %60 : vector<1x8x1024xbf16> to vector<8x1024xbf16>
    %c160 = arith.constant 160 : index
    %c0_63 = arith.constant 0 : index
    %62 = vector.load %arg9[%c160, %c0_63] : memref<224x1024xbf16, #tpu.memory_space<vmem>>, vector<8x1024xbf16>
    tpu.vector_store %arg9[%c160, %c0_63], %61 {strides = array<i32>} : memref<224x1024xbf16, #tpu.memory_space<vmem>>, vector<8x1024xbf16>,
    %c0_64 = arith.constant 0 : index
    %c0_65 = arith.constant 0 : index
    %c227 = arith.constant 227 : index
    %63 = vector.load %arg1[%c0_64, %c0_65, %c227] : memref<1x8x1280xbf16, #tpu.memory_space<vmem>>, vector<1x8x1024xbf16>
    %64 = vector.shape_cast %63 : vector<1x8x1024xbf16> to vector<8x1024xbf16>
    %c168 = arith.constant 168 : index
    %c0_66 = arith.constant 0 : index
    %65 = vector.load %arg9[%c168, %c0_66] : memref<224x1024xbf16, #tpu.memory_space<vmem>>, vector<8x1024xbf16>
    tpu.vector_store %arg9[%c168, %c0_66], %64 {strides = array<i32>} : memref<224x1024xbf16, #tpu.memory_space<vmem>>, vector<8x1024xbf16>,
    %c0_67 = arith.constant 0 : index
    %c0_68 = arith.constant 0 : index
    %c228 = arith.constant 228 : index
    %66 = vector.load %arg1[%c0_67, %c0_68, %c228] : memref<1x8x1280xbf16, #tpu.memory_space<vmem>>, vector<1x8x1024xbf16>
    %67 = vector.shape_cast %66 : vector<1x8x1024xbf16> to vector<8x1024xbf16>
    %c176 = arith.constant 176 : index
    %c0_69 = arith.constant 0 : index
    %68 = vector.load %arg9[%c176, %c0_69] : memref<224x1024xbf16, #tpu.memory_space<vmem>>, vector<8x1024xbf16>
    tpu.vector_store %arg9[%c176, %c0_69], %67 {strides = array<i32>} : memref<224x1024xbf16, #tpu.memory_space<vmem>>, vector<8x1024xbf16>,
    %c0_70 = arith.constant 0 : index
    %c0_71 = arith.constant 0 : index
    %c229 = arith.constant 229 : index
    %69 = vector.load %arg1[%c0_70, %c0_71, %c229] : memref<1x8x1280xbf16, #tpu.memory_space<vmem>>, vector<1x8x1024xbf16>
    %70 = vector.shape_cast %69 : vector<1x8x1024xbf16> to vector<8x1024xbf16>
    %c184 = arith.constant 184 : index
    %c0_72 = arith.constant 0 : index
    %71 = vector.load %arg9[%c184, %c0_72] : memref<224x1024xbf16, #tpu.memory_space<vmem>>, vector<8x1024xbf16>
    tpu.vector_store %arg9[%c184, %c0_72], %70 {strides = array<i32>} : memref<224x1024xbf16, #tpu.memory_space<vmem>>, vector<8x1024xbf16>,
    %c0_73 = arith.constant 0 : index
    %c0_74 = arith.constant 0 : index
    %c237 = arith.constant 237 : index
    %72 = vector.load %arg1[%c0_73, %c0_74, %c237] : memref<1x8x1280xbf16, #tpu.memory_space<vmem>>, vector<1x8x1024xbf16>
    %73 = vector.shape_cast %72 : vector<1x8x1024xbf16> to vector<8x1024xbf16>
    %c192 = arith.constant 192 : index
    %c0_75 = arith.constant 0 : index
    %74 = vector.load %arg9[%c192, %c0_75] : memref<224x1024xbf16, #tpu.memory_space<vmem>>, vector<8x1024xbf16>
    tpu.vector_store %arg9[%c192, %c0_75], %73 {strides = array<i32>} : memref<224x1024xbf16, #tpu.memory_space<vmem>>, vector<8x1024xbf16>,
    %c0_76 = arith.constant 0 : index
    %c0_77 = arith.constant 0 : index
    %c238 = arith.constant 238 : index
    %75 = vector.load %arg1[%c0_76, %c0_77, %c238] : memref<1x8x1280xbf16, #tpu.memory_space<vmem>>, vector<1x8x1024xbf16>
    %76 = vector.shape_cast %75 : vector<1x8x1024xbf16> to vector<8x1024xbf16>
    %c200 = arith.constant 200 : index
    %c0_78 = arith.constant 0 : index
    %77 = vector.load %arg9[%c200, %c0_78] : memref<224x1024xbf16, #tpu.memory_space<vmem>>, vector<8x1024xbf16>
    tpu.vector_store %arg9[%c200, %c0_78], %76 {strides = array<i32>} : memref<224x1024xbf16, #tpu.memory_space<vmem>>, vector<8x1024xbf16>,
    %c0_79 = arith.constant 0 : index
    %c0_80 = arith.constant 0 : index
    %c239 = arith.constant 239 : index
    %78 = vector.load %arg1[%c0_79, %c0_80, %c239] : memref<1x8x1280xbf16, #tpu.memory_space<vmem>>, vector<1x8x1024xbf16>
    %79 = vector.shape_cast %78 : vector<1x8x1024xbf16> to vector<8x1024xbf16>
    %c208 = arith.constant 208 : index
    %c0_81 = arith.constant 0 : index
    %80 = vector.load %arg9[%c208, %c0_81] : memref<224x1024xbf16, #tpu.memory_space<vmem>>, vector<8x1024xbf16>
    tpu.vector_store %arg9[%c208, %c0_81], %79 {strides = array<i32>} : memref<224x1024xbf16, #tpu.memory_space<vmem>>, vector<8x1024xbf16>,
    %c0_82 = arith.constant 0 : index
    %c0_83 = arith.constant 0 : index
    %81 = vector.load %arg2[%c0_82, %c0_83] : memref<8x216xbf16, #tpu.memory_space<vmem>>, vector<8x216xbf16>
    %c0_84 = arith.constant 0 : index
    %c0_85 = arith.constant 0 : index
    %82 = vector.load %arg9[%c0_84, %c0_85] : memref<224x1024xbf16, #tpu.memory_space<vmem>>, vector<216x1024xbf16>
    %cst = arith.constant dense<0.000000e+00> : vector<8x1024xf32>
    %83 = tpu.matmul %81, %82, %cst {dimension_numbers = #tpu.dot_dimension_numbers<[1], [0], [0], [1], [0, 0, 1, 1], [], []>} : vector<8x216xbf16>, vector<216x1024xbf16>, vector<8x1024xf32> -> vector<8x1024xf32>
    %c0_86 = arith.constant 0 : index
    %c0_87 = arith.constant 0 : index
    %84 = vector.load %arg4[%c0_86, %c0_87] : memref<8x1xf32, #tpu.memory_space<vmem>>, vector<8x1xf32>
    %85 = vector.broadcast %84 : vector<8x1xf32> to vector<8x1024xf32>
    %86 = arith.addf %83, %85 : vector<8x1024xf32>
    %cst_88 = arith.constant 0.000000e+00 : f32
    %87 = vector.broadcast %cst_88 : f32 to vector<8x1024xf32>
    %88 = arith.maximumf %86, %87 : vector<8x1024xf32>
    %89 = arith.truncf %88 : vector<8x1024xf32> to vector<8x1024xbf16>
    %c0_89 = arith.constant 0 : index
    %c0_90 = arith.constant 0 : index
    %90 = vector.load %arg6[%c0_89, %c0_90] : memref<1x1024xbf16, #tpu.memory_space<vmem>>, vector<1x1024xbf16>
    %91 = vector.broadcast %90 : vector<1x1024xbf16> to vector<8x1024xbf16>
    %92 = arith.mulf %89, %91 : vector<8x1024xbf16>
    %cst_91 = arith.constant 0.000000e+00 : bf16
    %93 = vector.broadcast %cst_91 : bf16 to vector<8x128xbf16>
    %c0_92 = arith.constant 0 : index
    %c0_93 = arith.constant 0 : index
    %94 = vector.load %arg8[%c0_92, %c0_93] : memref<8x1280xbf16, #tpu.memory_space<vmem>>, vector<8x128xbf16>
    tpu.vector_store %arg8[%c0_92, %c0_93], %93 {strides = array<i32>} : memref<8x1280xbf16, #tpu.memory_space<vmem>>, vector<8x128xbf16>,
    %cst_94 = arith.constant 0.000000e+00 : bf16
    %95 = vector.broadcast %cst_94 : bf16 to vector<8x128xbf16>
    %c0_95 = arith.constant 0 : index
    %c1152 = arith.constant 1152 : index
    %96 = vector.load %arg8[%c0_95, %c1152] : memref<8x1280xbf16, #tpu.memory_space<vmem>>, vector<8x128xbf16>
    tpu.vector_store %arg8[%c0_95, %c1152], %95 {strides = array<i32>} : memref<8x1280xbf16, #tpu.memory_space<vmem>>, vector<8x128xbf16>,
    %c0_96 = arith.constant 0 : index
    %c128_97 = arith.constant 128 : index
    %97 = vector.load %arg8[%c0_96, %c128_97] : memref<8x1280xbf16, #tpu.memory_space<vmem>>, vector<8x1024xbf16>
    tpu.vector_store %arg8[%c0_96, %c128_97], %92 {strides = array<i32>} : memref<8x1280xbf16, #tpu.memory_space<vmem>>, vector<8x1024xbf16>,
    %c0_98 = arith.constant 0 : index
    %c17_99 = arith.constant 17 : index
    %98 = vector.load %arg8[%c0_98, %c17_99] : memref<8x1280xbf16, #tpu.memory_space<vmem>>, vector<8x1024xbf16>
    %c0_100 = arith.constant 0 : index
    %c0_101 = arith.constant 0 : index
    %99 = vector.load %arg9[%c0_100, %c0_101] : memref<224x1024xbf16, #tpu.memory_space<vmem>>, vector<8x1024xbf16>
    tpu.vector_store %arg9[%c0_100, %c0_101], %98 {strides = array<i32>} : memref<224x1024xbf16, #tpu.memory_space<vmem>>, vector<8x1024xbf16>,
    %c0_102 = arith.constant 0 : index
    %c18_103 = arith.constant 18 : index
    %100 = vector.load %arg8[%c0_102, %c18_103] : memref<8x1280xbf16, #tpu.memory_space<vmem>>, vector<8x1024xbf16>
    %c8_104 = arith.constant 8 : index
    %c0_105 = arith.constant 0 : index
    %101 = vector.load %arg9[%c8_104, %c0_105] : memref<224x1024xbf16, #tpu.memory_space<vmem>>, vector<8x1024xbf16>
    tpu.vector_store %arg9[%c8_104, %c0_105], %100 {strides = array<i32>} : memref<224x1024xbf16, #tpu.memory_space<vmem>>, vector<8x1024xbf16>,
    %c0_106 = arith.constant 0 : index
    %c19_107 = arith.constant 19 : index
    %102 = vector.load %arg8[%c0_106, %c19_107] : memref<8x1280xbf16, #tpu.memory_space<vmem>>, vector<8x1024xbf16>
    %c16_108 = arith.constant 16 : index
    %c0_109 = arith.constant 0 : index
    %103 = vector.load %arg9[%c16_108, %c0_109] : memref<224x1024xbf16, #tpu.memory_space<vmem>>, vector<8x1024xbf16>
    tpu.vector_store %arg9[%c16_108, %c0_109], %102 {strides = array<i32>} : memref<224x1024xbf16, #tpu.memory_space<vmem>>, vector<8x1024xbf16>,
    %c0_110 = arith.constant 0 : index
    %c27_111 = arith.constant 27 : index
    %104 = vector.load %arg8[%c0_110, %c27_111] : memref<8x1280xbf16, #tpu.memory_space<vmem>>, vector<8x1024xbf16>
    %c24_112 = arith.constant 24 : index
    %c0_113 = arith.constant 0 : index
    %105 = vector.load %arg9[%c24_112, %c0_113] : memref<224x1024xbf16, #tpu.memory_space<vmem>>, vector<8x1024xbf16>
    tpu.vector_store %arg9[%c24_112, %c0_113], %104 {strides = array<i32>} : memref<224x1024xbf16, #tpu.memory_space<vmem>>, vector<8x1024xbf16>,
    %c0_114 = arith.constant 0 : index
    %c28_115 = arith.constant 28 : index
    %106 = vector.load %arg8[%c0_114, %c28_115] : memref<8x1280xbf16, #tpu.memory_space<vmem>>, vector<8x1024xbf16>
    %c32_116 = arith.constant 32 : index
    %c0_117 = arith.constant 0 : index
    %107 = vector.load %arg9[%c32_116, %c0_117] : memref<224x1024xbf16, #tpu.memory_space<vmem>>, vector<8x1024xbf16>
    tpu.vector_store %arg9[%c32_116, %c0_117], %106 {strides = array<i32>} : memref<224x1024xbf16, #tpu.memory_space<vmem>>, vector<8x1024xbf16>,
    %c0_118 = arith.constant 0 : index
    %c29_119 = arith.constant 29 : index
    %108 = vector.load %arg8[%c0_118, %c29_119] : memref<8x1280xbf16, #tpu.memory_space<vmem>>, vector<8x1024xbf16>
    %c40_120 = arith.constant 40 : index
    %c0_121 = arith.constant 0 : index
    %109 = vector.load %arg9[%c40_120, %c0_121] : memref<224x1024xbf16, #tpu.memory_space<vmem>>, vector<8x1024xbf16>
    tpu.vector_store %arg9[%c40_120, %c0_121], %108 {strides = array<i32>} : memref<224x1024xbf16, #tpu.memory_space<vmem>>, vector<8x1024xbf16>,
    %c0_122 = arith.constant 0 : index
    %c37_123 = arith.constant 37 : index
    %110 = vector.load %arg8[%c0_122, %c37_123] : memref<8x1280xbf16, #tpu.memory_space<vmem>>, vector<8x1024xbf16>
    %c48_124 = arith.constant 48 : index
    %c0_125 = arith.constant 0 : index
    %111 = vector.load %arg9[%c48_124, %c0_125] : memref<224x1024xbf16, #tpu.memory_space<vmem>>, vector<8x1024xbf16>
    tpu.vector_store %arg9[%c48_124, %c0_125], %110 {strides = array<i32>} : memref<224x1024xbf16, #tpu.memory_space<vmem>>, vector<8x1024xbf16>,
    %c0_126 = arith.constant 0 : index
    %c38_127 = arith.constant 38 : index
    %112 = vector.load %arg8[%c0_126, %c38_127] : memref<8x1280xbf16, #tpu.memory_space<vmem>>, vector<8x1024xbf16>
    %c56_128 = arith.constant 56 : index
    %c0_129 = arith.constant 0 : index
    %113 = vector.load %arg9[%c56_128, %c0_129] : memref<224x1024xbf16, #tpu.memory_space<vmem>>, vector<8x1024xbf16>
    tpu.vector_store %arg9[%c56_128, %c0_129], %112 {strides = array<i32>} : memref<224x1024xbf16, #tpu.memory_space<vmem>>, vector<8x1024xbf16>,
    %c0_130 = arith.constant 0 : index
    %c39_131 = arith.constant 39 : index
    %114 = vector.load %arg8[%c0_130, %c39_131] : memref<8x1280xbf16, #tpu.memory_space<vmem>>, vector<8x1024xbf16>
    %c64_132 = arith.constant 64 : index
    %c0_133 = arith.constant 0 : index
    %115 = vector.load %arg9[%c64_132, %c0_133] : memref<224x1024xbf16, #tpu.memory_space<vmem>>, vector<8x1024xbf16>
    tpu.vector_store %arg9[%c64_132, %c0_133], %114 {strides = array<i32>} : memref<224x1024xbf16, #tpu.memory_space<vmem>>, vector<8x1024xbf16>,
    %c0_134 = arith.constant 0 : index
    %c117_135 = arith.constant 117 : index
    %116 = vector.load %arg8[%c0_134, %c117_135] : memref<8x1280xbf16, #tpu.memory_space<vmem>>, vector<8x1024xbf16>
    %c72_136 = arith.constant 72 : index
    %c0_137 = arith.constant 0 : index
    %117 = vector.load %arg9[%c72_136, %c0_137] : memref<224x1024xbf16, #tpu.memory_space<vmem>>, vector<8x1024xbf16>
    tpu.vector_store %arg9[%c72_136, %c0_137], %116 {strides = array<i32>} : memref<224x1024xbf16, #tpu.memory_space<vmem>>, vector<8x1024xbf16>,
    %c0_138 = arith.constant 0 : index
    %c118_139 = arith.constant 118 : index
    %118 = vector.load %arg8[%c0_138, %c118_139] : memref<8x1280xbf16, #tpu.memory_space<vmem>>, vector<8x1024xbf16>
    %c80_140 = arith.constant 80 : index
    %c0_141 = arith.constant 0 : index
    %119 = vector.load %arg9[%c80_140, %c0_141] : memref<224x1024xbf16, #tpu.memory_space<vmem>>, vector<8x1024xbf16>
    tpu.vector_store %arg9[%c80_140, %c0_141], %118 {strides = array<i32>} : memref<224x1024xbf16, #tpu.memory_space<vmem>>, vector<8x1024xbf16>,
    %c0_142 = arith.constant 0 : index
    %c119_143 = arith.constant 119 : index
    %120 = vector.load %arg8[%c0_142, %c119_143] : memref<8x1280xbf16, #tpu.memory_space<vmem>>, vector<8x1024xbf16>
    %c88_144 = arith.constant 88 : index
    %c0_145 = arith.constant 0 : index
    %121 = vector.load %arg9[%c88_144, %c0_145] : memref<224x1024xbf16, #tpu.memory_space<vmem>>, vector<8x1024xbf16>
    tpu.vector_store %arg9[%c88_144, %c0_145], %120 {strides = array<i32>} : memref<224x1024xbf16, #tpu.memory_space<vmem>>, vector<8x1024xbf16>,
    %c0_146 = arith.constant 0 : index
    %c127_147 = arith.constant 127 : index
    %122 = vector.load %arg8[%c0_146, %c127_147] : memref<8x1280xbf16, #tpu.memory_space<vmem>>, vector<8x1024xbf16>
    %c96_148 = arith.constant 96 : index
    %c0_149 = arith.constant 0 : index
    %123 = vector.load %arg9[%c96_148, %c0_149] : memref<224x1024xbf16, #tpu.memory_space<vmem>>, vector<8x1024xbf16>
    tpu.vector_store %arg9[%c96_148, %c0_149], %122 {strides = array<i32>} : memref<224x1024xbf16, #tpu.memory_space<vmem>>, vector<8x1024xbf16>,
    %c0_150 = arith.constant 0 : index
    %c128_151 = arith.constant 128 : index
    %124 = vector.load %arg8[%c0_150, %c128_151] : memref<8x1280xbf16, #tpu.memory_space<vmem>>, vector<8x1024xbf16>
    %c104_152 = arith.constant 104 : index
    %c0_153 = arith.constant 0 : index
    %125 = vector.load %arg9[%c104_152, %c0_153] : memref<224x1024xbf16, #tpu.memory_space<vmem>>, vector<8x1024xbf16>
    tpu.vector_store %arg9[%c104_152, %c0_153], %124 {strides = array<i32>} : memref<224x1024xbf16, #tpu.memory_space<vmem>>, vector<8x1024xbf16>,
    %c0_154 = arith.constant 0 : index
    %c129_155 = arith.constant 129 : index
    %126 = vector.load %arg8[%c0_154, %c129_155] : memref<8x1280xbf16, #tpu.memory_space<vmem>>, vector<8x1024xbf16>
    %c112_156 = arith.constant 112 : index
    %c0_157 = arith.constant 0 : index
    %127 = vector.load %arg9[%c112_156, %c0_157] : memref<224x1024xbf16, #tpu.memory_space<vmem>>, vector<8x1024xbf16>
    tpu.vector_store %arg9[%c112_156, %c0_157], %126 {strides = array<i32>} : memref<224x1024xbf16, #tpu.memory_space<vmem>>, vector<8x1024xbf16>,
    %c0_158 = arith.constant 0 : index
    %c137_159 = arith.constant 137 : index
    %128 = vector.load %arg8[%c0_158, %c137_159] : memref<8x1280xbf16, #tpu.memory_space<vmem>>, vector<8x1024xbf16>
    %c120_160 = arith.constant 120 : index
    %c0_161 = arith.constant 0 : index
    %129 = vector.load %arg9[%c120_160, %c0_161] : memref<224x1024xbf16, #tpu.memory_space<vmem>>, vector<8x1024xbf16>
    tpu.vector_store %arg9[%c120_160, %c0_161], %128 {strides = array<i32>} : memref<224x1024xbf16, #tpu.memory_space<vmem>>, vector<8x1024xbf16>,
    %c0_162 = arith.constant 0 : index
    %c138_163 = arith.constant 138 : index
    %130 = vector.load %arg8[%c0_162, %c138_163] : memref<8x1280xbf16, #tpu.memory_space<vmem>>, vector<8x1024xbf16>
    %c128_164 = arith.constant 128 : index
    %c0_165 = arith.constant 0 : index
    %131 = vector.load %arg9[%c128_164, %c0_165] : memref<224x1024xbf16, #tpu.memory_space<vmem>>, vector<8x1024xbf16>
    tpu.vector_store %arg9[%c128_164, %c0_165], %130 {strides = array<i32>} : memref<224x1024xbf16, #tpu.memory_space<vmem>>, vector<8x1024xbf16>,
    %c0_166 = arith.constant 0 : index
    %c139_167 = arith.constant 139 : index
    %132 = vector.load %arg8[%c0_166, %c139_167] : memref<8x1280xbf16, #tpu.memory_space<vmem>>, vector<8x1024xbf16>
    %c136_168 = arith.constant 136 : index
    %c0_169 = arith.constant 0 : index
    %133 = vector.load %arg9[%c136_168, %c0_169] : memref<224x1024xbf16, #tpu.memory_space<vmem>>, vector<8x1024xbf16>
    tpu.vector_store %arg9[%c136_168, %c0_169], %132 {strides = array<i32>} : memref<224x1024xbf16, #tpu.memory_space<vmem>>, vector<8x1024xbf16>,
    %c0_170 = arith.constant 0 : index
    %c217_171 = arith.constant 217 : index
    %134 = vector.load %arg8[%c0_170, %c217_171] : memref<8x1280xbf16, #tpu.memory_space<vmem>>, vector<8x1024xbf16>
    %c144_172 = arith.constant 144 : index
    %c0_173 = arith.constant 0 : index
    %135 = vector.load %arg9[%c144_172, %c0_173] : memref<224x1024xbf16, #tpu.memory_space<vmem>>, vector<8x1024xbf16>
    tpu.vector_store %arg9[%c144_172, %c0_173], %134 {strides = array<i32>} : memref<224x1024xbf16, #tpu.memory_space<vmem>>, vector<8x1024xbf16>,
    %c0_174 = arith.constant 0 : index
    %c218_175 = arith.constant 218 : index
    %136 = vector.load %arg8[%c0_174, %c218_175] : memref<8x1280xbf16, #tpu.memory_space<vmem>>, vector<8x1024xbf16>
    %c152_176 = arith.constant 152 : index
    %c0_177 = arith.constant 0 : index
    %137 = vector.load %arg9[%c152_176, %c0_177] : memref<224x1024xbf16, #tpu.memory_space<vmem>>, vector<8x1024xbf16>
    tpu.vector_store %arg9[%c152_176, %c0_177], %136 {strides = array<i32>} : memref<224x1024xbf16, #tpu.memory_space<vmem>>, vector<8x1024xbf16>,
    %c0_178 = arith.constant 0 : index
    %c219_179 = arith.constant 219 : index
    %138 = vector.load %arg8[%c0_178, %c219_179] : memref<8x1280xbf16, #tpu.memory_space<vmem>>, vector<8x1024xbf16>
    %c160_180 = arith.constant 160 : index
    %c0_181 = arith.constant 0 : index
    %139 = vector.load %arg9[%c160_180, %c0_181] : memref<224x1024xbf16, #tpu.memory_space<vmem>>, vector<8x1024xbf16>
    tpu.vector_store %arg9[%c160_180, %c0_181], %138 {strides = array<i32>} : memref<224x1024xbf16, #tpu.memory_space<vmem>>, vector<8x1024xbf16>,
    %c0_182 = arith.constant 0 : index
    %c227_183 = arith.constant 227 : index
    %140 = vector.load %arg8[%c0_182, %c227_183] : memref<8x1280xbf16, #tpu.memory_space<vmem>>, vector<8x1024xbf16>
    %c168_184 = arith.constant 168 : index
    %c0_185 = arith.constant 0 : index
    %141 = vector.load %arg9[%c168_184, %c0_185] : memref<224x1024xbf16, #tpu.memory_space<vmem>>, vector<8x1024xbf16>
    tpu.vector_store %arg9[%c168_184, %c0_185], %140 {strides = array<i32>} : memref<224x1024xbf16, #tpu.memory_space<vmem>>, vector<8x1024xbf16>,
    %c0_186 = arith.constant 0 : index
    %c228_187 = arith.constant 228 : index
    %142 = vector.load %arg8[%c0_186, %c228_187] : memref<8x1280xbf16, #tpu.memory_space<vmem>>, vector<8x1024xbf16>
    %c176_188 = arith.constant 176 : index
    %c0_189 = arith.constant 0 : index
    %143 = vector.load %arg9[%c176_188, %c0_189] : memref<224x1024xbf16, #tpu.memory_space<vmem>>, vector<8x1024xbf16>
    tpu.vector_store %arg9[%c176_188, %c0_189], %142 {strides = array<i32>} : memref<224x1024xbf16, #tpu.memory_space<vmem>>, vector<8x1024xbf16>,
    %c0_190 = arith.constant 0 : index
    %c229_191 = arith.constant 229 : index
    %144 = vector.load %arg8[%c0_190, %c229_191] : memref<8x1280xbf16, #tpu.memory_space<vmem>>, vector<8x1024xbf16>
    %c184_192 = arith.constant 184 : index
    %c0_193 = arith.constant 0 : index
    %145 = vector.load %arg9[%c184_192, %c0_193] : memref<224x1024xbf16, #tpu.memory_space<vmem>>, vector<8x1024xbf16>
    tpu.vector_store %arg9[%c184_192, %c0_193], %144 {strides = array<i32>} : memref<224x1024xbf16, #tpu.memory_space<vmem>>, vector<8x1024xbf16>,
    %c0_194 = arith.constant 0 : index
    %c237_195 = arith.constant 237 : index
    %146 = vector.load %arg8[%c0_194, %c237_195] : memref<8x1280xbf16, #tpu.memory_space<vmem>>, vector<8x1024xbf16>
    %c192_196 = arith.constant 192 : index
    %c0_197 = arith.constant 0 : index
    %147 = vector.load %arg9[%c192_196, %c0_197] : memref<224x1024xbf16, #tpu.memory_space<vmem>>, vector<8x1024xbf16>
    tpu.vector_store %arg9[%c192_196, %c0_197], %146 {strides = array<i32>} : memref<224x1024xbf16, #tpu.memory_space<vmem>>, vector<8x1024xbf16>,
    %c0_198 = arith.constant 0 : index
    %c238_199 = arith.constant 238 : index
    %148 = vector.load %arg8[%c0_198, %c238_199] : memref<8x1280xbf16, #tpu.memory_space<vmem>>, vector<8x1024xbf16>
    %c200_200 = arith.constant 200 : index
    %c0_201 = arith.constant 0 : index
    %149 = vector.load %arg9[%c200_200, %c0_201] : memref<224x1024xbf16, #tpu.memory_space<vmem>>, vector<8x1024xbf16>
    tpu.vector_store %arg9[%c200_200, %c0_201], %148 {strides = array<i32>} : memref<224x1024xbf16, #tpu.memory_space<vmem>>, vector<8x1024xbf16>,
    %c0_202 = arith.constant 0 : index
    %c239_203 = arith.constant 239 : index
    %150 = vector.load %arg8[%c0_202, %c239_203] : memref<8x1280xbf16, #tpu.memory_space<vmem>>, vector<8x1024xbf16>
    %c208_204 = arith.constant 208 : index
    %c0_205 = arith.constant 0 : index
    %151 = vector.load %arg9[%c208_204, %c0_205] : memref<224x1024xbf16, #tpu.memory_space<vmem>>, vector<8x1024xbf16>
    tpu.vector_store %arg9[%c208_204, %c0_205], %150 {strides = array<i32>} : memref<224x1024xbf16, #tpu.memory_space<vmem>>, vector<8x1024xbf16>,
    %c0_206 = arith.constant 0 : index
    %c0_207 = arith.constant 0 : index
    %c128_208 = arith.constant 128 : index
    %152 = vector.load %arg1[%c0_206, %c0_207, %c128_208] : memref<1x8x1280xbf16, #tpu.memory_space<vmem>>, vector<1x8x1024xbf16>
    %153 = vector.shape_cast %152 : vector<1x8x1024xbf16> to vector<8x1024xbf16>
    %c216 = arith.constant 216 : index
    %c0_209 = arith.constant 0 : index
    %154 = vector.load %arg9[%c216, %c0_209] : memref<224x1024xbf16, #tpu.memory_space<vmem>>, vector<8x1024xbf16>
    tpu.vector_store %arg9[%c216, %c0_209], %153 {strides = array<i32>} : memref<224x1024xbf16, #tpu.memory_space<vmem>>, vector<8x1024xbf16>,
    %c0_210 = arith.constant 0 : index
    %c0_211 = arith.constant 0 : index
    %155 = vector.load %arg3[%c0_210, %c0_211] : memref<8x224xbf16, #tpu.memory_space<vmem>>, vector<8x224xbf16>
    %c0_212 = arith.constant 0 : index
    %c0_213 = arith.constant 0 : index
    %156 = vector.load %arg9[%c0_212, %c0_213] : memref<224x1024xbf16, #tpu.memory_space<vmem>>, vector<224x1024xbf16>
    %cst_214 = arith.constant dense<0.000000e+00> : vector<8x1024xf32>
    %157 = tpu.matmul %155, %156, %cst_214 {dimension_numbers = #tpu.dot_dimension_numbers<[1], [0], [0], [1], [0, 0, 1, 1], [], []>} : vector<8x224xbf16>, vector<224x1024xbf16>, vector<8x1024xf32> -> vector<8x1024xf32>
    %c0_215 = arith.constant 0 : index
    %c0_216 = arith.constant 0 : index
    %158 = vector.load %arg5[%c0_215, %c0_216] : memref<8x1xf32, #tpu.memory_space<vmem>>, vector<8x1xf32>
    %159 = vector.broadcast %158 : vector<8x1xf32> to vector<8x1024xf32>
    %160 = arith.addf %157, %159 : vector<8x1024xf32>
    %cst_217 = arith.constant 0.000000e+00 : f32
    %161 = vector.broadcast %cst_217 : f32 to vector<8x1024xf32>
    %162 = arith.maximumf %160, %161 : vector<8x1024xf32>
    %c0_218 = arith.constant 0 : index
    %c0_219 = arith.constant 0 : index
    %c0_220 = arith.constant 0 : index
    %163 = vector.load %arg7[%c0_218, %c0_219, %c0_220] : memref<1x8x1024xf32, #tpu.memory_space<vmem>>, vector<1x8x1024xf32>
    %164 = vector.shape_cast %163 : vector<1x8x1024xf32> to vector<8x1024xf32>
    %165 = vector.shape_cast %162 : vector<8x1024xf32> to vector<1x8x1024xf32>
    tpu.vector_store %arg7[%c0_218, %c0_219, %c0_220], %165 {strides = array<i32>} : memref<1x8x1024xf32, #tpu.memory_space<vmem>>, vector<1x8x1024xf32>,
    return
  }
  func.func @transform_0(%arg0: i32) -> (i32, i32, i32) {
    %c0_i32 = arith.constant 0 : i32
    %c0_i32_0 = arith.constant 0 : i32
    %c0_i32_1 = arith.constant 0 : i32
    return %arg0, %c0_i32, %c0_i32_0 : i32, i32, i32
  }
  func.func @transform_1(%arg0: i32) -> (i32, i32) {
    %c0_i32 = arith.constant 0 : i32
    %c0_i32_0 = arith.constant 0 : i32
    %c0_i32_1 = arith.constant 0 : i32
    return %c0_i32, %c0_i32_0 : i32, i32
  }
  func.func @transform_2(%arg0: i32) -> (i32, i32) {
    %c0_i32 = arith.constant 0 : i32
    %c0_i32_0 = arith.constant 0 : i32
    %c0_i32_1 = arith.constant 0 : i32
    return %c0_i32, %c0_i32_0 : i32, i32
  }
  func.func @transform_3(%arg0: i32) -> (i32, i32) {
    %c0_i32 = arith.constant 0 : i32
    %c0_i32_0 = arith.constant 0 : i32
    %c0_i32_1 = arith.constant 0 : i32
    return %c0_i32, %c0_i32_0 : i32, i32
  }
  func.func @transform_4(%arg0: i32) -> (i32, i32) {
    %c0_i32 = arith.constant 0 : i32
    %c0_i32_0 = arith.constant 0 : i32
    %c0_i32_1 = arith.constant 0 : i32
    return %c0_i32, %c0_i32_0 : i32, i32
  }
  func.func @transform_5(%arg0: i32) -> (i32, i32) {
    %c0_i32 = arith.constant 0 : i32
    %c0_i32_0 = arith.constant 0 : i32
    %c0_i32_1 = arith.constant 0 : i32
    return %c0_i32, %c0_i32_0 : i32, i32
  }
  func.func @transform_6(%arg0: i32) -> (i32, i32, i32) {
    %c0_i32 = arith.constant 0 : i32
    %c0_i32_0 = arith.constant 0 : i32
    %c0_i32_1 = arith.constant 0 : i32
    return %arg0, %c0_i32, %c0_i32_0 : i32, i32, i32
  }
}

</mosaic_0001>

<llo_original>
// kernel: unit_res_basic_forward.1
$region0: #{unit_res_basic_forward.1}
  #allocation0 [shape = 'u32[]', space=smem, size = 0x4, offset = 0x4, fixed_abs, tag = 'smem constant byte address 0x4 - core index']
  #allocation1 [shape = 'u32[144,128]{1,0:T(1,128)}', space=vmem, size = 0x12000, scoped, tag = 'internal scratch']
  #allocation2 [shape = 'bf16[8,1280]{1,0:T(8,128)(2,1)}', space=vmem, size = 0x5000, scoped, tag = 'scratch operand']
  #allocation3 [shape = 'bf16[224,1024]{1,0:T(8,128)(2,1)}', space=vmem, size = 0x70000, scoped, tag = 'scratch operand']
  %s0 = inlined_call_operand.vmem [shape: bf16[2,8,1280], index: 0, kind: input, shape index: {}]
  %s1 = inlined_call_operand.vmem [shape: bf16[8,216], index: 1, kind: input, shape index: {}]
  %s2 = inlined_call_operand.vmem [shape: bf16[8,224], index: 2, kind: input, shape index: {}]
  %s3 = inlined_call_operand.vmem [shape: f32[8,1], index: 3, kind: input, shape index: {}]
  %s4 = inlined_call_operand.vmem [shape: f32[8,1], index: 4, kind: input, shape index: {}]
  %s5 = inlined_call_operand.vmem [shape: bf16[1,1024], index: 5, kind: input, shape index: {}]
  %s6 = inlined_call_operand.vmem [shape: f32[2,8,1024], index: 6, kind: output, shape index: {}]
  %s7 = sld [smem:[#allocation0]]
  $region57: #{unit_res_basic_forward.1} parent=0
    _
  %s9 = ssub.s32 1, %s7
  %s10 = scalar_select 0, %s9, %s7
  loop: start=0, step=1, limit=4
  $region2: #{unit_res_basic_forward.1} parent=0 // loop_pre_header
    _
  $region3: #{unit_res_basic_forward.1} parent=0 // loop_header
    %s12 = sphi 0, %s16
    %p13 = scmp.ge.s32.totalorder %s12, 4
    %s22 = sphi 0, %s24
    %s25 = sphi 0, %s22
    %s26 = sphi 0, %s25
    %s42 = sphi 0, %s26
    %s46 = sphi 0, %s46
    %s48 = sphi 0, %s46
    %s49 = sphi 0, %s48
    %s63 = sphi 0, %s49
    %s67 = sphi 0, %s67
    %s69 = sphi 0, %s67
    %s70 = sphi 0, %s69
    %s84 = sphi 0, %s70
    %s88 = sphi 0, %s88
    %s90 = sphi 0, %s88
    %s91 = sphi 0, %s90
    %s105 = sphi 0, %s91
    %s109 = sphi 0, %s109
    %s111 = sphi 0, %s109
    %s112 = sphi 0, %s111
    %s126 = sphi 0, %s112
    %s130 = sphi 0, %s130
    %s132 = sphi 0, %s130
    %s133 = sphi 0, %s132
    %s147 = sphi 0, %s133
    %s153 = sphi 0, %s155
    %s156 = sphi 0, %s153
    %s157 = sphi 0, %s156
    %s173 = sphi 0, %s157
  $region4: #{unit_res_basic_forward.1} parent=0 // loop_header_branch
    %15 = sbr.rel (%p13) target = $region8
  $region5: #{unit_res_basic_forward.1} parent=0 // loop_body
    %s17 = ssub.s32 %s12, 1
    %s18 = ssub.s32 %s12, 2
    %s19 = sadd.s32 %s12, 1
    %s20 = ssub.s32 %s12, %s19
    %p21 = scmp.eq.s32.totalorder %s20, 0
    %s23 = sadd.s32 %s22, 1
    %s24 = scalar_select %p21, %s22, %s23
    %p27 = pneg %p21
    %p28 = scmp.eq.s32.totalorder %s12, 1
    %p29 = por %p27, %p28
    %p30 = scmp.ne.s32.totalorder %s22, %s25
    %p31 = scmp.eq.s32.totalorder %s12, 0
    %p32 = por %p30, %p31
    %p33 = scmp.ne.s32.totalorder %s22, %s25
    %p34 = scmp.eq.s32.totalorder %s17, 1
    %p35 = por %p33, %p34
    %p36 = scmp.ne.s32.totalorder %s25, %s26
    %p37 = scmp.eq.s32.totalorder %s17, 0
    %p38 = por %p36, %p37
    %p39 = scmp.ne.s32.totalorder %s25, %s26
    %p40 = scmp.eq.s32.totalorder %s18, 1
    %p41 = por %p39, %p40
    %p43 = scmp.ne.s32.totalorder %s26, %s42
    %p44 = scmp.eq.s32.totalorder %s18, 0
    %p45 = por %p43, %p44
    %s47 = sadd.s32 %s46, 1
    %p50 = scmp.eq.s32.totalorder %s12, 1
    %p51 = scmp.ne.s32.totalorder %s46, %s48
    %p52 = scmp.eq.s32.totalorder %s12, 0
    %p53 = por %p51, %p52
    %p54 = scmp.ne.s32.totalorder %s46, %s48
    %p55 = scmp.eq.s32.totalorder %s17, 1
    %p56 = por %p54, %p55
    %p57 = scmp.ne.s32.totalorder %s48, %s49
    %p58 = scmp.eq.s32.totalorder %s17, 0
    %p59 = por %p57, %p58
    %p60 = scmp.ne.s32.totalorder %s48, %s49
    %p61 = scmp.eq.s32.totalorder %s18, 1
    %p62 = por %p60, %p61
    %p64 = scmp.ne.s32.totalorder %s49, %s63
    %p65 = scmp.eq.s32.totalorder %s18, 0
    %p66 = por %p64, %p65
    %s68 = sadd.s32 %s67, 1
    %p71 = scmp.eq.s32.totalorder %s12, 1
    %p72 = scmp.ne.s32.totalorder %s67, %s69
    %p73 = scmp.eq.s32.totalorder %s12, 0
    %p74 = por %p72, %p73
    %p75 = scmp.ne.s32.totalorder %s67, %s69
    %p76 = scmp.eq.s32.totalorder %s17, 1
    %p77 = por %p75, %p76
    %p78 = scmp.ne.s32.totalorder %s69, %s70
    %p79 = scmp.eq.s32.totalorder %s17, 0
    %p80 = por %p78, %p79
    %p81 = scmp.ne.s32.totalorder %s69, %s70
    %p82 = scmp.eq.s32.totalorder %s18, 1
    %p83 = por %p81, %p82
    %p85 = scmp.ne.s32.totalorder %s70, %s84
    %p86 = scmp.eq.s32.totalorder %s18, 0
    %p87 = por %p85, %p86
    %s89 = sadd.s32 %s88, 1
    %p92 = scmp.eq.s32.totalorder %s12, 1
    %p93 = scmp.ne.s32.totalorder %s88, %s90
    %p94 = scmp.eq.s32.totalorder %s12, 0
    %p95 = por %p93, %p94
    %p96 = scmp.ne.s32.totalorder %s88, %s90
    %p97 = scmp.eq.s32.totalorder %s17, 1
    %p98 = por %p96, %p97
    %p99 = scmp.ne.s32.totalorder %s90, %s91
    %p100 = scmp.eq.s32.totalorder %s17, 0
    %p101 = por %p99, %p100
    %p102 = scmp.ne.s32.totalorder %s90, %s91
    %p103 = scmp.eq.s32.totalorder %s18, 1
    %p104 = por %p102, %p103
    %p106 = scmp.ne.s32.totalorder %s91, %s105
    %p107 = scmp.eq.s32.totalorder %s18, 0
    %p108 = por %p106, %p107
    %s110 = sadd.s32 %s109, 1
    %p113 = scmp.eq.s32.totalorder %s12, 1
    %p114 = scmp.ne.s32.totalorder %s109, %s111
    %p115 = scmp.eq.s32.totalorder %s12, 0
    %p116 = por %p114, %p115
    %p117 = scmp.ne.s32.totalorder %s109, %s111
    %p118 = scmp.eq.s32.totalorder %s17, 1
    %p119 = por %p117, %p118
    %p120 = scmp.ne.s32.totalorder %s111, %s112
    %p121 = scmp.eq.s32.totalorder %s17, 0
    %p122 = por %p120, %p121
    %p123 = scmp.ne.s32.totalorder %s111, %s112
    %p124 = scmp.eq.s32.totalorder %s18, 1
    %p125 = por %p123, %p124
    %p127 = scmp.ne.s32.totalorder %s112, %s126
    %p128 = scmp.eq.s32.totalorder %s18, 0
    %p129 = por %p127, %p128
    %s131 = sadd.s32 %s130, 1
    %p134 = scmp.eq.s32.totalorder %s12, 1
    %p135 = scmp.ne.s32.totalorder %s130, %s132
    %p136 = scmp.eq.s32.totalorder %s12, 0
    %p137 = por %p135, %p136
    %p138 = scmp.ne.s32.totalorder %s130, %s132
    %p139 = scmp.eq.s32.totalorder %s17, 1
    %p140 = por %p138, %p139
    %p141 = scmp.ne.s32.totalorder %s132, %s133
    %p142 = scmp.eq.s32.totalorder %s17, 0
    %p143 = por %p141, %p142
    %p144 = scmp.ne.s32.totalorder %s132, %s133
    %p145 = scmp.eq.s32.totalorder %s18, 1
    %p146 = por %p144, %p145
    %p148 = scmp.ne.s32.totalorder %s133, %s147
    %p149 = scmp.eq.s32.totalorder %s18, 0
    %p150 = por %p148, %p149
    %s151 = ssub.s32 %s12, %s19
    %p152 = scmp.eq.s32.totalorder %s151, 0
    %s154 = sadd.s32 %s153, 1
    %s155 = scalar_select %p152, %s153, %s154
    %p158 = pneg %p152
    %p159 = scmp.eq.s32.totalorder %s12, 1
    %p160 = por %p158, %p159
    %p161 = scmp.ne.s32.totalorder %s153, %s156
    %p162 = scmp.eq.s32.totalorder %s12, 0
    %p163 = por %p161, %p162
    %p164 = scmp.ne.s32.totalorder %s153, %s156
    %p165 = scmp.eq.s32.totalorder %s17, 1
    %p166 = por %p164, %p165
    %p167 = scmp.ne.s32.totalorder %s156, %s157
    %p168 = scmp.eq.s32.totalorder %s17, 0
    %p169 = por %p167, %p168
    %p170 = scmp.ne.s32.totalorder %s156, %s157
    %p171 = scmp.eq.s32.totalorder %s18, 1
    %p172 = por %p170, %p171
    %p174 = scmp.ne.s32.totalorder %s157, %s173
    %p175 = scmp.eq.s32.totalorder %s18, 0
    %p176 = por %p174, %p175
    %p177 = scmp.le.s32.totalorder 1, %s12
    %p178 = scmp.lt.s32.totalorder %s12, 3
    %p179 = pnand %p177, %p178
    %p180 = pneg %p179
    // Predicated region
    $region9: #{unit_res_basic_forward.1} parent=5 // pred_check
      _
    $region10: #{unit_res_basic_forward.1} parent=5 // pred_check_branch
      %182 = sbr.rel (%p179) target = $region12
    $region11: #{unit_res_basic_forward.1} parent=5 // pred_region
      %s183 = ssub.s32 %s12, 1
      // Predicated region
      $region13: #{unit_res_basic_forward.1} parent=11 // pred_check
        %p184 = pneg %p59
      $region14: #{unit_res_basic_forward.1} parent=11 // pred_check_branch
        %186 = sbr.rel (%p184) target = $region16
      $region15: #{unit_res_basic_forward.1} parent=11 // pred_region
        _
      $region16: #{unit_res_basic_forward.1} parent=11 // pred_fallthru
        _
      // Predicated region
      $region17: #{unit_res_basic_forward.1} parent=11 // pred_check
        %p187 = pneg %p80
      $region18: #{unit_res_basic_forward.1} parent=11 // pred_check_branch
        %189 = sbr.rel (%p187) target = $region20
      $region19: #{unit_res_basic_forward.1} parent=11 // pred_region
        _
      $region20: #{unit_res_basic_forward.1} parent=11 // pred_fallthru
        _
      // Predicated region
      $region21: #{unit_res_basic_forward.1} parent=11 // pred_check
        %p190 = pneg %p101
      $region22: #{unit_res_basic_forward.1} parent=11 // pred_check_branch
        %192 = sbr.rel (%p190) target = $region24
      $region23: #{unit_res_basic_forward.1} parent=11 // pred_region
        _
      $region24: #{unit_res_basic_forward.1} parent=11 // pred_fallthru
        _
      // Predicated region
      $region25: #{unit_res_basic_forward.1} parent=11 // pred_check
        %p193 = pneg %p122
      $region26: #{unit_res_basic_forward.1} parent=11 // pred_check_branch
        %195 = sbr.rel (%p193) target = $region28
      $region27: #{unit_res_basic_forward.1} parent=11 // pred_region
        _
      $region28: #{unit_res_basic_forward.1} parent=11 // pred_fallthru
        _
      // Predicated region
      $region29: #{unit_res_basic_forward.1} parent=11 // pred_check
        %p196 = pneg %p143
      $region30: #{unit_res_basic_forward.1} parent=11 // pred_check_branch
        %198 = sbr.rel (%p196) target = $region32
      $region31: #{unit_res_basic_forward.1} parent=11 // pred_region
        _
      $region32: #{unit_res_basic_forward.1} parent=11 // pred_fallthru
        _
    $region12: #{unit_res_basic_forward.1} parent=5 // pred_fallthru
      _
    %p199 = scmp.lt.s32.totalorder %s12, 2
    // Predicated region
    $region33: #{unit_res_basic_forward.1} parent=5 // pred_check
      %p200 = pneg %p199
    $region34: #{unit_res_basic_forward.1} parent=5 // pred_check_branch
      %202 = sbr.rel (%p200) target = $region36
    $region35: #{unit_res_basic_forward.1} parent=5 // pred_region
      // Predicated region
      $region37: #{unit_res_basic_forward.1} parent=35 // pred_check
        %p203 = pneg %p32
      $region38: #{unit_res_basic_forward.1} parent=35 // pred_check_branch
        %205 = sbr.rel (%p203) target = $region40
      $region39: #{unit_res_basic_forward.1} parent=35 // pred_region
        %p206 = scmp.lt.s32.totalorder %s12, 1
        %s207 = scalar_select %p206, %s12, 1
        %s208 = smul.addr %s207, 10
        %s209 = smul.addr %s208, 4
        %s210 = scalar_lea.vmem %s0, %s209
      $region40: #{unit_res_basic_forward.1} parent=35 // pred_fallthru
        _
    $region36: #{unit_res_basic_forward.1} parent=5 // pred_fallthru
      _
    %p211 = scmp.le.s32.totalorder 1, %s12
    %p212 = scmp.lt.s32.totalorder %s12, 3
    %p213 = pnand %p211, %p212
    %p214 = pneg %p213
    // Predicated region
    $region41: #{unit_res_basic_forward.1} parent=5 // pred_check
      _
    $region42: #{unit_res_basic_forward.1} parent=5 // pred_check_branch
      %216 = sbr.rel (%p213) target = $region44
    $region43: #{unit_res_basic_forward.1} parent=5 // pred_region
      %s217 = ssub.s32 %s12, 1
      %p218 = scmp.lt.s32.totalorder %s17, 1
      %s219 = scalar_select %p218, %s17, 1
      %s220 = smul.addr %s219, 10
      %s221 = smul.addr %s220, 4
      %s222 = scalar_lea.vmem %s0, %s221
      %p223 = pneg %p38
      %p224 = pneg %p35
      %p225 = pneg %p59
      %p226 = pneg %p56
      %p227 = pneg %p80
      %p228 = pneg %p77
      %p229 = pneg %p101
      %p230 = pneg %p98
      %p231 = pneg %p122
      %p232 = pneg %p119
      %p233 = pneg %p143
      %p234 = pneg %p140
      %p235 = pneg %p169
      %p236 = pneg %p166
      %p237 = scmp.lt.s32.totalorder %s17, 1
      %s238 = scalar_select %p237, %s17, 1
      %s239 = smul.addr %s238, 8
      %s240 = smul.addr %s239, 8
      %s241 = scalar_lea.vmem %s6, %s240
      %p242 = scmp.lt.s32.totalorder %s17, 1
      %s243 = scalar_select %p242, %s17, 1
      %s244 = smul.addr %s243, 10
      %s245 = smul.addr %s244, 4
      %s246 = scalar_lea.vmem %s0, %s245
      %p247 = scmp.lt.s32.totalorder %s17, 1
      %s248 = scalar_select %p247, %s17, 1
      %s249 = smul.addr %s248, 8
      %s250 = smul.addr %s249, 8
      %s251 = scalar_lea.vmem %s6, %s250
      %v253 = vld [vmem:[%s246] sm:$0xff]
      %v254 = vld [vmem:[%s246 + $0x8] sm:$0xff]
      %v255 = vld [vmem:[%s246 + $0x10] sm:$0xff]
      %v256 = vld [vmem:[%s246 + $0x18] sm:$0xff]
      %v257 = vld [vmem:[%s246 + $0x20] sm:$0xf]
      %263 = vrot.lane.b32.xlu0 %v253, 111
      %v264 = vpop.permute.xlu0 %263
      %265 = vrot.lane.b32.xlu0 %v254, 111
      %v266 = vpop.permute.xlu0 %265
      %267 = vrot.lane.b32.xlu0 %v255, 111
      %v268 = vpop.permute.xlu0 %267
      %269 = vrot.lane.b32.xlu0 %v256, 111
      %v270 = vpop.permute.xlu0 %269
      %271 = vrot.lane.b32.xlu0 %v257, 111
      %v272 = vpop.permute.xlu0 %271
      %v273 = vrot.slane %v264, 4
      %v274 = vrot.slane %v266, 4
      %v275 = vrot.slane %v268, 4
      %v276 = vrot.slane %v270, 4
      %v277 = vrot.slane %v272, 4
      %vm278 = vcmask 1043456
      %v279 = vsel %vm278, %v273, %v274
      %vm280 = vcmask 908288
      %v281 = vsel %vm280, %v264, %v279
      %v282 = vsel %vm278, %v274, %v275
      %v283 = vsel %vm280, %v266, %v282
      %v284 = vsel %vm278, %v275, %v276
      %v285 = vsel %vm280, %v268, %v284
      %v286 = vsel %vm278, %v276, %v277
      %v287 = vsel %vm280, %v270, %v286
      %292 = vst [vmem:[#allocation3] sm:$0xff] %v281
      %293 = vst [vmem:[#allocation3 + $0x8] sm:$0xff] %v283
      %294 = vst [vmem:[#allocation3 + $0x10] sm:$0xff] %v285
      %295 = vst [vmem:[#allocation3 + $0x18] sm:$0xff] %v287
      %v296 = vld [vmem:[%s246] sm:$0xff]
      %v297 = vld [vmem:[%s246 + $0x8] sm:$0xff]
      %v298 = vld [vmem:[%s246 + $0x10] sm:$0xff]
      %v299 = vld [vmem:[%s246 + $0x18] sm:$0xff]
      %v300 = vld [vmem:[%s246 + $0x20] sm:$0xf]
      %306 = vrot.lane.b32.xlu0 %v296, 110
      %v307 = vpop.permute.xlu0 %306
      %308 = vrot.lane.b32.xlu0 %v297, 110
      %v309 = vpop.permute.xlu0 %308
      %310 = vrot.lane.b32.xlu0 %v298, 110
      %v311 = vpop.permute.xlu0 %310
      %312 = vrot.lane.b32.xlu0 %v299, 110
      %v313 = vpop.permute.xlu0 %312
      %314 = vrot.lane.b32.xlu0 %v300, 110
      %v315 = vpop.permute.xlu0 %314
      %v316 = vrot.slane %v307, 4
      %v317 = vrot.slane %v309, 4
      %v318 = vrot.slane %v311, 4
      %v319 = vrot.slane %v313, 4
      %v320 = vrot.slane %v315, 4
      %v321 = vsel %vm278, %v316, %v317
      %vm322 = vcmask 900096
      %v323 = vsel %vm322, %v307, %v321
      %v324 = vsel %vm278, %v317, %v318
      %v325 = vsel %vm322, %v309, %v324
      %v326 = vsel %vm278, %v318, %v319
      %v327 = vsel %vm322, %v311, %v326
      %v328 = vsel %vm278, %v319, %v320
      %v329 = vsel %vm322, %v313, %v328
      %334 = vst [vmem:[#allocation3 + $0x20] sm:$0xff] %v323
      %335 = vst [vmem:[#allocation3 + $0x28] sm:$0xff] %v325
      %336 = vst [vmem:[#allocation3 + $0x30] sm:$0xff] %v327
      %337 = vst [vmem:[#allocation3 + $0x38] sm:$0xff] %v329
      %v338 = vld [vmem:[%s246] sm:$0xff]
      %v339 = vld [vmem:[%s246 + $0x8] sm:$0xff]
      %v340 = vld [vmem:[%s246 + $0x10] sm:$0xff]
      %v341 = vld [vmem:[%s246 + $0x18] sm:$0xff]
      %v342 = vld [vmem:[%s246 + $0x20] sm:$0xf]
      %348 = vrot.lane.b32.xlu0 %v338, 109
      %v349 = vpop.permute.xlu0 %348
      %350 = vrot.lane.b32.xlu0 %v339, 109
      %v351 = vpop.permute.xlu0 %350
      %352 = vrot.lane.b32.xlu0 %v340, 109
      %v353 = vpop.permute.xlu0 %352
      %354 = vrot.lane.b32.xlu0 %v341, 109
      %v355 = vpop.permute.xlu0 %354
      %356 = vrot.lane.b32.xlu0 %v342, 109
      %v357 = vpop.permute.xlu0 %356
      %v358 = vrot.slane %v349, 4
      %v359 = vrot.slane %v351, 4
      %v360 = vrot.slane %v353, 4
      %v361 = vrot.slane %v355, 4
      %v362 = vrot.slane %v357, 4
      %v363 = vsel %vm278, %v358, %v359
      %vm364 = vcmask 891904
      %v365 = vsel %vm364, %v349, %v363
      %v366 = vsel %vm278, %v359, %v360
      %v367 = vsel %vm364, %v351, %v366
      %v368 = vsel %vm278, %v360, %v361
      %v369 = vsel %vm364, %v353, %v368
      %v370 = vsel %vm278, %v361, %v362
      %v371 = vsel %vm364, %v355, %v370
      %376 = vst [vmem:[#allocation3 + $0x40] sm:$0xff] %v365
      %377 = vst [vmem:[#allocation3 + $0x48] sm:$0xff] %v367
      %378 = vst [vmem:[#allocation3 + $0x50] sm:$0xff] %v369
      %379 = vst [vmem:[#allocation3 + $0x58] sm:$0xff] %v371
      %v380 = vld [vmem:[%s246] sm:$0xff]
      %v381 = vld [vmem:[%s246 + $0x8] sm:$0xff]
      %v382 = vld [vmem:[%s246 + $0x10] sm:$0xff]
      %v383 = vld [vmem:[%s246 + $0x18] sm:$0xff]
      %v384 = vld [vmem:[%s246 + $0x20] sm:$0xf]
      %390 = vrot.lane.b32.xlu0 %v380, 101
      %v391 = vpop.permute.xlu0 %390
      %392 = vrot.lane.b32.xlu0 %v381, 101
      %v393 = vpop.permute.xlu0 %392
      %394 = vrot.lane.b32.xlu0 %v382, 101
      %v395 = vpop.permute.xlu0 %394
      %396 = vrot.lane.b32.xlu0 %v383, 101
      %v397 = vpop.permute.xlu0 %396
      %398 = vrot.lane.b32.xlu0 %v384, 101
      %v399 = vpop.permute.xlu0 %398
      %v400 = vrot.slane %v391, 4
      %v401 = vrot.slane %v393, 4
      %v402 = vrot.slane %v395, 4
      %v403 = vrot.slane %v397, 4
      %v404 = vrot.slane %v399, 4
      %v405 = vsel %vm278, %v400, %v401
      %vm406 = vcmask 826368
      %v407 = vsel %vm406, %v391, %v405
      %v408 = vsel %vm278, %v401, %v402
      %v409 = vsel %vm406, %v393, %v408
      %v410 = vsel %vm278, %v402, %v403
      %v411 = vsel %vm406, %v395, %v410
      %v412 = vsel %vm278, %v403, %v404
      %v413 = vsel %vm406, %v397, %v412
      %418 = vst [vmem:[#allocation3 + $0x60] sm:$0xff] %v407
      %419 = vst [vmem:[#allocation3 + $0x68] sm:$0xff] %v409
      %420 = vst [vmem:[#allocation3 + $0x70] sm:$0xff] %v411
      %421 = vst [vmem:[#allocation3 + $0x78] sm:$0xff] %v413
      %v422 = vld [vmem:[%s246] sm:$0xff]
      %v423 = vld [vmem:[%s246 + $0x8] sm:$0xff]
      %v424 = vld [vmem:[%s246 + $0x10] sm:$0xff]
      %v425 = vld [vmem:[%s246 + $0x18] sm:$0xff]
      %v426 = vld [vmem:[%s246 + $0x20] sm:$0xf]
      %432 = vrot.lane.b32.xlu0 %v422, 100
      %v433 = vpop.permute.xlu0 %432
      %434 = vrot.lane.b32.xlu0 %v423, 100
      %v435 = vpop.permute.xlu0 %434
      %436 = vrot.lane.b32.xlu0 %v424, 100
      %v437 = vpop.permute.xlu0 %436
      %438 = vrot.lane.b32.xlu0 %v425, 100
      %v439 = vpop.permute.xlu0 %438
      %440 = vrot.lane.b32.xlu0 %v426, 100
      %v441 = vpop.permute.xlu0 %440
      %v442 = vrot.slane %v433, 4
      %v443 = vrot.slane %v435, 4
      %v444 = vrot.slane %v437, 4
      %v445 = vrot.slane %v439, 4
      %v446 = vrot.slane %v441, 4
      %v447 = vsel %vm278, %v442, %v443
      %vm448 = vcmask 818176
      %v449 = vsel %vm448, %v433, %v447
      %v450 = vsel %vm278, %v443, %v444
      %v451 = vsel %vm448, %v435, %v450
      %v452 = vsel %vm278, %v444, %v445
      %v453 = vsel %vm448, %v437, %v452
      %v454 = vsel %vm278, %v445, %v446
      %v455 = vsel %vm448, %v439, %v454
      %460 = vst [vmem:[#allocation3 + $0x80] sm:$0xff] %v449
      %461 = vst [vmem:[#allocation3 + $0x88] sm:$0xff] %v451
      %462 = vst [vmem:[#allocation3 + $0x90] sm:$0xff] %v453
      %463 = vst [vmem:[#allocation3 + $0x98] sm:$0xff] %v455
      %v464 = vld [vmem:[%s246] sm:$0xff]
      %v465 = vld [vmem:[%s246 + $0x8] sm:$0xff]
      %v466 = vld [vmem:[%s246 + $0x10] sm:$0xff]
      %v467 = vld [vmem:[%s246 + $0x18] sm:$0xff]
      %v468 = vld [vmem:[%s246 + $0x20] sm:$0xf]
      %474 = vrot.lane.b32.xlu0 %v464, 99
      %v475 = vpop.permute.xlu0 %474
      %476 = vrot.lane.b32.xlu0 %v465, 99
      %v477 = vpop.permute.xlu0 %476
      %478 = vrot.lane.b32.xlu0 %v466, 99
      %v479 = vpop.permute.xlu0 %478
      %480 = vrot.lane.b32.xlu0 %v467, 99
      %v481 = vpop.permute.xlu0 %480
      %482 = vrot.lane.b32.xlu0 %v468, 99
      %v483 = vpop.permute.xlu0 %482
      %v484 = vrot.slane %v475, 4
      %v485 = vrot.slane %v477, 4
      %v486 = vrot.slane %v479, 4
      %v487 = vrot.slane %v481, 4
      %v488 = vrot.slane %v483, 4
      %v489 = vsel %vm278, %v484, %v485
      %vm490 = vcmask 809984
      %v491 = vsel %vm490, %v475, %v489
      %v492 = vsel %vm278, %v485, %v486
      %v493 = vsel %vm490, %v477, %v492
      %v494 = vsel %vm278, %v486, %v487
      %v495 = vsel %vm490, %v479, %v494
      %v496 = vsel %vm278, %v487, %v488
      %v497 = vsel %vm490, %v481, %v496
      %502 = vst [vmem:[#allocation3 + $0xa0] sm:$0xff] %v491
      %503 = vst [vmem:[#allocation3 + $0xa8] sm:$0xff] %v493
      %504 = vst [vmem:[#allocation3 + $0xb0] sm:$0xff] %v495
      %505 = vst [vmem:[#allocation3 + $0xb8] sm:$0xff] %v497
      %v506 = vld [vmem:[%s246] sm:$0xff]
      %v507 = vld [vmem:[%s246 + $0x8] sm:$0xff]
      %v508 = vld [vmem:[%s246 + $0x10] sm:$0xff]
      %v509 = vld [vmem:[%s246 + $0x18] sm:$0xff]
      %v510 = vld [vmem:[%s246 + $0x20] sm:$0xf]
      %516 = vrot.lane.b32.xlu0 %v506, 91
      %v517 = vpop.permute.xlu0 %516
      %518 = vrot.lane.b32.xlu0 %v507, 91
      %v519 = vpop.permute.xlu0 %518
      %520 = vrot.lane.b32.xlu0 %v508, 91
      %v521 = vpop.permute.xlu0 %520
      %522 = vrot.lane.b32.xlu0 %v509, 91
      %v523 = vpop.permute.xlu0 %522
      %524 = vrot.lane.b32.xlu0 %v510, 91
      %v525 = vpop.permute.xlu0 %524
      %v526 = vrot.slane %v517, 4
      %v527 = vrot.slane %v519, 4
      %v528 = vrot.slane %v521, 4
      %v529 = vrot.slane %v523, 4
      %v530 = vrot.slane %v525, 4
      %v531 = vsel %vm278, %v526, %v527
      %vm532 = vcmask 744448
      %v533 = vsel %vm532, %v517, %v531
      %v534 = vsel %vm278, %v527, %v528
      %v535 = vsel %vm532, %v519, %v534
      %v536 = vsel %vm278, %v528, %v529
      %v537 = vsel %vm532, %v521, %v536
      %v538 = vsel %vm278, %v529, %v530
      %v539 = vsel %vm532, %v523, %v538
      %544 = vst [vmem:[#allocation3 + $0xc0] sm:$0xff] %v533
      %545 = vst [vmem:[#allocation3 + $0xc8] sm:$0xff] %v535
      %546 = vst [vmem:[#allocation3 + $0xd0] sm:$0xff] %v537
      %547 = vst [vmem:[#allocation3 + $0xd8] sm:$0xff] %v539
      %v548 = vld [vmem:[%s246] sm:$0xff]
      %v549 = vld [vmem:[%s246 + $0x8] sm:$0xff]
      %v550 = vld [vmem:[%s246 + $0x10] sm:$0xff]
      %v551 = vld [vmem:[%s246 + $0x18] sm:$0xff]
      %v552 = vld [vmem:[%s246 + $0x20] sm:$0xf]
      %558 = vrot.lane.b32.xlu0 %v548, 90
      %v559 = vpop.permute.xlu0 %558
      %560 = vrot.lane.b32.xlu0 %v549, 90
      %v561 = vpop.permute.xlu0 %560
      %562 = vrot.lane.b32.xlu0 %v550, 90
      %v563 = vpop.permute.xlu0 %562
      %564 = vrot.lane.b32.xlu0 %v551, 90
      %v565 = vpop.permute.xlu0 %564
      %566 = vrot.lane.b32.xlu0 %v552, 90
      %v567 = vpop.permute.xlu0 %566
      %v568 = vrot.slane %v559, 4
      %v569 = vrot.slane %v561, 4
      %v570 = vrot.slane %v563, 4
      %v571 = vrot.slane %v565, 4
      %v572 = vrot.slane %v567, 4
      %v573 = vsel %vm278, %v568, %v569
      %vm574 = vcmask 736256
      %v575 = vsel %vm574, %v559, %v573
      %v576 = vsel %vm278, %v569, %v570
      %v577 = vsel %vm574, %v561, %v576
      %v578 = vsel %vm278, %v570, %v571
      %v579 = vsel %vm574, %v563, %v578
      %v580 = vsel %vm278, %v571, %v572
      %v581 = vsel %vm574, %v565, %v580
      %586 = vst [vmem:[#allocation3 + $0xe0] sm:$0xff] %v575
      %587 = vst [vmem:[#allocation3 + $0xe8] sm:$0xff] %v577
      %588 = vst [vmem:[#allocation3 + $0xf0] sm:$0xff] %v579
      %589 = vst [vmem:[#allocation3 + $0xf8] sm:$0xff] %v581
      %v590 = vld [vmem:[%s246] sm:$0xff]
      %v591 = vld [vmem:[%s246 + $0x8] sm:$0xff]
      %v592 = vld [vmem:[%s246 + $0x10] sm:$0xff]
      %v593 = vld [vmem:[%s246 + $0x18] sm:$0xff]
      %v594 = vld [vmem:[%s246 + $0x20] sm:$0xf]
      %600 = vrot.lane.b32.xlu0 %v590, 89
      %v601 = vpop.permute.xlu0 %600
      %602 = vrot.lane.b32.xlu0 %v591, 89
      %v603 = vpop.permute.xlu0 %602
      %604 = vrot.lane.b32.xlu0 %v592, 89
      %v605 = vpop.permute.xlu0 %604
      %606 = vrot.lane.b32.xlu0 %v593, 89
      %v607 = vpop.permute.xlu0 %606
      %608 = vrot.lane.b32.xlu0 %v594, 89
      %v609 = vpop.permute.xlu0 %608
      %v610 = vrot.slane %v601, 4
      %v611 = vrot.slane %v603, 4
      %v612 = vrot.slane %v605, 4
      %v613 = vrot.slane %v607, 4
      %v614 = vrot.slane %v609, 4
      %v615 = vsel %vm278, %v610, %v611
      %vm616 = vcmask 728064
      %v617 = vsel %vm616, %v601, %v615
      %v618 = vsel %vm278, %v611, %v612
      %v619 = vsel %vm616, %v603, %v618
      %v620 = vsel %vm278, %v612, %v613
      %v621 = vsel %vm616, %v605, %v620
      %v622 = vsel %vm278, %v613, %v614
      %v623 = vsel %vm616, %v607, %v622
      %628 = vst [vmem:[#allocation3 + $0x100] sm:$0xff] %v617
      %629 = vst [vmem:[#allocation3 + $0x108] sm:$0xff] %v619
      %630 = vst [vmem:[#allocation3 + $0x110] sm:$0xff] %v621
      %631 = vst [vmem:[#allocation3 + $0x118] sm:$0xff] %v623
      %v632 = vld [vmem:[%s246] sm:$0xff]
      %v633 = vld [vmem:[%s246 + $0x8] sm:$0xff]
      %v634 = vld [vmem:[%s246 + $0x10] sm:$0xff]
      %v635 = vld [vmem:[%s246 + $0x18] sm:$0xff]
      %v636 = vld [vmem:[%s246 + $0x20] sm:$0xf]
      %642 = vrot.lane.b32.xlu0 %v632, 11
      %v643 = vpop.permute.xlu0 %642
      %644 = vrot.lane.b32.xlu0 %v633, 11
      %v645 = vpop.permute.xlu0 %644
      %646 = vrot.lane.b32.xlu0 %v634, 11
      %v647 = vpop.permute.xlu0 %646
      %648 = vrot.lane.b32.xlu0 %v635, 11
      %v649 = vpop.permute.xlu0 %648
      %650 = vrot.lane.b32.xlu0 %v636, 11
      %v651 = vpop.permute.xlu0 %650
      %v652 = vrot.slane %v643, 4
      %v653 = vrot.slane %v645, 4
      %v654 = vrot.slane %v647, 4
      %v655 = vrot.slane %v649, 4
      %v656 = vrot.slane %v651, 4
      %v657 = vsel %vm278, %v652, %v653
      %vm658 = vcmask 89088
      %v659 = vsel %vm658, %v643, %v657
      %v660 = vsel %vm278, %v653, %v654
      %v661 = vsel %vm658, %v645, %v660
      %v662 = vsel %vm278, %v654, %v655
      %v663 = vsel %vm658, %v647, %v662
      %v664 = vsel %vm278, %v655, %v656
      %v665 = vsel %vm658, %v649, %v664
      %670 = vst [vmem:[#allocation3 + $0x120] sm:$0xff] %v659
      %671 = vst [vmem:[#allocation3 + $0x128] sm:$0xff] %v661
      %672 = vst [vmem:[#allocation3 + $0x130] sm:$0xff] %v663
      %673 = vst [vmem:[#allocation3 + $0x138] sm:$0xff] %v665
      %v674 = vld [vmem:[%s246] sm:$0xff]
      %v675 = vld [vmem:[%s246 + $0x8] sm:$0xff]
      %v676 = vld [vmem:[%s246 + $0x10] sm:$0xff]
      %v677 = vld [vmem:[%s246 + $0x18] sm:$0xff]
      %v678 = vld [vmem:[%s246 + $0x20] sm:$0xf]
      %684 = vrot.lane.b32.xlu0 %v674, 10
      %v685 = vpop.permute.xlu0 %684
      %686 = vrot.lane.b32.xlu0 %v675, 10
      %v687 = vpop.permute.xlu0 %686
      %688 = vrot.lane.b32.xlu0 %v676, 10
      %v689 = vpop.permute.xlu0 %688
      %690 = vrot.lane.b32.xlu0 %v677, 10
      %v691 = vpop.permute.xlu0 %690
      %692 = vrot.lane.b32.xlu0 %v678, 10
      %v693 = vpop.permute.xlu0 %692
      %v694 = vrot.slane %v685, 4
      %v695 = vrot.slane %v687, 4
      %v696 = vrot.slane %v689, 4
      %v697 = vrot.slane %v691, 4
      %v698 = vrot.slane %v693, 4
      %v699 = vsel %vm278, %v694, %v695
      %vm700 = vcmask 80896
      %v701 = vsel %vm700, %v685, %v699
      %v702 = vsel %vm278, %v695, %v696
      %v703 = vsel %vm700, %v687, %v702
      %v704 = vsel %vm278, %v696, %v697
      %v705 = vsel %vm700, %v689, %v704
      %v706 = vsel %vm278, %v697, %v698
      %v707 = vsel %vm700, %v691, %v706
      %712 = vst [vmem:[#allocation3 + $0x140] sm:$0xff] %v701
      %713 = vst [vmem:[#allocation3 + $0x148] sm:$0xff] %v703
      %714 = vst [vmem:[#allocation3 + $0x150] sm:$0xff] %v705
      %715 = vst [vmem:[#allocation3 + $0x158] sm:$0xff] %v707
      %v716 = vld [vmem:[%s246] sm:$0xff]
      %v717 = vld [vmem:[%s246 + $0x8] sm:$0xff]
      %v718 = vld [vmem:[%s246 + $0x10] sm:$0xff]
      %v719 = vld [vmem:[%s246 + $0x18] sm:$0xff]
      %v720 = vld [vmem:[%s246 + $0x20] sm:$0xf]
      %726 = vrot.lane.b32.xlu0 %v716, 9
      %v727 = vpop.permute.xlu0 %726
      %728 = vrot.lane.b32.xlu0 %v717, 9
      %v729 = vpop.permute.xlu0 %728
      %730 = vrot.lane.b32.xlu0 %v718, 9
      %v731 = vpop.permute.xlu0 %730
      %732 = vrot.lane.b32.xlu0 %v719, 9
      %v733 = vpop.permute.xlu0 %732
      %734 = vrot.lane.b32.xlu0 %v720, 9
      %v735 = vpop.permute.xlu0 %734
      %v736 = vrot.slane %v727, 4
      %v737 = vrot.slane %v729, 4
      %v738 = vrot.slane %v731, 4
      %v739 = vrot.slane %v733, 4
      %v740 = vrot.slane %v735, 4
      %v741 = vsel %vm278, %v736, %v737
      %vm742 = vcmask 72704
      %v743 = vsel %vm742, %v727, %v741
      %v744 = vsel %vm278, %v737, %v738
      %v745 = vsel %vm742, %v729, %v744
      %v746 = vsel %vm278, %v738, %v739
      %v747 = vsel %vm742, %v731, %v746
      %v748 = vsel %vm278, %v739, %v740
      %v749 = vsel %vm742, %v733, %v748
      %754 = vst [vmem:[#allocation3 + $0x160] sm:$0xff] %v743
      %755 = vst [vmem:[#allocation3 + $0x168] sm:$0xff] %v745
      %756 = vst [vmem:[#allocation3 + $0x170] sm:$0xff] %v747
      %757 = vst [vmem:[#allocation3 + $0x178] sm:$0xff] %v749
      %v758 = vld [vmem:[%s246] sm:$0xff]
      %v759 = vld [vmem:[%s246 + $0x8] sm:$0xff]
      %v760 = vld [vmem:[%s246 + $0x10] sm:$0xff]
      %v761 = vld [vmem:[%s246 + $0x18] sm:$0xff]
      %v762 = vld [vmem:[%s246 + $0x20] sm:$0xf]
      %768 = vrot.lane.b32.xlu0 %v758, 1
      %v769 = vpop.permute.xlu0 %768
      %770 = vrot.lane.b32.xlu0 %v759, 1
      %v771 = vpop.permute.xlu0 %770
      %772 = vrot.lane.b32.xlu0 %v760, 1
      %v773 = vpop.permute.xlu0 %772
      %774 = vrot.lane.b32.xlu0 %v761, 1
      %v775 = vpop.permute.xlu0 %774
      %776 = vrot.lane.b32.xlu0 %v762, 1
      %v777 = vpop.permute.xlu0 %776
      %v778 = vrot.slane %v769, 4
      %v779 = vrot.slane %v771, 4
      %v780 = vrot.slane %v773, 4
      %v781 = vrot.slane %v775, 4
      %v782 = vrot.slane %v777, 4
      %v783 = vsel %vm278, %v778, %v779
      %vm784 = vcmask 7168
      %v785 = vsel %vm784, %v769, %v783
      %v786 = vsel %vm278, %v779, %v780
      %v787 = vsel %vm784, %v771, %v786
      %v788 = vsel %vm278, %v780, %v781
      %v789 = vsel %vm784, %v773, %v788
      %v790 = vsel %vm278, %v781, %v782
      %v791 = vsel %vm784, %v775, %v790
      %796 = vst [vmem:[#allocation3 + $0x180] sm:$0xff] %v785
      %797 = vst [vmem:[#allocation3 + $0x188] sm:$0xff] %v787
      %798 = vst [vmem:[#allocation3 + $0x190] sm:$0xff] %v789
      %799 = vst [vmem:[#allocation3 + $0x198] sm:$0xff] %v791
      %v800 = vld [vmem:[%s246 + $0x4] sm:$0xff]
      %v801 = vld [vmem:[%s246 + $0xc] sm:$0xff]
      %v802 = vld [vmem:[%s246 + $0x14] sm:$0xff]
      %v803 = vld [vmem:[%s246 + $0x1c] sm:$0xff]
      %804 = vst [vmem:[#allocation3 + $0x1a0] sm:$0xff] %v800
      %805 = vst [vmem:[#allocation3 + $0x1a8] sm:$0xff] %v801
      %806 = vst [vmem:[#allocation3 + $0x1b0] sm:$0xff] %v802
      %807 = vst [vmem:[#allocation3 + $0x1b8] sm:$0xff] %v803
      %v808 = vld [vmem:[%s246 + $0x4] sm:$0xff]
      %v809 = vld [vmem:[%s246 + $0xc] sm:$0xff]
      %v810 = vld [vmem:[%s246 + $0x14] sm:$0xff]
      %v811 = vld [vmem:[%s246 + $0x1c] sm:$0xff]
      %v812 = vld [vmem:[%s246 + $0x24] sm:$0xf]
      %818 = vrot.lane.b32.xlu0 %v808, 127
      %v819 = vpop.permute.xlu0 %818
      %820 = vrot.lane.b32.xlu0 %v809, 127
      %v821 = vpop.permute.xlu0 %820
      %822 = vrot.lane.b32.xlu0 %v810, 127
      %v823 = vpop.permute.xlu0 %822
      %824 = vrot.lane.b32.xlu0 %v811, 127
      %v825 = vpop.permute.xlu0 %824
      %826 = vrot.lane.b32.xlu0 %v812, 127
      %v827 = vpop.permute.xlu0 %826
      %v828 = vrot.slane %v819, 4
      %v829 = vrot.slane %v821, 4
      %v830 = vrot.slane %v823, 4
      %v831 = vrot.slane %v825, 4
      %v832 = vrot.slane %v827, 4
      %v833 = vsel %vm278, %v828, %v829
      %vm834 = vcmask 1039360
      %v835 = vsel %vm834, %v819, %v833
      %v836 = vsel %vm278, %v829, %v830
      %v837 = vsel %vm834, %v821, %v836
      %v838 = vsel %vm278, %v830, %v831
      %v839 = vsel %vm834, %v823, %v838
      %v840 = vsel %vm278, %v831, %v832
      %v841 = vsel %vm834, %v825, %v840
      %846 = vst [vmem:[#allocation3 + $0x1c0] sm:$0xff] %v835
      %847 = vst [vmem:[#allocation3 + $0x1c8] sm:$0xff] %v837
      %848 = vst [vmem:[#allocation3 + $0x1d0] sm:$0xff] %v839
      %849 = vst [vmem:[#allocation3 + $0x1d8] sm:$0xff] %v841
      %v850 = vld [vmem:[%s246 + $0x4] sm:$0xff]
      %v851 = vld [vmem:[%s246 + $0xc] sm:$0xff]
      %v852 = vld [vmem:[%s246 + $0x14] sm:$0xff]
      %v853 = vld [vmem:[%s246 + $0x1c] sm:$0xff]
      %v854 = vld [vmem:[%s246 + $0x24] sm:$0xf]
      %860 = vrot.lane.b32.xlu0 %v850, 119
      %v861 = vpop.permute.xlu0 %860
      %862 = vrot.lane.b32.xlu0 %v851, 119
      %v863 = vpop.permute.xlu0 %862
      %864 = vrot.lane.b32.xlu0 %v852, 119
      %v865 = vpop.permute.xlu0 %864
      %866 = vrot.lane.b32.xlu0 %v853, 119
      %v867 = vpop.permute.xlu0 %866
      %868 = vrot.lane.b32.xlu0 %v854, 119
      %v869 = vpop.permute.xlu0 %868
      %v870 = vrot.slane %v861, 4
      %v871 = vrot.slane %v863, 4
      %v872 = vrot.slane %v865, 4
      %v873 = vrot.slane %v867, 4
      %v874 = vrot.slane %v869, 4
      %v875 = vsel %vm278, %v870, %v871
      %vm876 = vcmask 973824
      %v877 = vsel %vm876, %v861, %v875
      %v878 = vsel %vm278, %v871, %v872
      %v879 = vsel %vm876, %v863, %v878
      %v880 = vsel %vm278, %v872, %v873
      %v881 = vsel %vm876, %v865, %v880
      %v882 = vsel %vm278, %v873, %v874
      %v883 = vsel %vm876, %v867, %v882
      %888 = vst [vmem:[#allocation3 + $0x1e0] sm:$0xff] %v877
      %889 = vst [vmem:[#allocation3 + $0x1e8] sm:$0xff] %v879
      %890 = vst [vmem:[#allocation3 + $0x1f0] sm:$0xff] %v881
      %891 = vst [vmem:[#allocation3 + $0x1f8] sm:$0xff] %v883
      %v892 = vld [vmem:[%s246 + $0x4] sm:$0xff]
      %v893 = vld [vmem:[%s246 + $0xc] sm:$0xff]
      %v894 = vld [vmem:[%s246 + $0x14] sm:$0xff]
      %v895 = vld [vmem:[%s246 + $0x1c] sm:$0xff]
      %v896 = vld [vmem:[%s246 + $0x24] sm:$0xf]
      %902 = vrot.lane.b32.xlu0 %v892, 118
      %v903 = vpop.permute.xlu0 %902
      %904 = vrot.lane.b32.xlu0 %v893, 118
      %v905 = vpop.permute.xlu0 %904
      %906 = vrot.lane.b32.xlu0 %v894, 118
      %v907 = vpop.permute.xlu0 %906
      %908 = vrot.lane.b32.xlu0 %v895, 118
      %v909 = vpop.permute.xlu0 %908
      %910 = vrot.lane.b32.xlu0 %v896, 118
      %v911 = vpop.permute.xlu0 %910
      %v912 = vrot.slane %v903, 4
      %v913 = vrot.slane %v905, 4
      %v914 = vrot.slane %v907, 4
      %v915 = vrot.slane %v909, 4
      %v916 = vrot.slane %v911, 4
      %v917 = vsel %vm278, %v912, %v913
      %vm918 = vcmask 965632
      %v919 = vsel %vm918, %v903, %v917
      %v920 = vsel %vm278, %v913, %v914
      %v921 = vsel %vm918, %v905, %v920
      %v922 = vsel %vm278, %v914, %v915
      %v923 = vsel %vm918, %v907, %v922
      %v924 = vsel %vm278, %v915, %v916
      %v925 = vsel %vm918, %v909, %v924
      %930 = vst [vmem:[#allocation3 + $0x200] sm:$0xff] %v919
      %931 = vst [vmem:[#allocation3 + $0x208] sm:$0xff] %v921
      %932 = vst [vmem:[#allocation3 + $0x210] sm:$0xff] %v923
      %933 = vst [vmem:[#allocation3 + $0x218] sm:$0xff] %v925
      %v934 = vld [vmem:[%s246 + $0x4] sm:$0xff]
      %v935 = vld [vmem:[%s246 + $0xc] sm:$0xff]
      %v936 = vld [vmem:[%s246 + $0x14] sm:$0xff]
      %v937 = vld [vmem:[%s246 + $0x1c] sm:$0xff]
      %v938 = vld [vmem:[%s246 + $0x24] sm:$0xf]
      %944 = vrot.lane.b32.xlu0 %v934, 117
      %v945 = vpop.permute.xlu0 %944
      %946 = vrot.lane.b32.xlu0 %v935, 117
      %v947 = vpop.permute.xlu0 %946
      %948 = vrot.lane.b32.xlu0 %v936, 117
      %v949 = vpop.permute.xlu0 %948
      %950 = vrot.lane.b32.xlu0 %v937, 117
      %v951 = vpop.permute.xlu0 %950
      %952 = vrot.lane.b32.xlu0 %v938, 117
      %v953 = vpop.permute.xlu0 %952
      %v954 = vrot.slane %v945, 4
      %v955 = vrot.slane %v947, 4
      %v956 = vrot.slane %v949, 4
      %v957 = vrot.slane %v951, 4
      %v958 = vrot.slane %v953, 4
      %v959 = vsel %vm278, %v954, %v955
      %vm960 = vcmask 957440
      %v961 = vsel %vm960, %v945, %v959
      %v962 = vsel %vm278, %v955, %v956
      %v963 = vsel %vm960, %v947, %v962
      %v964 = vsel %vm278, %v956, %v957
      %v965 = vsel %vm960, %v949, %v964
      %v966 = vsel %vm278, %v957, %v958
      %v967 = vsel %vm960, %v951, %v966
      %972 = vst [vmem:[#allocation3 + $0x220] sm:$0xff] %v961
      %973 = vst [vmem:[#allocation3 + $0x228] sm:$0xff] %v963
      %974 = vst [vmem:[#allocation3 + $0x230] sm:$0xff] %v965
      %975 = vst [vmem:[#allocation3 + $0x238] sm:$0xff] %v967
      %v976 = vld [vmem:[%s246 + $0x4] sm:$0xff]
      %v977 = vld [vmem:[%s246 + $0xc] sm:$0xff]
      %v978 = vld [vmem:[%s246 + $0x14] sm:$0xff]
      %v979 = vld [vmem:[%s246 + $0x1c] sm:$0xff]
      %v980 = vld [vmem:[%s246 + $0x24] sm:$0xf]
      %986 = vrot.lane.b32.xlu0 %v976, 39
      %v987 = vpop.permute.xlu0 %986
      %988 = vrot.lane.b32.xlu0 %v977, 39
      %v989 = vpop.permute.xlu0 %988
      %990 = vrot.lane.b32.xlu0 %v978, 39
      %v991 = vpop.permute.xlu0 %990
      %992 = vrot.lane.b32.xlu0 %v979, 39
      %v993 = vpop.permute.xlu0 %992
      %994 = vrot.lane.b32.xlu0 %v980, 39
      %v995 = vpop.permute.xlu0 %994
      %v996 = vrot.slane %v987, 4
      %v997 = vrot.slane %v989, 4
      %v998 = vrot.slane %v991, 4
      %v999 = vrot.slane %v993, 4
      %v1000 = vrot.slane %v995, 4
      %v1001 = vsel %vm278, %v996, %v997
      %vm1002 = vcmask 318464
      %v1003 = vsel %vm1002, %v987, %v1001
      %v1004 = vsel %vm278, %v997, %v998
      %v1005 = vsel %vm1002, %v989, %v1004
      %v1006 = vsel %vm278, %v998, %v999
      %v1007 = vsel %vm1002, %v991, %v1006
      %v1008 = vsel %vm278, %v999, %v1000
      %v1009 = vsel %vm1002, %v993, %v1008
      %1014 = vst [vmem:[#allocation3 + $0x240] sm:$0xff] %v1003
      %1015 = vst [vmem:[#allocation3 + $0x248] sm:$0xff] %v1005
      %1016 = vst [vmem:[#allocation3 + $0x250] sm:$0xff] %v1007
      %1017 = vst [vmem:[#allocation3 + $0x258] sm:$0xff] %v1009
      %v1018 = vld [vmem:[%s246 + $0x4] sm:$0xff]
      %v1019 = vld [vmem:[%s246 + $0xc] sm:$0xff]
      %v1020 = vld [vmem:[%s246 + $0x14] sm:$0xff]
      %v1021 = vld [vmem:[%s246 + $0x1c] sm:$0xff]
      %v1022 = vld [vmem:[%s246 + $0x24] sm:$0xf]
      %1028 = vrot.lane.b32.xlu0 %v1018, 38
      %v1029 = vpop.permute.xlu0 %1028
      %1030 = vrot.lane.b32.xlu0 %v1019, 38
      %v1031 = vpop.permute.xlu0 %1030
      %1032 = vrot.lane.b32.xlu0 %v1020, 38
      %v1033 = vpop.permute.xlu0 %1032
      %1034 = vrot.lane.b32.xlu0 %v1021, 38
      %v1035 = vpop.permute.xlu0 %1034
      %1036 = vrot.lane.b32.xlu0 %v1022, 38
      %v1037 = vpop.permute.xlu0 %1036
      %v1038 = vrot.slane %v1029, 4
      %v1039 = vrot.slane %v1031, 4
      %v1040 = vrot.slane %v1033, 4
      %v1041 = vrot.slane %v1035, 4
      %v1042 = vrot.slane %v1037, 4
      %v1043 = vsel %vm278, %v1038, %v1039
      %vm1044 = vcmask 310272
      %v1045 = vsel %vm1044, %v1029, %v1043
      %v1046 = vsel %vm278, %v1039, %v1040
      %v1047 = vsel %vm1044, %v1031, %v1046
      %v1048 = vsel %vm278, %v1040, %v1041
      %v1049 = vsel %vm1044, %v1033, %v1048
      %v1050 = vsel %vm278, %v1041, %v1042
      %v1051 = vsel %vm1044, %v1035, %v1050
      %1056 = vst [vmem:[#allocation3 + $0x260] sm:$0xff] %v1045
      %1057 = vst [vmem:[#allocation3 + $0x268] sm:$0xff] %v1047
      %1058 = vst [vmem:[#allocation3 + $0x270] sm:$0xff] %v1049
      %1059 = vst [vmem:[#allocation3 + $0x278] sm:$0xff] %v1051
      %v1060 = vld [vmem:[%s246 + $0x4] sm:$0xff]
      %v1061 = vld [vmem:[%s246 + $0xc] sm:$0xff]
      %v1062 = vld [vmem:[%s246 + $0x14] sm:$0xff]
      %v1063 = vld [vmem:[%s246 + $0x1c] sm:$0xff]
      %v1064 = vld [vmem:[%s246 + $0x24] sm:$0xf]
      %1070 = vrot.lane.b32.xlu0 %v1060, 37
      %v1071 = vpop.permute.xlu0 %1070
      %1072 = vrot.lane.b32.xlu0 %v1061, 37
      %v1073 = vpop.permute.xlu0 %1072
      %1074 = vrot.lane.b32.xlu0 %v1062, 37
      %v1075 = vpop.permute.xlu0 %1074
      %1076 = vrot.lane.b32.xlu0 %v1063, 37
      %v1077 = vpop.permute.xlu0 %1076
      %1078 = vrot.lane.b32.xlu0 %v1064, 37
      %v1079 = vpop.permute.xlu0 %1078
      %v1080 = vrot.slane %v1071, 4
      %v1081 = vrot.slane %v1073, 4
      %v1082 = vrot.slane %v1075, 4
      %v1083 = vrot.slane %v1077, 4
      %v1084 = vrot.slane %v1079, 4
      %v1085 = vsel %vm278, %v1080, %v1081
      %vm1086 = vcmask 302080
      %v1087 = vsel %vm1086, %v1071, %v1085
      %v1088 = vsel %vm278, %v1081, %v1082
      %v1089 = vsel %vm1086, %v1073, %v1088
      %v1090 = vsel %vm278, %v1082, %v1083
      %v1091 = vsel %vm1086, %v1075, %v1090
      %v1092 = vsel %vm278, %v1083, %v1084
      %v1093 = vsel %vm1086, %v1077, %v1092
      %1098 = vst [vmem:[#allocation3 + $0x280] sm:$0xff] %v1087
      %1099 = vst [vmem:[#allocation3 + $0x288] sm:$0xff] %v1089
      %1100 = vst [vmem:[#allocation3 + $0x290] sm:$0xff] %v1091
      %1101 = vst [vmem:[#allocation3 + $0x298] sm:$0xff] %v1093
      %v1102 = vld [vmem:[%s246 + $0x4] sm:$0xff]
      %v1103 = vld [vmem:[%s246 + $0xc] sm:$0xff]
      %v1104 = vld [vmem:[%s246 + $0x14] sm:$0xff]
      %v1105 = vld [vmem:[%s246 + $0x1c] sm:$0xff]
      %v1106 = vld [vmem:[%s246 + $0x24] sm:$0xf]
      %1112 = vrot.lane.b32.xlu0 %v1102, 29
      %v1113 = vpop.permute.xlu0 %1112
      %1114 = vrot.lane.b32.xlu0 %v1103, 29
      %v1115 = vpop.permute.xlu0 %1114
      %1116 = vrot.lane.b32.xlu0 %v1104, 29
      %v1117 = vpop.permute.xlu0 %1116
      %1118 = vrot.lane.b32.xlu0 %v1105, 29
      %v1119 = vpop.permute.xlu0 %1118
      %1120 = vrot.lane.b32.xlu0 %v1106, 29
      %v1121 = vpop.permute.xlu0 %1120
      %v1122 = vrot.slane %v1113, 4
      %v1123 = vrot.slane %v1115, 4
      %v1124 = vrot.slane %v1117, 4
      %v1125 = vrot.slane %v1119, 4
      %v1126 = vrot.slane %v1121, 4
      %v1127 = vsel %vm278, %v1122, %v1123
      %vm1128 = vcmask 236544
      %v1129 = vsel %vm1128, %v1113, %v1127
      %v1130 = vsel %vm278, %v1123, %v1124
      %v1131 = vsel %vm1128, %v1115, %v1130
      %v1132 = vsel %vm278, %v1124, %v1125
      %v1133 = vsel %vm1128, %v1117, %v1132
      %v1134 = vsel %vm278, %v1125, %v1126
      %v1135 = vsel %vm1128, %v1119, %v1134
      %1140 = vst [vmem:[#allocation3 + $0x2a0] sm:$0xff] %v1129
      %1141 = vst [vmem:[#allocation3 + $0x2a8] sm:$0xff] %v1131
      %1142 = vst [vmem:[#allocation3 + $0x2b0] sm:$0xff] %v1133
      %1143 = vst [vmem:[#allocation3 + $0x2b8] sm:$0xff] %v1135
      %v1144 = vld [vmem:[%s246 + $0x4] sm:$0xff]
      %v1145 = vld [vmem:[%s246 + $0xc] sm:$0xff]
      %v1146 = vld [vmem:[%s246 + $0x14] sm:$0xff]
      %v1147 = vld [vmem:[%s246 + $0x1c] sm:$0xff]
      %v1148 = vld [vmem:[%s246 + $0x24] sm:$0xf]
      %1154 = vrot.lane.b32.xlu0 %v1144, 28
      %v1155 = vpop.permute.xlu0 %1154
      %1156 = vrot.lane.b32.xlu0 %v1145, 28
      %v1157 = vpop.permute.xlu0 %1156
      %1158 = vrot.lane.b32.xlu0 %v1146, 28
      %v1159 = vpop.permute.xlu0 %1158
      %1160 = vrot.lane.b32.xlu0 %v1147, 28
      %v1161 = vpop.permute.xlu0 %1160
      %1162 = vrot.lane.b32.xlu0 %v1148, 28
      %v1163 = vpop.permute.xlu0 %1162
      %v1164 = vrot.slane %v1155, 4
      %v1165 = vrot.slane %v1157, 4
      %v1166 = vrot.slane %v1159, 4
      %v1167 = vrot.slane %v1161, 4
      %v1168 = vrot.slane %v1163, 4
      %v1169 = vsel %vm278, %v1164, %v1165
      %vm1170 = vcmask 228352
      %v1171 = vsel %vm1170, %v1155, %v1169
      %v1172 = vsel %vm278, %v1165, %v1166
      %v1173 = vsel %vm1170, %v1157, %v1172
      %v1174 = vsel %vm278, %v1166, %v1167
      %v1175 = vsel %vm1170, %v1159, %v1174
      %v1176 = vsel %vm278, %v1167, %v1168
      %v1177 = vsel %vm1170, %v1161, %v1176
      %1182 = vst [vmem:[#allocation3 + $0x2c0] sm:$0xff] %v1171
      %1183 = vst [vmem:[#allocation3 + $0x2c8] sm:$0xff] %v1173
      %1184 = vst [vmem:[#allocation3 + $0x2d0] sm:$0xff] %v1175
      %1185 = vst [vmem:[#allocation3 + $0x2d8] sm:$0xff] %v1177
      %v1186 = vld [vmem:[%s246 + $0x4] sm:$0xff]
      %v1187 = vld [vmem:[%s246 + $0xc] sm:$0xff]
      %v1188 = vld [vmem:[%s246 + $0x14] sm:$0xff]
      %v1189 = vld [vmem:[%s246 + $0x1c] sm:$0xff]
      %v1190 = vld [vmem:[%s246 + $0x24] sm:$0xf]
      %1196 = vrot.lane.b32.xlu0 %v1186, 27
      %v1197 = vpop.permute.xlu0 %1196
      %1198 = vrot.lane.b32.xlu0 %v1187, 27
      %v1199 = vpop.permute.xlu0 %1198
      %1200 = vrot.lane.b32.xlu0 %v1188, 27
      %v1201 = vpop.permute.xlu0 %1200
      %1202 = vrot.lane.b32.xlu0 %v1189, 27
      %v1203 = vpop.permute.xlu0 %1202
      %1204 = vrot.lane.b32.xlu0 %v1190, 27
      %v1205 = vpop.permute.xlu0 %1204
      %v1206 = vrot.slane %v1197, 4
      %v1207 = vrot.slane %v1199, 4
      %v1208 = vrot.slane %v1201, 4
      %v1209 = vrot.slane %v1203, 4
      %v1210 = vrot.slane %v1205, 4
      %v1211 = vsel %vm278, %v1206, %v1207
      %vm1212 = vcmask 220160
      %v1213 = vsel %vm1212, %v1197, %v1211
      %v1214 = vsel %vm278, %v1207, %v1208
      %v1215 = vsel %vm1212, %v1199, %v1214
      %v1216 = vsel %vm278, %v1208, %v1209
      %v1217 = vsel %vm1212, %v1201, %v1216
      %v1218 = vsel %vm278, %v1209, %v1210
      %v1219 = vsel %vm1212, %v1203, %v1218
      %1224 = vst [vmem:[#allocation3 + $0x2e0] sm:$0xff] %v1213
      %1225 = vst [vmem:[#allocation3 + $0x2e8] sm:$0xff] %v1215
      %1226 = vst [vmem:[#allocation3 + $0x2f0] sm:$0xff] %v1217
      %1227 = vst [vmem:[#allocation3 + $0x2f8] sm:$0xff] %v1219
      %v1228 = vld [vmem:[%s246 + $0x4] sm:$0xff]
      %v1229 = vld [vmem:[%s246 + $0xc] sm:$0xff]
      %v1230 = vld [vmem:[%s246 + $0x14] sm:$0xff]
      %v1231 = vld [vmem:[%s246 + $0x1c] sm:$0xff]
      %v1232 = vld [vmem:[%s246 + $0x24] sm:$0xf]
      %1238 = vrot.lane.b32.xlu0 %v1228, 19
      %v1239 = vpop.permute.xlu0 %1238
      %1240 = vrot.lane.b32.xlu0 %v1229, 19
      %v1241 = vpop.permute.xlu0 %1240
      %1242 = vrot.lane.b32.xlu0 %v1230, 19
      %v1243 = vpop.permute.xlu0 %1242
      %1244 = vrot.lane.b32.xlu0 %v1231, 19
      %v1245 = vpop.permute.xlu0 %1244
      %1246 = vrot.lane.b32.xlu0 %v1232, 19
      %v1247 = vpop.permute.xlu0 %1246
      %v1248 = vrot.slane %v1239, 4
      %v1249 = vrot.slane %v1241, 4
      %v1250 = vrot.slane %v1243, 4
      %v1251 = vrot.slane %v1245, 4
      %v1252 = vrot.slane %v1247, 4
      %v1253 = vsel %vm278, %v1248, %v1249
      %vm1254 = vcmask 154624
      %v1255 = vsel %vm1254, %v1239, %v1253
      %v1256 = vsel %vm278, %v1249, %v1250
      %v1257 = vsel %vm1254, %v1241, %v1256
      %v1258 = vsel %vm278, %v1250, %v1251
      %v1259 = vsel %vm1254, %v1243, %v1258
      %v1260 = vsel %vm278, %v1251, %v1252
      %v1261 = vsel %vm1254, %v1245, %v1260
      %1266 = vst [vmem:[#allocation3 + $0x300] sm:$0xff] %v1255
      %1267 = vst [vmem:[#allocation3 + $0x308] sm:$0xff] %v1257
      %1268 = vst [vmem:[#allocation3 + $0x310] sm:$0xff] %v1259
      %1269 = vst [vmem:[#allocation3 + $0x318] sm:$0xff] %v1261
      %v1270 = vld [vmem:[%s246 + $0x4] sm:$0xff]
      %v1271 = vld [vmem:[%s246 + $0xc] sm:$0xff]
      %v1272 = vld [vmem:[%s246 + $0x14] sm:$0xff]
      %v1273 = vld [vmem:[%s246 + $0x1c] sm:$0xff]
      %v1274 = vld [vmem:[%s246 + $0x24] sm:$0xf]
      %1280 = vrot.lane.b32.xlu0 %v1270, 18
      %v1281 = vpop.permute.xlu0 %1280
      %1282 = vrot.lane.b32.xlu0 %v1271, 18
      %v1283 = vpop.permute.xlu0 %1282
      %1284 = vrot.lane.b32.xlu0 %v1272, 18
      %v1285 = vpop.permute.xlu0 %1284
      %1286 = vrot.lane.b32.xlu0 %v1273, 18
      %v1287 = vpop.permute.xlu0 %1286
      %1288 = vrot.lane.b32.xlu0 %v1274, 18
      %v1289 = vpop.permute.xlu0 %1288
      %v1290 = vrot.slane %v1281, 4
      %v1291 = vrot.slane %v1283, 4
      %v1292 = vrot.slane %v1285, 4
      %v1293 = vrot.slane %v1287, 4
      %v1294 = vrot.slane %v1289, 4
      %v1295 = vsel %vm278, %v1290, %v1291
      %vm1296 = vcmask 146432
      %v1297 = vsel %vm1296, %v1281, %v1295
      %v1298 = vsel %vm278, %v1291, %v1292
      %v1299 = vsel %vm1296, %v1283, %v1298
      %v1300 = vsel %vm278, %v1292, %v1293
      %v1301 = vsel %vm1296, %v1285, %v1300
      %v1302 = vsel %vm278, %v1293, %v1294
      %v1303 = vsel %vm1296, %v1287, %v1302
      %1308 = vst [vmem:[#allocation3 + $0x320] sm:$0xff] %v1297
      %1309 = vst [vmem:[#allocation3 + $0x328] sm:$0xff] %v1299
      %1310 = vst [vmem:[#allocation3 + $0x330] sm:$0xff] %v1301
      %1311 = vst [vmem:[#allocation3 + $0x338] sm:$0xff] %v1303
      %v1312 = vld [vmem:[%s246 + $0x4] sm:$0xff]
      %v1313 = vld [vmem:[%s246 + $0xc] sm:$0xff]
      %v1314 = vld [vmem:[%s246 + $0x14] sm:$0xff]
      %v1315 = vld [vmem:[%s246 + $0x1c] sm:$0xff]
      %v1316 = vld [vmem:[%s246 + $0x24] sm:$0xf]
      %1322 = vrot.lane.b32.xlu0 %v1312, 17
      %v1323 = vpop.permute.xlu0 %1322
      %1324 = vrot.lane.b32.xlu0 %v1313, 17
      %v1325 = vpop.permute.xlu0 %1324
      %1326 = vrot.lane.b32.xlu0 %v1314, 17
      %v1327 = vpop.permute.xlu0 %1326
      %1328 = vrot.lane.b32.xlu0 %v1315, 17
      %v1329 = vpop.permute.xlu0 %1328
      %1330 = vrot.lane.b32.xlu0 %v1316, 17
      %v1331 = vpop.permute.xlu0 %1330
      %v1332 = vrot.slane %v1323, 4
      %v1333 = vrot.slane %v1325, 4
      %v1334 = vrot.slane %v1327, 4
      %v1335 = vrot.slane %v1329, 4
      %v1336 = vrot.slane %v1331, 4
      %v1337 = vsel %vm278, %v1332, %v1333
      %vm1338 = vcmask 138240
      %v1339 = vsel %vm1338, %v1323, %v1337
      %v1340 = vsel %vm278, %v1333, %v1334
      %v1341 = vsel %vm1338, %v1325, %v1340
      %v1342 = vsel %vm278, %v1334, %v1335
      %v1343 = vsel %vm1338, %v1327, %v1342
      %v1344 = vsel %vm278, %v1335, %v1336
      %v1345 = vsel %vm1338, %v1329, %v1344
      %1350 = vst [vmem:[#allocation3 + $0x340] sm:$0xff] %v1339
      %1351 = vst [vmem:[#allocation3 + $0x348] sm:$0xff] %v1341
      %1352 = vst [vmem:[#allocation3 + $0x350] sm:$0xff] %v1343
      %1353 = vst [vmem:[#allocation3 + $0x358] sm:$0xff] %v1345
      %v1354 = vld [vmem:[%s1] sm:$0xff]
      %v1355 = vld [vmem:[#allocation3] sm:$0xff]
      %v1356 = vld [vmem:[#allocation3 + $0x8] sm:$0xff]
      %v1357 = vld [vmem:[#allocation3 + $0x10] sm:$0xff]
      %v1358 = vld [vmem:[#allocation3 + $0x18] sm:$0xff]
      %v1359 = vld [vmem:[#allocation3 + $0x20] sm:$0xff]
      %v1360 = vld [vmem:[#allocation3 + $0x28] sm:$0xff]
      %v1361 = vld [vmem:[#allocation3 + $0x30] sm:$0xff]
      %v1362 = vld [vmem:[#allocation3 + $0x38] sm:$0xff]
      %v1363 = vld [vmem:[#allocation3 + $0x40] sm:$0xff]
      %v1364 = vld [vmem:[#allocation3 + $0x48] sm:$0xff]
      %v1365 = vld [vmem:[#allocation3 + $0x50] sm:$0xff]
      %v1366 = vld [vmem:[#allocation3 + $0x58] sm:$0xff]
      %v1367 = vld [vmem:[#allocation3 + $0x60] sm:$0xff]
      %v1368 = vld [vmem:[#allocation3 + $0x68] sm:$0xff]
      %v1369 = vld [vmem:[#allocation3 + $0x70] sm:$0xff]
      %v1370 = vld [vmem:[#allocation3 + $0x78] sm:$0xff]
      %v1371 = vld [vmem:[#allocation3 + $0x80] sm:$0xff]
      %v1372 = vld [vmem:[#allocation3 + $0x88] sm:$0xff]
      %v1373 = vld [vmem:[#allocation3 + $0x90] sm:$0xff]
      %v1374 = vld [vmem:[#allocation3 + $0x98] sm:$0xff]
      %v1375 = vld [vmem:[#allocation3 + $0xa0] sm:$0xff]
      %v1376 = vld [vmem:[#allocation3 + $0xa8] sm:$0xff]
      %v1377 = vld [vmem:[#allocation3 + $0xb0] sm:$0xff]
      %v1378 = vld [vmem:[#allocation3 + $0xb8] sm:$0xff]
      %v1379 = vld [vmem:[#allocation3 + $0xc0] sm:$0xff]
      %v1380 = vld [vmem:[#allocation3 + $0xc8] sm:$0xff]
      %v1381 = vld [vmem:[#allocation3 + $0xd0] sm:$0xff]
      %v1382 = vld [vmem:[#allocation3 + $0xd8] sm:$0xff]
      %v1383 = vld [vmem:[#allocation3 + $0xe0] sm:$0xff]
      %v1384 = vld [vmem:[#allocation3 + $0xe8] sm:$0xff]
      %v1385 = vld [vmem:[#allocation3 + $0xf0] sm:$0xff]
      %v1386 = vld [vmem:[#allocation3 + $0xf8] sm:$0xff]
      %v1387 = vld [vmem:[#allocation3 + $0x100] sm:$0xff]
      %v1388 = vld [vmem:[#allocation3 + $0x108] sm:$0xff]
      %v1389 = vld [vmem:[#allocation3 + $0x110] sm:$0xff]
      %v1390 = vld [vmem:[#allocation3 + $0x118] sm:$0xff]
      %v1391 = vld [vmem:[#allocation3 + $0x120] sm:$0xff]
      %v1392 = vld [vmem:[#allocation3 + $0x128] sm:$0xff]
      %v1393 = vld [vmem:[#allocation3 + $0x130] sm:$0xff]
      %v1394 = vld [vmem:[#allocation3 + $0x138] sm:$0xff]
      %v1395 = vld [vmem:[#allocation3 + $0x140] sm:$0xff]
      %v1396 = vld [vmem:[#allocation3 + $0x148] sm:$0xff]
      %v1397 = vld [vmem:[#allocation3 + $0x150] sm:$0xff]
      %v1398 = vld [vmem:[#allocation3 + $0x158] sm:$0xff]
      %v1399 = vld [vmem:[#allocation3 + $0x160] sm:$0xff]
      %v1400 = vld [vmem:[#allocation3 + $0x168] sm:$0xff]
      %v1401 = vld [vmem:[#allocation3 + $0x170] sm:$0xff]
      %v1402 = vld [vmem:[#allocation3 + $0x178] sm:$0xff]
      %v1403 = vld [vmem:[#allocation3 + $0x180] sm:$0xff]
      %v1404 = vld [vmem:[#allocation3 + $0x188] sm:$0xff]
      %v1405 = vld [vmem:[#allocation3 + $0x190] sm:$0xff]
      %v1406 = vld [vmem:[#allocation3 + $0x198] sm:$0xff]
      %v1407 = vld [vmem:[#allocation3 + $0x1a0] sm:$0xff]
      %v1408 = vld [vmem:[#allocation3 + $0x1a8] sm:$0xff]
      %v1409 = vld [vmem:[#allocation3 + $0x1b0] sm:$0xff]
      %v1410 = vld [vmem:[#allocation3 + $0x1b8] sm:$0xff]
      %v1411 = vld [vmem:[#allocation3 + $0x1c0] sm:$0xff]
      %v1412 = vld [vmem:[#allocation3 + $0x1c8] sm:$0xff]
      %v1413 = vld [vmem:[#allocation3 + $0x1d0] sm:$0xff]
      %v1414 = vld [vmem:[#allocation3 + $0x1d8] sm:$0xff]
      %v1415 = vld [vmem:[#allocation3 + $0x1e0] sm:$0xff]
      %v1416 = vld [vmem:[#allocation3 + $0x1e8] sm:$0xff]
      %v1417 = vld [vmem:[#allocation3 + $0x1f0] sm:$0xff]
      %v1418 = vld [vmem:[#allocation3 + $0x1f8] sm:$0xff]
      %v1419 = vld [vmem:[#allocation3 + $0x200] sm:$0xff]
      %v1420 = vld [vmem:[#allocation3 + $0x208] sm:$0xff]
      %v1421 = vld [vmem:[#allocation3 + $0x210] sm:$0xff]
      %v1422 = vld [vmem:[#allocation3 + $0x218] sm:$0xff]
      %v1423 = vld [vmem:[#allocation3 + $0x220] sm:$0xff]
      %v1424 = vld [vmem:[#allocation3 + $0x228] sm:$0xff]
      %v1425 = vld [vmem:[#allocation3 + $0x230] sm:$0xff]
      %v1426 = vld [vmem:[#allocation3 + $0x238] sm:$0xff]
      %v1427 = vld [vmem:[#allocation3 + $0x240] sm:$0xff]
      %v1428 = vld [vmem:[#allocation3 + $0x248] sm:$0xff]
      %v1429 = vld [vmem:[#allocation3 + $0x250] sm:$0xff]
      %v1430 = vld [vmem:[#allocation3 + $0x258] sm:$0xff]
      %v1431 = vld [vmem:[#allocation3 + $0x260] sm:$0xff]
      %v1432 = vld [vmem:[#allocation3 + $0x268] sm:$0xff]
      %v1433 = vld [vmem:[#allocation3 + $0x270] sm:$0xff]
      %v1434 = vld [vmem:[#allocation3 + $0x278] sm:$0xff]
      %v1435 = vld [vmem:[#allocation3 + $0x280] sm:$0xff]
      %v1436 = vld [vmem:[#allocation3 + $0x288] sm:$0xff]
      %v1437 = vld [vmem:[#allocation3 + $0x290] sm:$0xff]
      %v1438 = vld [vmem:[#allocation3 + $0x298] sm:$0xff]
      %v1439 = vld [vmem:[#allocation3 + $0x2a0] sm:$0xff]
      %v1440 = vld [vmem:[#allocation3 + $0x2a8] sm:$0xff]
      %v1441 = vld [vmem:[#allocation3 + $0x2b0] sm:$0xff]
      %v1442 = vld [vmem:[#allocation3 + $0x2b8] sm:$0xff]
      %v1443 = vld [vmem:[#allocation3 + $0x2c0] sm:$0xff]
      %v1444 = vld [vmem:[#allocation3 + $0x2c8] sm:$0xff]
      %v1445 = vld [vmem:[#allocation3 + $0x2d0] sm:$0xff]
      %v1446 = vld [vmem:[#allocation3 + $0x2d8] sm:$0xff]
      %v1447 = vld [vmem:[#allocation3 + $0x2e0] sm:$0xff]
      %v1448 = vld [vmem:[#allocation3 + $0x2e8] sm:$0xff]
      %v1449 = vld [vmem:[#allocation3 + $0x2f0] sm:$0xff]
      %v1450 = vld [vmem:[#allocation3 + $0x2f8] sm:$0xff]
      %v1451 = vld [vmem:[#allocation3 + $0x300] sm:$0xff]
      %v1452 = vld [vmem:[#allocation3 + $0x308] sm:$0xff]
      %v1453 = vld [vmem:[#allocation3 + $0x310] sm:$0xff]
      %v1454 = vld [vmem:[#allocation3 + $0x318] sm:$0xff]
      %v1455 = vld [vmem:[#allocation3 + $0x320] sm:$0xff]
      %v1456 = vld [vmem:[#allocation3 + $0x328] sm:$0xff]
      %v1457 = vld [vmem:[#allocation3 + $0x330] sm:$0xff]
      %v1458 = vld [vmem:[#allocation3 + $0x338] sm:$0xff]
      %v1459 = vld [vmem:[#allocation3 + $0x340] sm:$0xff]
      %v1460 = vld [vmem:[#allocation3 + $0x348] sm:$0xff]
      %v1461 = vld [vmem:[#allocation3 + $0x350] sm:$0xff]
      %v1462 = vld [vmem:[#allocation3 + $0x358] sm:$0xff]
      %v1463 = vld [vmem:[%s3] sm:$0xff]
      %1465 = vset.pattern.permute.xlu0 0
      %1466 = vperm.xlu0 %1465, %v1463
      %v1467 = vpop.permute.xlu0 %1466
      %v1470 = vunpack.c.l.b16 %v1354
      %v1471 = vunpack.c.h.b16 %v1354
      %v1472 = vpack.c.b16 %v1470, %v1470
      %v1473 = vpack.c.b16 %v1471, %v1471
      %v1583 = vunpack.c.l.b16 %v1355
      %v1584 = vunpack.c.h.b16 %v1355
      %v1585 = vunpack.c.l.b16 %v1356
      %v1586 = vunpack.c.h.b16 %v1356
      %v1587 = vunpack.c.l.b16 %v1357
      %v1588 = vunpack.c.h.b16 %v1357
      %v1589 = vunpack.c.l.b16 %v1358
      %v1590 = vunpack.c.h.b16 %v1358
      %v1591 = vunpack.c.l.b16 %v1359
      %v1592 = vunpack.c.h.b16 %v1359
      %v1593 = vunpack.c.l.b16 %v1360
      %v1594 = vunpack.c.h.b16 %v1360
      %v1595 = vunpack.c.l.b16 %v1361
      %v1596 = vunpack.c.h.b16 %v1361
      %v1597 = vunpack.c.l.b16 %v1362
      %v1598 = vunpack.c.h.b16 %v1362
      %v1599 = vunpack.c.l.b16 %v1363
      %v1600 = vunpack.c.h.b16 %v1363
      %v1601 = vunpack.c.l.b16 %v1364
      %v1602 = vunpack.c.h.b16 %v1364
      %v1603 = vunpack.c.l.b16 %v1365
      %v1604 = vunpack.c.h.b16 %v1365
      %v1605 = vunpack.c.l.b16 %v1366
      %v1606 = vunpack.c.h.b16 %v1366
      %v1607 = vunpack.c.l.b16 %v1367
      %v1608 = vunpack.c.h.b16 %v1367
      %v1609 = vunpack.c.l.b16 %v1368
      %v1610 = vunpack.c.h.b16 %v1368
      %v1611 = vunpack.c.l.b16 %v1369
      %v1612 = vunpack.c.h.b16 %v1369
      %v1613 = vunpack.c.l.b16 %v1370
      %v1614 = vunpack.c.h.b16 %v1370
      %v1615 = vunpack.c.l.b16 %v1371
      %v1616 = vunpack.c.h.b16 %v1371
      %v1617 = vunpack.c.l.b16 %v1372
      %v1618 = vunpack.c.h.b16 %v1372
      %v1619 = vunpack.c.l.b16 %v1373
      %v1620 = vunpack.c.h.b16 %v1373
      %v1621 = vunpack.c.l.b16 %v1374
      %v1622 = vunpack.c.h.b16 %v1374
      %v1623 = vunpack.c.l.b16 %v1375
      %v1624 = vunpack.c.h.b16 %v1375
      %v1625 = vunpack.c.l.b16 %v1376
      %v1626 = vunpack.c.h.b16 %v1376
      %v1627 = vunpack.c.l.b16 %v1377
      %v1628 = vunpack.c.h.b16 %v1377
      %v1629 = vunpack.c.l.b16 %v1378
      %v1630 = vunpack.c.h.b16 %v1378
      %v1631 = vunpack.c.l.b16 %v1379
      %v1632 = vunpack.c.h.b16 %v1379
      %v1633 = vunpack.c.l.b16 %v1380
      %v1634 = vunpack.c.h.b16 %v1380
      %v1635 = vunpack.c.l.b16 %v1381
      %v1636 = vunpack.c.h.b16 %v1381
      %v1637 = vunpack.c.l.b16 %v1382
      %v1638 = vunpack.c.h.b16 %v1382
      %v1639 = vunpack.c.l.b16 %v1383
      %v1640 = vunpack.c.h.b16 %v1383
      %v1641 = vunpack.c.l.b16 %v1384
      %v1642 = vunpack.c.h.b16 %v1384
      %v1643 = vunpack.c.l.b16 %v1385
      %v1644 = vunpack.c.h.b16 %v1385
      %v1645 = vunpack.c.l.b16 %v1386
      %v1646 = vunpack.c.h.b16 %v1386
      %v1647 = vunpack.c.l.b16 %v1387
      %v1648 = vunpack.c.h.b16 %v1387
      %v1649 = vunpack.c.l.b16 %v1388
      %v1650 = vunpack.c.h.b16 %v1388
      %v1651 = vunpack.c.l.b16 %v1389
      %v1652 = vunpack.c.h.b16 %v1389
      %v1653 = vunpack.c.l.b16 %v1390
      %v1654 = vunpack.c.h.b16 %v1390
      %v1655 = vunpack.c.l.b16 %v1391
      %v1656 = vunpack.c.h.b16 %v1391
      %v1657 = vunpack.c.l.b16 %v1392
      %v1658 = vunpack.c.h.b16 %v1392
      %v1659 = vunpack.c.l.b16 %v1393
      %v1660 = vunpack.c.h.b16 %v1393
      %v1661 = vunpack.c.l.b16 %v1394
      %v1662 = vunpack.c.h.b16 %v1394
      %v1663 = vunpack.c.l.b16 %v1395
      %v1664 = vunpack.c.h.b16 %v1395
      %v1665 = vunpack.c.l.b16 %v1396
      %v1666 = vunpack.c.h.b16 %v1396
      %v1667 = vunpack.c.l.b16 %v1397
      %v1668 = vunpack.c.h.b16 %v1397
      %v1669 = vunpack.c.l.b16 %v1398
      %v1670 = vunpack.c.h.b16 %v1398
      %v1671 = vunpack.c.l.b16 %v1399
      %v1672 = vunpack.c.h.b16 %v1399
      %v1673 = vunpack.c.l.b16 %v1400
      %v1674 = vunpack.c.h.b16 %v1400
      %v1675 = vunpack.c.l.b16 %v1401
      %v1676 = vunpack.c.h.b16 %v1401
      %v1677 = vunpack.c.l.b16 %v1402
      %v1678 = vunpack.c.h.b16 %v1402
      %v1679 = vunpack.c.l.b16 %v1403
      %v1680 = vunpack.c.h.b16 %v1403
      %v1681 = vunpack.c.l.b16 %v1404
      %v1682 = vunpack.c.h.b16 %v1404
      %v1683 = vunpack.c.l.b16 %v1405
      %v1684 = vunpack.c.h.b16 %v1405
      %v1685 = vunpack.c.l.b16 %v1406
      %v1686 = vunpack.c.h.b16 %v1406
      %v1687 = vunpack.c.l.b16 %v1407
      %v1688 = vunpack.c.h.b16 %v1407
      %v1689 = vunpack.c.l.b16 %v1408
      %v1690 = vunpack.c.h.b16 %v1408
      %v1691 = vunpack.c.l.b16 %v1409
      %v1692 = vunpack.c.h.b16 %v1409
      %v1693 = vunpack.c.l.b16 %v1410
      %v1694 = vunpack.c.h.b16 %v1410
      %v1695 = vunpack.c.l.b16 %v1411
      %v1696 = vunpack.c.h.b16 %v1411
      %v1697 = vunpack.c.l.b16 %v1412
      %v1698 = vunpack.c.h.b16 %v1412
      %v1699 = vunpack.c.l.b16 %v1413
      %v1700 = vunpack.c.h.b16 %v1413
      %v1701 = vunpack.c.l.b16 %v1414
      %v1702 = vunpack.c.h.b16 %v1414
      %v1703 = vunpack.c.l.b16 %v1415
      %v1704 = vunpack.c.h.b16 %v1415
      %v1705 = vunpack.c.l.b16 %v1416
      %v1706 = vunpack.c.h.b16 %v1416
      %v1707 = vunpack.c.l.b16 %v1417
      %v1708 = vunpack.c.h.b16 %v1417
      %v1709 = vunpack.c.l.b16 %v1418
      %v1710 = vunpack.c.h.b16 %v1418
      %v1711 = vunpack.c.l.b16 %v1419
      %v1712 = vunpack.c.h.b16 %v1419
      %v1713 = vunpack.c.l.b16 %v1420
      %v1714 = vunpack.c.h.b16 %v1420
      %v1715 = vunpack.c.l.b16 %v1421
      %v1716 = vunpack.c.h.b16 %v1421
      %v1717 = vunpack.c.l.b16 %v1422
      %v1718 = vunpack.c.h.b16 %v1422
      %v1719 = vunpack.c.l.b16 %v1423
      %v1720 = vunpack.c.h.b16 %v1423
      %v1721 = vunpack.c.l.b16 %v1424
      %v1722 = vunpack.c.h.b16 %v1424
      %v1723 = vunpack.c.l.b16 %v1425
      %v1724 = vunpack.c.h.b16 %v1425
      %v1725 = vunpack.c.l.b16 %v1426
      %v1726 = vunpack.c.h.b16 %v1426
      %v1727 = vunpack.c.l.b16 %v1427
      %v1728 = vunpack.c.h.b16 %v1427
      %v1729 = vunpack.c.l.b16 %v1428
      %v1730 = vunpack.c.h.b16 %v1428
      %v1731 = vunpack.c.l.b16 %v1429
      %v1732 = vunpack.c.h.b16 %v1429
      %v1733 = vunpack.c.l.b16 %v1430
      %v1734 = vunpack.c.h.b16 %v1430
      %v1735 = vunpack.c.l.b16 %v1431
      %v1736 = vunpack.c.h.b16 %v1431
      %v1737 = vunpack.c.l.b16 %v1432
      %v1738 = vunpack.c.h.b16 %v1432
      %v1739 = vunpack.c.l.b16 %v1433
      %v1740 = vunpack.c.h.b16 %v1433
      %v1741 = vunpack.c.l.b16 %v1434
      %v1742 = vunpack.c.h.b16 %v1434
      %v1743 = vunpack.c.l.b16 %v1435
      %v1744 = vunpack.c.h.b16 %v1435
      %v1745 = vunpack.c.l.b16 %v1436
      %v1746 = vunpack.c.h.b16 %v1436
      %v1747 = vunpack.c.l.b16 %v1437
      %v1748 = vunpack.c.h.b16 %v1437
      %v1749 = vunpack.c.l.b16 %v1438
      %v1750 = vunpack.c.h.b16 %v1438
      %v1751 = vunpack.c.l.b16 %v1439
      %v1752 = vunpack.c.h.b16 %v1439
      %v1753 = vunpack.c.l.b16 %v1440
      %v1754 = vunpack.c.h.b16 %v1440
      %v1755 = vunpack.c.l.b16 %v1441
      %v1756 = vunpack.c.h.b16 %v1441
      %v1757 = vunpack.c.l.b16 %v1442
      %v1758 = vunpack.c.h.b16 %v1442
      %v1759 = vunpack.c.l.b16 %v1443
      %v1760 = vunpack.c.h.b16 %v1443
      %v1761 = vunpack.c.l.b16 %v1444
      %v1762 = vunpack.c.h.b16 %v1444
      %v1763 = vunpack.c.l.b16 %v1445
      %v1764 = vunpack.c.h.b16 %v1445
      %v1765 = vunpack.c.l.b16 %v1446
      %v1766 = vunpack.c.h.b16 %v1446
      %v1767 = vunpack.c.l.b16 %v1447
      %v1768 = vunpack.c.h.b16 %v1447
      %v1769 = vunpack.c.l.b16 %v1448
      %v1770 = vunpack.c.h.b16 %v1448
      %v1771 = vunpack.c.l.b16 %v1449
      %v1772 = vunpack.c.h.b16 %v1449
      %v1773 = vunpack.c.l.b16 %v1450
      %v1774 = vunpack.c.h.b16 %v1450
      %v1775 = vunpack.c.l.b16 %v1451
      %v1776 = vunpack.c.h.b16 %v1451
      %v1777 = vunpack.c.l.b16 %v1452
      %v1778 = vunpack.c.h.b16 %v1452
      %v1779 = vunpack.c.l.b16 %v1453
      %v1780 = vunpack.c.h.b16 %v1453
      %v1781 = vunpack.c.l.b16 %v1454
      %v1782 = vunpack.c.h.b16 %v1454
      %v1783 = vunpack.c.l.b16 %v1455
      %v1784 = vunpack.c.h.b16 %v1455
      %v1785 = vunpack.c.l.b16 %v1456
      %v1786 = vunpack.c.h.b16 %v1456
      %v1787 = vunpack.c.l.b16 %v1457
      %v1788 = vunpack.c.h.b16 %v1457
      %v1789 = vunpack.c.l.b16 %v1458
      %v1790 = vunpack.c.h.b16 %v1458
      %v1791 = vunpack.c.l.b16 %v1459
      %v1792 = vunpack.c.h.b16 %v1459
      %v1793 = vunpack.c.l.b16 %v1460
      %v1794 = vunpack.c.h.b16 %v1460
      %v1795 = vunpack.c.l.b16 %v1461
      %v1796 = vunpack.c.h.b16 %v1461
      %v1797 = vunpack.c.l.b16 %v1462
      %v1798 = vunpack.c.h.b16 %v1462
      %v1799 = vpack.c.b16 %v1591, %v1583
      %v1800 = vpack.c.b16 %v1592, %v1584
      %v1801 = vpack.c.b16 %v1593, %v1585
      %v1802 = vpack.c.b16 %v1594, %v1586
      %v1803 = vpack.c.b16 %v1595, %v1587
      %v1804 = vpack.c.b16 %v1596, %v1588
      %v1805 = vpack.c.b16 %v1597, %v1589
      %v1806 = vpack.c.b16 %v1598, %v1590
      %v1807 = vpack.c.b16 %v1607, %v1599
      %v1808 = vpack.c.b16 %v1608, %v1600
      %v1809 = vpack.c.b16 %v1609, %v1601
      %v1810 = vpack.c.b16 %v1610, %v1602
      %v1811 = vpack.c.b16 %v1611, %v1603
      %v1812 = vpack.c.b16 %v1612, %v1604
      %v1813 = vpack.c.b16 %v1613, %v1605
      %v1814 = vpack.c.b16 %v1614, %v1606
      %v1815 = vpack.c.b16 %v1623, %v1615
      %v1816 = vpack.c.b16 %v1624, %v1616
      %v1817 = vpack.c.b16 %v1625, %v1617
      %v1818 = vpack.c.b16 %v1626, %v1618
      %v1819 = vpack.c.b16 %v1627, %v1619
      %v1820 = vpack.c.b16 %v1628, %v1620
      %v1821 = vpack.c.b16 %v1629, %v1621
      %v1822 = vpack.c.b16 %v1630, %v1622
      %v1823 = vpack.c.b16 %v1639, %v1631
      %v1824 = vpack.c.b16 %v1640, %v1632
      %v1825 = vpack.c.b16 %v1641, %v1633
      %v1826 = vpack.c.b16 %v1642, %v1634
      %v1827 = vpack.c.b16 %v1643, %v1635
      %v1828 = vpack.c.b16 %v1644, %v1636
      %v1829 = vpack.c.b16 %v1645, %v1637
      %v1830 = vpack.c.b16 %v1646, %v1638
      %v1831 = vpack.c.b16 %v1655, %v1647
      %v1832 = vpack.c.b16 %v1656, %v1648
      %v1833 = vpack.c.b16 %v1657, %v1649
      %v1834 = vpack.c.b16 %v1658, %v1650
      %v1835 = vpack.c.b16 %v1659, %v1651
      %v1836 = vpack.c.b16 %v1660, %v1652
      %v1837 = vpack.c.b16 %v1661, %v1653
      %v1838 = vpack.c.b16 %v1662, %v1654
      %v1839 = vpack.c.b16 %v1671, %v1663
      %v1840 = vpack.c.b16 %v1672, %v1664
      %v1841 = vpack.c.b16 %v1673, %v1665
      %v1842 = vpack.c.b16 %v1674, %v1666
      %v1843 = vpack.c.b16 %v1675, %v1667
      %v1844 = vpack.c.b16 %v1676, %v1668
      %v1845 = vpack.c.b16 %v1677, %v1669
      %v1846 = vpack.c.b16 %v1678, %v1670
      %v1847 = vpack.c.b16 %v1687, %v1679
      %v1848 = vpack.c.b16 %v1688, %v1680
      %v1849 = vpack.c.b16 %v1689, %v1681
      %v1850 = vpack.c.b16 %v1690, %v1682
      %v1851 = vpack.c.b16 %v1691, %v1683
      %v1852 = vpack.c.b16 %v1692, %v1684
      %v1853 = vpack.c.b16 %v1693, %v1685
      %v1854 = vpack.c.b16 %v1694, %v1686
      %v1855 = vpack.c.b16 %v1703, %v1695
      %v1856 = vpack.c.b16 %v1704, %v1696
      %v1857 = vpack.c.b16 %v1705, %v1697
      %v1858 = vpack.c.b16 %v1706, %v1698
      %v1859 = vpack.c.b16 %v1707, %v1699
      %v1860 = vpack.c.b16 %v1708, %v1700
      %v1861 = vpack.c.b16 %v1709, %v1701
      %v1862 = vpack.c.b16 %v1710, %v1702
      %v1863 = vpack.c.b16 %v1719, %v1711
      %v1864 = vpack.c.b16 %v1720, %v1712
      %v1865 = vpack.c.b16 %v1721, %v1713
      %v1866 = vpack.c.b16 %v1722, %v1714
      %v1867 = vpack.c.b16 %v1723, %v1715
      %v1868 = vpack.c.b16 %v1724, %v1716
      %v1869 = vpack.c.b16 %v1725, %v1717
      %v1870 = vpack.c.b16 %v1726, %v1718
      %v1871 = vpack.c.b16 %v1735, %v1727
      %v1872 = vpack.c.b16 %v1736, %v1728
      %v1873 = vpack.c.b16 %v1737, %v1729
      %v1874 = vpack.c.b16 %v1738, %v1730
      %v1875 = vpack.c.b16 %v1739, %v1731
      %v1876 = vpack.c.b16 %v1740, %v1732
      %v1877 = vpack.c.b16 %v1741, %v1733
      %v1878 = vpack.c.b16 %v1742, %v1734
      %v1879 = vpack.c.b16 %v1751, %v1743
      %v1880 = vpack.c.b16 %v1752, %v1744
      %v1881 = vpack.c.b16 %v1753, %v1745
      %v1882 = vpack.c.b16 %v1754, %v1746
      %v1883 = vpack.c.b16 %v1755, %v1747
      %v1884 = vpack.c.b16 %v1756, %v1748
      %v1885 = vpack.c.b16 %v1757, %v1749
      %v1886 = vpack.c.b16 %v1758, %v1750
      %v1887 = vpack.c.b16 %v1767, %v1759
      %v1888 = vpack.c.b16 %v1768, %v1760
      %v1889 = vpack.c.b16 %v1769, %v1761
      %v1890 = vpack.c.b16 %v1770, %v1762
      %v1891 = vpack.c.b16 %v1771, %v1763
      %v1892 = vpack.c.b16 %v1772, %v1764
      %v1893 = vpack.c.b16 %v1773, %v1765
      %v1894 = vpack.c.b16 %v1774, %v1766
      %v1895 = vpack.c.b16 %v1783, %v1775
      %v1896 = vpack.c.b16 %v1784, %v1776
      %v1897 = vpack.c.b16 %v1785, %v1777
      %v1898 = vpack.c.b16 %v1786, %v1778
      %v1899 = vpack.c.b16 %v1787, %v1779
      %v1900 = vpack.c.b16 %v1788, %v1780
      %v1901 = vpack.c.b16 %v1789, %v1781
      %v1902 = vpack.c.b16 %v1790, %v1782
      %v1903 = vpack.c.b16 %v1791, %v1791
      %v1904 = vpack.c.b16 %v1792, %v1792
      %v1905 = vpack.c.b16 %v1793, %v1793
      %v1906 = vpack.c.b16 %v1794, %v1794
      %v1907 = vpack.c.b16 %v1795, %v1795
      %v1908 = vpack.c.b16 %v1796, %v1796
      %v1909 = vpack.c.b16 %v1797, %v1797
      %v1910 = vpack.c.b16 %v1798, %v1798
      %vm2015 = vcmask 719872
      %v2017 = vsel %vm2015, %v1473, 0
      %vm2019 = vcmask 1043456
      %v2021 = vsel %vm2019, %v1903, 0
      %v2024 = vsel %vm2019, %v1904, 0
      %v2027 = vsel %vm2019, %v1905, 0
      %v2030 = vsel %vm2019, %v1906, 0
      %v2033 = vsel %vm2019, %v1907, 0
      %v2036 = vsel %vm2019, %v1908, 0
      %v2039 = vsel %vm2019, %v1909, 0
      %v2042 = vsel %vm2019, %v1910, 0
      %2044 = vmatprep.subr.bf16.mxu0 %v1856
      %2045 = vmatpush1.bf16.msra.mxu0 %v1855
      %2046 = vmatprep.subr.bf16.mxu0 %v1848
      %2047 = vmatpush1.bf16.msra.mxu0 %v1847
      %2048 = vmatprep.subr.bf16.mxu0 %v1840
      %2049 = vmatpush1.bf16.msra.mxu0 %v1839
      %2050 = vmatprep.subr.bf16.mxu0 %v1832
      %2051 = vmatpush1.bf16.msra.mxu0 %v1831
      %2052 = vmatprep.subr.bf16.mxu0 %v1824
      %2053 = vmatpush1.bf16.msra.mxu0 %v1823
      %2054 = vmatprep.subr.bf16.mxu0 %v1816
      %2055 = vmatpush1.bf16.msra.mxu0 %v1815
      %2056 = vmatprep.subr.bf16.mxu0 %v1808
      %2057 = vmatpush1.bf16.msra.mxu0 %v1807
      %2058 = vmatprep.subr.bf16.mxu0 %v1800
      %2059 = vmatpush1.bf16.msra.mxu0 %v1799
      %2060 = vmatprep.subr.bf16.mxu0 0
      %2061 = vmatpush2.bf16.msra.mxu0 0
      %2062 = vmatprep.subr.bf16.mxu0 0
      %2063 = vmatpush2.bf16.msra.mxu0 0
      %2064 = vmatprep.subr.bf16.mxu0 %v2024
      %2065 = vmatpush2.bf16.msra.mxu0 %v2021
      %2066 = vmatprep.subr.bf16.mxu0 %v1896
      %2067 = vmatpush2.bf16.msra.mxu0 %v1895
      %2068 = vmatprep.subr.bf16.mxu0 %v1888
      %2069 = vmatpush2.bf16.msra.mxu0 %v1887
      %2070 = vmatprep.subr.bf16.mxu0 %v1880
      %2071 = vmatpush2.bf16.msra.mxu0 %v1879
      %2072 = vmatprep.subr.bf16.mxu0 %v1872
      %2073 = vmatpush2.bf16.msra.mxu0 %v1871
      %2074 = vmatprep.subr.bf16.mxu0 %v1864
      %2075 = vmatpush2.bf16.msra.mxu0 %v1863
      %2076 = vmatprep.mubr.bf16.mxu0 %v2017
      %2077 = vmatmul.mubr.bf16.gmra.mxu0 %v1472
      %v2078 = vpop.f32.mrf.mxu0
      %v2079 = vadd.f32 %v1467, %v2078
      %v2080 = vpop.f32.mrf.mxu0
      %v2081 = vadd.f32 %v1467, %v2080
      %v2082 = vpop.f32.mrf.mxu0
      %v2083 = vpop.f32.mrf.mxu0
      %2084 = vdwg.mxu0
      %2085 = vmatprep.subr.bf16.mxu0 %v1858
      %2086 = vmatpush1.bf16.msra.mxu0 %v1857
      %2087 = vmatprep.subr.bf16.mxu0 %v1850
      %2088 = vmatpush1.bf16.msra.mxu0 %v1849
      %2089 = vmatprep.subr.bf16.mxu0 %v1842
      %2090 = vmatpush1.bf16.msra.mxu0 %v1841
      %2091 = vmatprep.subr.bf16.mxu0 %v1834
      %2092 = vmatpush1.bf16.msra.mxu0 %v1833
      %2093 = vmatprep.subr.bf16.mxu0 %v1826
      %2094 = vmatpush1.bf16.msra.mxu0 %v1825
      %2095 = vmatprep.subr.bf16.mxu0 %v1818
      %2096 = vmatpush1.bf16.msra.mxu0 %v1817
      %2097 = vmatprep.subr.bf16.mxu0 %v1810
      %2098 = vmatpush1.bf16.msra.mxu0 %v1809
      %2099 = vmatprep.subr.bf16.mxu0 %v1802
      %2100 = vmatpush1.bf16.msra.mxu0 %v1801
      %2101 = vmatprep.subr.bf16.mxu0 0
      %2102 = vmatpush2.bf16.msra.mxu0 0
      %2103 = vmatprep.subr.bf16.mxu0 0
      %2104 = vmatpush2.bf16.msra.mxu0 0
      %2105 = vmatprep.subr.bf16.mxu0 %v2030
      %2106 = vmatpush2.bf16.msra.mxu0 %v2027
      %2107 = vmatprep.subr.bf16.mxu0 %v1898
      %2108 = vmatpush2.bf16.msra.mxu0 %v1897
      %2109 = vmatprep.subr.bf16.mxu0 %v1890
      %2110 = vmatpush2.bf16.msra.mxu0 %v1889
      %2111 = vmatprep.subr.bf16.mxu0 %v1882
      %2112 = vmatpush2.bf16.msra.mxu0 %v1881
      %2113 = vmatprep.subr.bf16.mxu0 %v1874
      %2114 = vmatpush2.bf16.msra.mxu0 %v1873
      %2115 = vmatprep.subr.bf16.mxu0 %v1866
      %2116 = vmatpush2.bf16.msra.mxu0 %v1865
      %2117 = vmatprep.mubr.bf16.mxu0 %v2017
      %2118 = vmatmul.mubr.bf16.gmra.mxu0 %v1472
      %v2119 = vpop.f32.mrf.mxu0
      %v2120 = vadd.f32 %v1467, %v2119
      %v2121 = vpop.f32.mrf.mxu0
      %v2122 = vadd.f32 %v1467, %v2121
      %v2123 = vpop.f32.mrf.mxu0
      %v2124 = vpop.f32.mrf.mxu0
      %2125 = vdwg.mxu0
      %2126 = vmatprep.subr.bf16.mxu0 %v1860
      %2127 = vmatpush1.bf16.msra.mxu0 %v1859
      %2128 = vmatprep.subr.bf16.mxu0 %v1852
      %2129 = vmatpush1.bf16.msra.mxu0 %v1851
      %2130 = vmatprep.subr.bf16.mxu0 %v1844
      %2131 = vmatpush1.bf16.msra.mxu0 %v1843
      %2132 = vmatprep.subr.bf16.mxu0 %v1836
      %2133 = vmatpush1.bf16.msra.mxu0 %v1835
      %2134 = vmatprep.subr.bf16.mxu0 %v1828
      %2135 = vmatpush1.bf16.msra.mxu0 %v1827
      %2136 = vmatprep.subr.bf16.mxu0 %v1820
      %2137 = vmatpush1.bf16.msra.mxu0 %v1819
      %2138 = vmatprep.subr.bf16.mxu0 %v1812
      %2139 = vmatpush1.bf16.msra.mxu0 %v1811
      %2140 = vmatprep.subr.bf16.mxu0 %v1804
      %2141 = vmatpush1.bf16.msra.mxu0 %v1803
      %2142 = vmatprep.subr.bf16.mxu0 0
      %2143 = vmatpush2.bf16.msra.mxu0 0
      %2144 = vmatprep.subr.bf16.mxu0 0
      %2145 = vmatpush2.bf16.msra.mxu0 0
      %2146 = vmatprep.subr.bf16.mxu0 %v2036
      %2147 = vmatpush2.bf16.msra.mxu0 %v2033
      %2148 = vmatprep.subr.bf16.mxu0 %v1900
      %2149 = vmatpush2.bf16.msra.mxu0 %v1899
      %2150 = vmatprep.subr.bf16.mxu0 %v1892
      %2151 = vmatpush2.bf16.msra.mxu0 %v1891
      %2152 = vmatprep.subr.bf16.mxu0 %v1884
      %2153 = vmatpush2.bf16.msra.mxu0 %v1883
      %2154 = vmatprep.subr.bf16.mxu0 %v1876
      %2155 = vmatpush2.bf16.msra.mxu0 %v1875
      %2156 = vmatprep.subr.bf16.mxu0 %v1868
      %2157 = vmatpush2.bf16.msra.mxu0 %v1867
      %2158 = vmatprep.mubr.bf16.mxu0 %v2017
      %2159 = vmatmul.mubr.bf16.gmra.mxu0 %v1472
      %v2160 = vpop.f32.mrf.mxu0
      %v2161 = vadd.f32 %v1467, %v2160
      %v2162 = vpop.f32.mrf.mxu0
      %v2163 = vadd.f32 %v1467, %v2162
      %v2164 = vpop.f32.mrf.mxu0
      %v2165 = vpop.f32.mrf.mxu0
      %2166 = vdwg.mxu0
      %2167 = vmatprep.subr.bf16.mxu0 %v1862
      %2168 = vmatpush1.bf16.msra.mxu0 %v1861
      %2169 = vmatprep.subr.bf16.mxu0 %v1854
      %2170 = vmatpush1.bf16.msra.mxu0 %v1853
      %2171 = vmatprep.subr.bf16.mxu0 %v1846
      %2172 = vmatpush1.bf16.msra.mxu0 %v1845
      %2173 = vmatprep.subr.bf16.mxu0 %v1838
      %2174 = vmatpush1.bf16.msra.mxu0 %v1837
      %2175 = vmatprep.subr.bf16.mxu0 %v1830
      %2176 = vmatpush1.bf16.msra.mxu0 %v1829
      %2177 = vmatprep.subr.bf16.mxu0 %v1822
      %2178 = vmatpush1.bf16.msra.mxu0 %v1821
      %2179 = vmatprep.subr.bf16.mxu0 %v1814
      %2180 = vmatpush1.bf16.msra.mxu0 %v1813
      %2181 = vmatprep.subr.bf16.mxu0 %v1806
      %2182 = vmatpush1.bf16.msra.mxu0 %v1805
      %2183 = vmatprep.subr.bf16.mxu0 0
      %2184 = vmatpush2.bf16.msra.mxu0 0
      %2185 = vmatprep.subr.bf16.mxu0 0
      %2186 = vmatpush2.bf16.msra.mxu0 0
      %2187 = vmatprep.subr.bf16.mxu0 %v2042
      %2188 = vmatpush2.bf16.msra.mxu0 %v2039
      %2189 = vmatprep.subr.bf16.mxu0 %v1902
      %2190 = vmatpush2.bf16.msra.mxu0 %v1901
      %2191 = vmatprep.subr.bf16.mxu0 %v1894
      %2192 = vmatpush2.bf16.msra.mxu0 %v1893
      %2193 = vmatprep.subr.bf16.mxu0 %v1886
      %2194 = vmatpush2.bf16.msra.mxu0 %v1885
      %2195 = vmatprep.subr.bf16.mxu0 %v1878
      %2196 = vmatpush2.bf16.msra.mxu0 %v1877
      %2197 = vmatprep.subr.bf16.mxu0 %v1870
      %2198 = vmatpush2.bf16.msra.mxu0 %v1869
      %2199 = vmatprep.mubr.bf16.mxu0 %v2017
      %2200 = vmatmul.mubr.bf16.gmra.mxu0 %v1472
      %v2201 = vpop.f32.mrf.mxu0
      %v2202 = vadd.f32 %v1467, %v2201
      %v2203 = vpop.f32.mrf.mxu0
      %v2204 = vadd.f32 %v1467, %v2203
      %v2205 = vpop.f32.mrf.mxu0
      %v2206 = vpop.f32.mrf.mxu0
      %2207 = vdwg.mxu0
      %v2208 = vmax.f32 %v2079, 0.0
      %v2209 = vmax.f32 %v2081, 0.0
      %v2210 = vmax.f32 %v2120, 0.0
      %v2211 = vmax.f32 %v2122, 0.0
      %v2212 = vmax.f32 %v2161, 0.0
      %v2213 = vmax.f32 %v2163, 0.0
      %v2214 = vmax.f32 %v2202, 0.0
      %v2215 = vmax.f32 %v2204, 0.0
      %v2216 = vpack.c.bf16 %v2208, %v2208
      %v2217 = vpack.c.bf16 %v2209, %v2209
      %v2218 = vpack.c.bf16 %v2210, %v2210
      %v2219 = vpack.c.bf16 %v2211, %v2211
      %v2220 = vpack.c.bf16 %v2212, %v2212
      %v2221 = vpack.c.bf16 %v2213, %v2213
      %v2222 = vpack.c.bf16 %v2214, %v2214
      %v2223 = vpack.c.bf16 %v2215, %v2215
      %v2224 = vld [vmem:[%s5] sm:$0xff]
      %v2226 = vcombine.high %v2224, %v2224
      %v2228 = vunpack.c.l.s4 1966171168
      %v2229 = vunpack.c.0.s8 %v2228
      %v2230 = vlaneseq
      %v2231 = vshrl.u32 %v2230, 7
      %v2232 = vsub.s32 %v2229, %v2231
      %v2233 = vrot.slane %v2224, %v2232
      %v2235 = vunpack.c.l.s4 1966171168
      %v2236 = vunpack.c.0.s8 %v2235
      %v2237 = vlaneseq
      %v2238 = vshrl.u32 %v2237, 7
      %v2239 = vsub.s32 %v2236, %v2238
      %v2240 = vrot.slane %v2226, %v2239
      %v2241 = vcombine.high %v2233, %v2233
      %v2242 = vcombine.high %v2240, %v2240
      %v2244 = vunpack.c.l.s4 1966171168
      %v2245 = vunpack.c.0.s8 %v2244
      %v2246 = vlaneseq
      %v2247 = vshrl.u32 %v2246, 7
      %v2248 = vsub.s32 %v2245, %v2247
      %v2249 = vrot.slane %v2233, %v2248
      %v2251 = vunpack.c.l.s4 1966171168
      %v2252 = vunpack.c.0.s8 %v2251
      %v2253 = vlaneseq
      %v2254 = vshrl.u32 %v2253, 7
      %v2255 = vsub.s32 %v2252, %v2254
      %v2256 = vrot.slane %v2240, %v2255
      %v2258 = vunpack.c.l.s4 1966171168
      %v2259 = vunpack.c.0.s8 %v2258
      %v2260 = vlaneseq
      %v2261 = vshrl.u32 %v2260, 7
      %v2262 = vsub.s32 %v2259, %v2261
      %v2263 = vrot.slane %v2241, %v2262
      %v2265 = vunpack.c.l.s4 1966171168
      %v2266 = vunpack.c.0.s8 %v2265
      %v2267 = vlaneseq
      %v2268 = vshrl.u32 %v2267, 7
      %v2269 = vsub.s32 %v2266, %v2268
      %v2270 = vrot.slane %v2242, %v2269
      %v2271 = vcombine.high %v2249, %v2249
      %v2272 = vcombine.high %v2256, %v2256
      %v2273 = vcombine.high %v2263, %v2263
      %v2274 = vcombine.high %v2270, %v2270
      %v2276 = vpack.i.b16 %v2249, %v2249
      %v2278 = vlaneseq
      %v2279 = vshrl.u32 %v2278, 7
      %v2280 = vsub.s32 0, %v2279
      %v2281 = vrot.slane %v2276, %v2280
      %v2283 = vpack.i.b16 %v2263, %v2263
      %v2285 = vlaneseq
      %v2286 = vshrl.u32 %v2285, 7
      %v2287 = vsub.s32 0, %v2286
      %v2288 = vrot.slane %v2283, %v2287
      %v2290 = vpack.i.b16 %v2271, %v2271
      %v2292 = vlaneseq
      %v2293 = vshrl.u32 %v2292, 7
      %v2294 = vsub.s32 0, %v2293
      %v2295 = vrot.slane %v2290, %v2294
      %v2297 = vpack.i.b16 %v2273, %v2273
      %v2299 = vlaneseq
      %v2300 = vshrl.u32 %v2299, 7
      %v2301 = vsub.s32 0, %v2300
      %v2302 = vrot.slane %v2297, %v2301
      %v2304 = vpack.i.b16 %v2256, %v2256
      %v2306 = vlaneseq
      %v2307 = vshrl.u32 %v2306, 7
      %v2308 = vsub.s32 0, %v2307
      %v2309 = vrot.slane %v2304, %v2308
      %v2311 = vpack.i.b16 %v2270, %v2270
      %v2313 = vlaneseq
      %v2314 = vshrl.u32 %v2313, 7
      %v2315 = vsub.s32 0, %v2314
      %v2316 = vrot.slane %v2311, %v2315
      %v2318 = vpack.i.b16 %v2272, %v2272
      %v2320 = vlaneseq
      %v2321 = vshrl.u32 %v2320, 7
      %v2322 = vsub.s32 0, %v2321
      %v2323 = vrot.slane %v2318, %v2322
      %v2325 = vpack.i.b16 %v2274, %v2274
      %v2327 = vlaneseq
      %v2328 = vshrl.u32 %v2327, 7
      %v2329 = vsub.s32 0, %v2328
      %v2330 = vrot.slane %v2325, %v2329
      %v2331 = vmul.bf16 %v2216, %v2281
      %v2332 = vmul.bf16 %v2217, %v2288
      %v2333 = vmul.bf16 %v2218, %v2295
      %v2334 = vmul.bf16 %v2219, %v2302
      %v2335 = vmul.bf16 %v2220, %v2309
      %v2336 = vmul.bf16 %v2221, %v2316
      %v2337 = vmul.bf16 %v2222, %v2323
      %v2338 = vmul.bf16 %v2223, %v2330
      %2339 = vst [vmem:[#allocation2] sm:$0xf] 0
      %2340 = vst [vmem:[#allocation2 + $0x24] sm:$0xf] 0
      %v2349 = vunpack.c.l.b16 %v2331
      %v2350 = vunpack.c.l.b16 %v2332
      %v2351 = vunpack.c.l.b16 %v2333
      %v2352 = vunpack.c.l.b16 %v2334
      %v2353 = vunpack.c.l.b16 %v2335
      %v2354 = vunpack.c.l.b16 %v2336
      %v2355 = vunpack.c.l.b16 %v2337
      %v2356 = vunpack.c.l.b16 %v2338
      %v2357 = vpack.c.b16 %v2350, %v2349
      %v2358 = vpack.c.b16 %v2352, %v2351
      %v2359 = vpack.c.b16 %v2354, %v2353
      %v2360 = vpack.c.b16 %v2356, %v2355
      %2365 = vst [vmem:[#allocation2 + $0x4] sm:$0xff] %v2357
      %2366 = vst [vmem:[#allocation2 + $0xc] sm:$0xff] %v2358
      %2367 = vst [vmem:[#allocation2 + $0x14] sm:$0xff] %v2359
      %2368 = vst [vmem:[#allocation2 + $0x1c] sm:$0xff] %v2360
      %v2369 = vld [vmem:[#allocation2] sm:$0xff]
      %v2370 = vld [vmem:[#allocation2 + $0x8] sm:$0xff]
      %v2371 = vld [vmem:[#allocation2 + $0x10] sm:$0xff]
      %v2372 = vld [vmem:[#allocation2 + $0x18] sm:$0xff]
      %v2373 = vld [vmem:[#allocation2 + $0x20] sm:$0xf]
      %2379 = vrot.lane.b32.xlu0 %v2369, 111
      %v2380 = vpop.permute.xlu0 %2379
      %2381 = vrot.lane.b32.xlu0 %v2370, 111
      %v2382 = vpop.permute.xlu0 %2381
      %2383 = vrot.lane.b32.xlu0 %v2371, 111
      %v2384 = vpop.permute.xlu0 %2383
      %2385 = vrot.lane.b32.xlu0 %v2372, 111
      %v2386 = vpop.permute.xlu0 %2385
      %2387 = vrot.lane.b32.xlu0 %v2373, 111
      %v2388 = vpop.permute.xlu0 %2387
      %v2389 = vrot.slane %v2380, 4
      %v2390 = vrot.slane %v2382, 4
      %v2391 = vrot.slane %v2384, 4
      %v2392 = vrot.slane %v2386, 4
      %v2393 = vrot.slane %v2388, 4
      %v2394 = vsel %vm278, %v2389, %v2390
      %v2395 = vsel %vm280, %v2380, %v2394
      %v2396 = vsel %vm278, %v2390, %v2391
      %v2397 = vsel %vm280, %v2382, %v2396
      %v2398 = vsel %vm278, %v2391, %v2392
      %v2399 = vsel %vm280, %v2384, %v2398
      %v2400 = vsel %vm278, %v2392, %v2393
      %v2401 = vsel %vm280, %v2386, %v2400
      %2406 = vst [vmem:[#allocation3] sm:$0xff] %v2395
      %2407 = vst [vmem:[#allocation3 + $0x8] sm:$0xff] %v2397
      %2408 = vst [vmem:[#allocation3 + $0x10] sm:$0xff] %v2399
      %2409 = vst [vmem:[#allocation3 + $0x18] sm:$0xff] %v2401
      %v2410 = vld [vmem:[#allocation2] sm:$0xff]
      %v2411 = vld [vmem:[#allocation2 + $0x8] sm:$0xff]
      %v2412 = vld [vmem:[#allocation2 + $0x10] sm:$0xff]
      %v2413 = vld [vmem:[#allocation2 + $0x18] sm:$0xff]
      %v2414 = vld [vmem:[#allocation2 + $0x20] sm:$0xf]
      %2420 = vrot.lane.b32.xlu0 %v2410, 110
      %v2421 = vpop.permute.xlu0 %2420
      %2422 = vrot.lane.b32.xlu0 %v2411, 110
      %v2423 = vpop.permute.xlu0 %2422
      %2424 = vrot.lane.b32.xlu0 %v2412, 110
      %v2425 = vpop.permute.xlu0 %2424
      %2426 = vrot.lane.b32.xlu0 %v2413, 110
      %v2427 = vpop.permute.xlu0 %2426
      %2428 = vrot.lane.b32.xlu0 %v2414, 110
      %v2429 = vpop.permute.xlu0 %2428
      %v2430 = vrot.slane %v2421, 4
      %v2431 = vrot.slane %v2423, 4
      %v2432 = vrot.slane %v2425, 4
      %v2433 = vrot.slane %v2427, 4
      %v2434 = vrot.slane %v2429, 4
      %v2435 = vsel %vm278, %v2430, %v2431
      %v2436 = vsel %vm322, %v2421, %v2435
      %v2437 = vsel %vm278, %v2431, %v2432
      %v2438 = vsel %vm322, %v2423, %v2437
      %v2439 = vsel %vm278, %v2432, %v2433
      %v2440 = vsel %vm322, %v2425, %v2439
      %v2441 = vsel %vm278, %v2433, %v2434
      %v2442 = vsel %vm322, %v2427, %v2441
      %2447 = vst [vmem:[#allocation3 + $0x20] sm:$0xff] %v2436
      %2448 = vst [vmem:[#allocation3 + $0x28] sm:$0xff] %v2438
      %2449 = vst [vmem:[#allocation3 + $0x30] sm:$0xff] %v2440
      %2450 = vst [vmem:[#allocation3 + $0x38] sm:$0xff] %v2442
      %v2451 = vld [vmem:[#allocation2] sm:$0xff]
      %v2452 = vld [vmem:[#allocation2 + $0x8] sm:$0xff]
      %v2453 = vld [vmem:[#allocation2 + $0x10] sm:$0xff]
      %v2454 = vld [vmem:[#allocation2 + $0x18] sm:$0xff]
      %v2455 = vld [vmem:[#allocation2 + $0x20] sm:$0xf]
      %2461 = vrot.lane.b32.xlu0 %v2451, 109
      %v2462 = vpop.permute.xlu0 %2461
      %2463 = vrot.lane.b32.xlu0 %v2452, 109
      %v2464 = vpop.permute.xlu0 %2463
      %2465 = vrot.lane.b32.xlu0 %v2453, 109
      %v2466 = vpop.permute.xlu0 %2465
      %2467 = vrot.lane.b32.xlu0 %v2454, 109
      %v2468 = vpop.permute.xlu0 %2467
      %2469 = vrot.lane.b32.xlu0 %v2455, 109
      %v2470 = vpop.permute.xlu0 %2469
      %v2471 = vrot.slane %v2462, 4
      %v2472 = vrot.slane %v2464, 4
      %v2473 = vrot.slane %v2466, 4
      %v2474 = vrot.slane %v2468, 4
      %v2475 = vrot.slane %v2470, 4
      %v2476 = vsel %vm278, %v2471, %v2472
      %v2477 = vsel %vm364, %v2462, %v2476
      %v2478 = vsel %vm278, %v2472, %v2473
      %v2479 = vsel %vm364, %v2464, %v2478
      %v2480 = vsel %vm278, %v2473, %v2474
      %v2481 = vsel %vm364, %v2466, %v2480
      %v2482 = vsel %vm278, %v2474, %v2475
      %v2483 = vsel %vm364, %v2468, %v2482
      %2488 = vst [vmem:[#allocation3 + $0x40] sm:$0xff] %v2477
      %2489 = vst [vmem:[#allocation3 + $0x48] sm:$0xff] %v2479
      %2490 = vst [vmem:[#allocation3 + $0x50] sm:$0xff] %v2481
      %2491 = vst [vmem:[#allocation3 + $0x58] sm:$0xff] %v2483
      %v2492 = vld [vmem:[#allocation2] sm:$0xff]
      %v2493 = vld [vmem:[#allocation2 + $0x8] sm:$0xff]
      %v2494 = vld [vmem:[#allocation2 + $0x10] sm:$0xff]
      %v2495 = vld [vmem:[#allocation2 + $0x18] sm:$0xff]
      %v2496 = vld [vmem:[#allocation2 + $0x20] sm:$0xf]
      %2502 = vrot.lane.b32.xlu0 %v2492, 101
      %v2503 = vpop.permute.xlu0 %2502
      %2504 = vrot.lane.b32.xlu0 %v2493, 101
      %v2505 = vpop.permute.xlu0 %2504
      %2506 = vrot.lane.b32.xlu0 %v2494, 101
      %v2507 = vpop.permute.xlu0 %2506
      %2508 = vrot.lane.b32.xlu0 %v2495, 101
      %v2509 = vpop.permute.xlu0 %2508
      %2510 = vrot.lane.b32.xlu0 %v2496, 101
      %v2511 = vpop.permute.xlu0 %2510
      %v2512 = vrot.slane %v2503, 4
      %v2513 = vrot.slane %v2505, 4
      %v2514 = vrot.slane %v2507, 4
      %v2515 = vrot.slane %v2509, 4
      %v2516 = vrot.slane %v2511, 4
      %v2517 = vsel %vm278, %v2512, %v2513
      %v2518 = vsel %vm406, %v2503, %v2517
      %v2519 = vsel %vm278, %v2513, %v2514
      %v2520 = vsel %vm406, %v2505, %v2519
      %v2521 = vsel %vm278, %v2514, %v2515
      %v2522 = vsel %vm406, %v2507, %v2521
      %v2523 = vsel %vm278, %v2515, %v2516
      %v2524 = vsel %vm406, %v2509, %v2523
      %2529 = vst [vmem:[#allocation3 + $0x60] sm:$0xff] %v2518
      %2530 = vst [vmem:[#allocation3 + $0x68] sm:$0xff] %v2520
      %2531 = vst [vmem:[#allocation3 + $0x70] sm:$0xff] %v2522
      %2532 = vst [vmem:[#allocation3 + $0x78] sm:$0xff] %v2524
      %v2533 = vld [vmem:[#allocation2] sm:$0xff]
      %v2534 = vld [vmem:[#allocation2 + $0x8] sm:$0xff]
      %v2535 = vld [vmem:[#allocation2 + $0x10] sm:$0xff]
      %v2536 = vld [vmem:[#allocation2 + $0x18] sm:$0xff]
      %v2537 = vld [vmem:[#allocation2 + $0x20] sm:$0xf]
      %2543 = vrot.lane.b32.xlu0 %v2533, 100
      %v2544 = vpop.permute.xlu0 %2543
      %2545 = vrot.lane.b32.xlu0 %v2534, 100
      %v2546 = vpop.permute.xlu0 %2545
      %2547 = vrot.lane.b32.xlu0 %v2535, 100
      %v2548 = vpop.permute.xlu0 %2547
      %2549 = vrot.lane.b32.xlu0 %v2536, 100
      %v2550 = vpop.permute.xlu0 %2549
      %2551 = vrot.lane.b32.xlu0 %v2537, 100
      %v2552 = vpop.permute.xlu0 %2551
      %v2553 = vrot.slane %v2544, 4
      %v2554 = vrot.slane %v2546, 4
      %v2555 = vrot.slane %v2548, 4
      %v2556 = vrot.slane %v2550, 4
      %v2557 = vrot.slane %v2552, 4
      %v2558 = vsel %vm278, %v2553, %v2554
      %v2559 = vsel %vm448, %v2544, %v2558
      %v2560 = vsel %vm278, %v2554, %v2555
      %v2561 = vsel %vm448, %v2546, %v2560
      %v2562 = vsel %vm278, %v2555, %v2556
      %v2563 = vsel %vm448, %v2548, %v2562
      %v2564 = vsel %vm278, %v2556, %v2557
      %v2565 = vsel %vm448, %v2550, %v2564
      %2570 = vst [vmem:[#allocation3 + $0x80] sm:$0xff] %v2559
      %2571 = vst [vmem:[#allocation3 + $0x88] sm:$0xff] %v2561
      %2572 = vst [vmem:[#allocation3 + $0x90] sm:$0xff] %v2563
      %2573 = vst [vmem:[#allocation3 + $0x98] sm:$0xff] %v2565
      %v2574 = vld [vmem:[#allocation2] sm:$0xff]
      %v2575 = vld [vmem:[#allocation2 + $0x8] sm:$0xff]
      %v2576 = vld [vmem:[#allocation2 + $0x10] sm:$0xff]
      %v2577 = vld [vmem:[#allocation2 + $0x18] sm:$0xff]
      %v2578 = vld [vmem:[#allocation2 + $0x20] sm:$0xf]
      %2584 = vrot.lane.b32.xlu0 %v2574, 99
      %v2585 = vpop.permute.xlu0 %2584
      %2586 = vrot.lane.b32.xlu0 %v2575, 99
      %v2587 = vpop.permute.xlu0 %2586
      %2588 = vrot.lane.b32.xlu0 %v2576, 99
      %v2589 = vpop.permute.xlu0 %2588
      %2590 = vrot.lane.b32.xlu0 %v2577, 99
      %v2591 = vpop.permute.xlu0 %2590
      %2592 = vrot.lane.b32.xlu0 %v2578, 99
      %v2593 = vpop.permute.xlu0 %2592
      %v2594 = vrot.slane %v2585, 4
      %v2595 = vrot.slane %v2587, 4
      %v2596 = vrot.slane %v2589, 4
      %v2597 = vrot.slane %v2591, 4
      %v2598 = vrot.slane %v2593, 4
      %v2599 = vsel %vm278, %v2594, %v2595
      %v2600 = vsel %vm490, %v2585, %v2599
      %v2601 = vsel %vm278, %v2595, %v2596
      %v2602 = vsel %vm490, %v2587, %v2601
      %v2603 = vsel %vm278, %v2596, %v2597
      %v2604 = vsel %vm490, %v2589, %v2603
      %v2605 = vsel %vm278, %v2597, %v2598
      %v2606 = vsel %vm490, %v2591, %v2605
      %2611 = vst [vmem:[#allocation3 + $0xa0] sm:$0xff] %v2600
      %2612 = vst [vmem:[#allocation3 + $0xa8] sm:$0xff] %v2602
      %2613 = vst [vmem:[#allocation3 + $0xb0] sm:$0xff] %v2604
      %2614 = vst [vmem:[#allocation3 + $0xb8] sm:$0xff] %v2606
      %v2615 = vld [vmem:[#allocation2] sm:$0xff]
      %v2616 = vld [vmem:[#allocation2 + $0x8] sm:$0xff]
      %v2617 = vld [vmem:[#allocation2 + $0x10] sm:$0xff]
      %v2618 = vld [vmem:[#allocation2 + $0x18] sm:$0xff]
      %v2619 = vld [vmem:[#allocation2 + $0x20] sm:$0xf]
      %2625 = vrot.lane.b32.xlu0 %v2615, 91
      %v2626 = vpop.permute.xlu0 %2625
      %2627 = vrot.lane.b32.xlu0 %v2616, 91
      %v2628 = vpop.permute.xlu0 %2627
      %2629 = vrot.lane.b32.xlu0 %v2617, 91
      %v2630 = vpop.permute.xlu0 %2629
      %2631 = vrot.lane.b32.xlu0 %v2618, 91
      %v2632 = vpop.permute.xlu0 %2631
      %2633 = vrot.lane.b32.xlu0 %v2619, 91
      %v2634 = vpop.permute.xlu0 %2633
      %v2635 = vrot.slane %v2626, 4
      %v2636 = vrot.slane %v2628, 4
      %v2637 = vrot.slane %v2630, 4
      %v2638 = vrot.slane %v2632, 4
      %v2639 = vrot.slane %v2634, 4
      %v2640 = vsel %vm278, %v2635, %v2636
      %v2641 = vsel %vm532, %v2626, %v2640
      %v2642 = vsel %vm278, %v2636, %v2637
      %v2643 = vsel %vm532, %v2628, %v2642
      %v2644 = vsel %vm278, %v2637, %v2638
      %v2645 = vsel %vm532, %v2630, %v2644
      %v2646 = vsel %vm278, %v2638, %v2639
      %v2647 = vsel %vm532, %v2632, %v2646
      %2652 = vst [vmem:[#allocation3 + $0xc0] sm:$0xff] %v2641
      %2653 = vst [vmem:[#allocation3 + $0xc8] sm:$0xff] %v2643
      %2654 = vst [vmem:[#allocation3 + $0xd0] sm:$0xff] %v2645
      %2655 = vst [vmem:[#allocation3 + $0xd8] sm:$0xff] %v2647
      %v2656 = vld [vmem:[#allocation2] sm:$0xff]
      %v2657 = vld [vmem:[#allocation2 + $0x8] sm:$0xff]
      %v2658 = vld [vmem:[#allocation2 + $0x10] sm:$0xff]
      %v2659 = vld [vmem:[#allocation2 + $0x18] sm:$0xff]
      %v2660 = vld [vmem:[#allocation2 + $0x20] sm:$0xf]
      %2666 = vrot.lane.b32.xlu0 %v2656, 90
      %v2667 = vpop.permute.xlu0 %2666
      %2668 = vrot.lane.b32.xlu0 %v2657, 90
      %v2669 = vpop.permute.xlu0 %2668
      %2670 = vrot.lane.b32.xlu0 %v2658, 90
      %v2671 = vpop.permute.xlu0 %2670
      %2672 = vrot.lane.b32.xlu0 %v2659, 90
      %v2673 = vpop.permute.xlu0 %2672
      %2674 = vrot.lane.b32.xlu0 %v2660, 90
      %v2675 = vpop.permute.xlu0 %2674
      %v2676 = vrot.slane %v2667, 4
      %v2677 = vrot.slane %v2669, 4
      %v2678 = vrot.slane %v2671, 4
      %v2679 = vrot.slane %v2673, 4
      %v2680 = vrot.slane %v2675, 4
      %v2681 = vsel %vm278, %v2676, %v2677
      %v2682 = vsel %vm574, %v2667, %v2681
      %v2683 = vsel %vm278, %v2677, %v2678
      %v2684 = vsel %vm574, %v2669, %v2683
      %v2685 = vsel %vm278, %v2678, %v2679
      %v2686 = vsel %vm574, %v2671, %v2685
      %v2687 = vsel %vm278, %v2679, %v2680
      %v2688 = vsel %vm574, %v2673, %v2687
      %2693 = vst [vmem:[#allocation3 + $0xe0] sm:$0xff] %v2682
      %2694 = vst [vmem:[#allocation3 + $0xe8] sm:$0xff] %v2684
      %2695 = vst [vmem:[#allocation3 + $0xf0] sm:$0xff] %v2686
      %2696 = vst [vmem:[#allocation3 + $0xf8] sm:$0xff] %v2688
      %v2697 = vld [vmem:[#allocation2] sm:$0xff]
      %v2698 = vld [vmem:[#allocation2 + $0x8] sm:$0xff]
      %v2699 = vld [vmem:[#allocation2 + $0x10] sm:$0xff]
      %v2700 = vld [vmem:[#allocation2 + $0x18] sm:$0xff]
      %v2701 = vld [vmem:[#allocation2 + $0x20] sm:$0xf]
      %2707 = vrot.lane.b32.xlu0 %v2697, 89
      %v2708 = vpop.permute.xlu0 %2707
      %2709 = vrot.lane.b32.xlu0 %v2698, 89
      %v2710 = vpop.permute.xlu0 %2709
      %2711 = vrot.lane.b32.xlu0 %v2699, 89
      %v2712 = vpop.permute.xlu0 %2711
      %2713 = vrot.lane.b32.xlu0 %v2700, 89
      %v2714 = vpop.permute.xlu0 %2713
      %2715 = vrot.lane.b32.xlu0 %v2701, 89
      %v2716 = vpop.permute.xlu0 %2715
      %v2717 = vrot.slane %v2708, 4
      %v2718 = vrot.slane %v2710, 4
      %v2719 = vrot.slane %v2712, 4
      %v2720 = vrot.slane %v2714, 4
      %v2721 = vrot.slane %v2716, 4
      %v2722 = vsel %vm278, %v2717, %v2718
      %v2723 = vsel %vm616, %v2708, %v2722
      %v2724 = vsel %vm278, %v2718, %v2719
      %v2725 = vsel %vm616, %v2710, %v2724
      %v2726 = vsel %vm278, %v2719, %v2720
      %v2727 = vsel %vm616, %v2712, %v2726
      %v2728 = vsel %vm278, %v2720, %v2721
      %v2729 = vsel %vm616, %v2714, %v2728
      %2734 = vst [vmem:[#allocation3 + $0x100] sm:$0xff] %v2723
      %2735 = vst [vmem:[#allocation3 + $0x108] sm:$0xff] %v2725
      %2736 = vst [vmem:[#allocation3 + $0x110] sm:$0xff] %v2727
      %2737 = vst [vmem:[#allocation3 + $0x118] sm:$0xff] %v2729
      %v2738 = vld [vmem:[#allocation2] sm:$0xff]
      %v2739 = vld [vmem:[#allocation2 + $0x8] sm:$0xff]
      %v2740 = vld [vmem:[#allocation2 + $0x10] sm:$0xff]
      %v2741 = vld [vmem:[#allocation2 + $0x18] sm:$0xff]
      %v2742 = vld [vmem:[#allocation2 + $0x20] sm:$0xf]
      %2748 = vrot.lane.b32.xlu0 %v2738, 11
      %v2749 = vpop.permute.xlu0 %2748
      %2750 = vrot.lane.b32.xlu0 %v2739, 11
      %v2751 = vpop.permute.xlu0 %2750
      %2752 = vrot.lane.b32.xlu0 %v2740, 11
      %v2753 = vpop.permute.xlu0 %2752
      %2754 = vrot.lane.b32.xlu0 %v2741, 11
      %v2755 = vpop.permute.xlu0 %2754
      %2756 = vrot.lane.b32.xlu0 %v2742, 11
      %v2757 = vpop.permute.xlu0 %2756
      %v2758 = vrot.slane %v2749, 4
      %v2759 = vrot.slane %v2751, 4
      %v2760 = vrot.slane %v2753, 4
      %v2761 = vrot.slane %v2755, 4
      %v2762 = vrot.slane %v2757, 4
      %v2763 = vsel %vm278, %v2758, %v2759
      %v2764 = vsel %vm658, %v2749, %v2763
      %v2765 = vsel %vm278, %v2759, %v2760
      %v2766 = vsel %vm658, %v2751, %v2765
      %v2767 = vsel %vm278, %v2760, %v2761
      %v2768 = vsel %vm658, %v2753, %v2767
      %v2769 = vsel %vm278, %v2761, %v2762
      %v2770 = vsel %vm658, %v2755, %v2769
      %2775 = vst [vmem:[#allocation3 + $0x120] sm:$0xff] %v2764
      %2776 = vst [vmem:[#allocation3 + $0x128] sm:$0xff] %v2766
      %2777 = vst [vmem:[#allocation3 + $0x130] sm:$0xff] %v2768
      %2778 = vst [vmem:[#allocation3 + $0x138] sm:$0xff] %v2770
      %v2779 = vld [vmem:[#allocation2] sm:$0xff]
      %v2780 = vld [vmem:[#allocation2 + $0x8] sm:$0xff]
      %v2781 = vld [vmem:[#allocation2 + $0x10] sm:$0xff]
      %v2782 = vld [vmem:[#allocation2 + $0x18] sm:$0xff]
      %v2783 = vld [vmem:[#allocation2 + $0x20] sm:$0xf]
      %2789 = vrot.lane.b32.xlu0 %v2779, 10
      %v2790 = vpop.permute.xlu0 %2789
      %2791 = vrot.lane.b32.xlu0 %v2780, 10
      %v2792 = vpop.permute.xlu0 %2791
      %2793 = vrot.lane.b32.xlu0 %v2781, 10
      %v2794 = vpop.permute.xlu0 %2793
      %2795 = vrot.lane.b32.xlu0 %v2782, 10
      %v2796 = vpop.permute.xlu0 %2795
      %2797 = vrot.lane.b32.xlu0 %v2783, 10
      %v2798 = vpop.permute.xlu0 %2797
      %v2799 = vrot.slane %v2790, 4
      %v2800 = vrot.slane %v2792, 4
      %v2801 = vrot.slane %v2794, 4
      %v2802 = vrot.slane %v2796, 4
      %v2803 = vrot.slane %v2798, 4
      %v2804 = vsel %vm278, %v2799, %v2800
      %v2805 = vsel %vm700, %v2790, %v2804
      %v2806 = vsel %vm278, %v2800, %v2801
      %v2807 = vsel %vm700, %v2792, %v2806
      %v2808 = vsel %vm278, %v2801, %v2802
      %v2809 = vsel %vm700, %v2794, %v2808
      %v2810 = vsel %vm278, %v2802, %v2803
      %v2811 = vsel %vm700, %v2796, %v2810
      %2816 = vst [vmem:[#allocation3 + $0x140] sm:$0xff] %v2805
      %2817 = vst [vmem:[#allocation3 + $0x148] sm:$0xff] %v2807
      %2818 = vst [vmem:[#allocation3 + $0x150] sm:$0xff] %v2809
      %2819 = vst [vmem:[#allocation3 + $0x158] sm:$0xff] %v2811
      %v2820 = vld [vmem:[#allocation2] sm:$0xff]
      %v2821 = vld [vmem:[#allocation2 + $0x8] sm:$0xff]
      %v2822 = vld [vmem:[#allocation2 + $0x10] sm:$0xff]
      %v2823 = vld [vmem:[#allocation2 + $0x18] sm:$0xff]
      %v2824 = vld [vmem:[#allocation2 + $0x20] sm:$0xf]
      %2830 = vrot.lane.b32.xlu0 %v2820, 9
      %v2831 = vpop.permute.xlu0 %2830
      %2832 = vrot.lane.b32.xlu0 %v2821, 9
      %v2833 = vpop.permute.xlu0 %2832
      %2834 = vrot.lane.b32.xlu0 %v2822, 9
      %v2835 = vpop.permute.xlu0 %2834
      %2836 = vrot.lane.b32.xlu0 %v2823, 9
      %v2837 = vpop.permute.xlu0 %2836
      %2838 = vrot.lane.b32.xlu0 %v2824, 9
      %v2839 = vpop.permute.xlu0 %2838
      %v2840 = vrot.slane %v2831, 4
      %v2841 = vrot.slane %v2833, 4
      %v2842 = vrot.slane %v2835, 4
      %v2843 = vrot.slane %v2837, 4
      %v2844 = vrot.slane %v2839, 4
      %v2845 = vsel %vm278, %v2840, %v2841
      %v2846 = vsel %vm742, %v2831, %v2845
      %v2847 = vsel %vm278, %v2841, %v2842
      %v2848 = vsel %vm742, %v2833, %v2847
      %v2849 = vsel %vm278, %v2842, %v2843
      %v2850 = vsel %vm742, %v2835, %v2849
      %v2851 = vsel %vm278, %v2843, %v2844
      %v2852 = vsel %vm742, %v2837, %v2851
      %2857 = vst [vmem:[#allocation3 + $0x160] sm:$0xff] %v2846
      %2858 = vst [vmem:[#allocation3 + $0x168] sm:$0xff] %v2848
      %2859 = vst [vmem:[#allocation3 + $0x170] sm:$0xff] %v2850
      %2860 = vst [vmem:[#allocation3 + $0x178] sm:$0xff] %v2852
      %v2861 = vld [vmem:[#allocation2] sm:$0xff]
      %v2862 = vld [vmem:[#allocation2 + $0x8] sm:$0xff]
      %v2863 = vld [vmem:[#allocation2 + $0x10] sm:$0xff]
      %v2864 = vld [vmem:[#allocation2 + $0x18] sm:$0xff]
      %v2865 = vld [vmem:[#allocation2 + $0x20] sm:$0xf]
      %2871 = vrot.lane.b32.xlu0 %v2861, 1
      %v2872 = vpop.permute.xlu0 %2871
      %2873 = vrot.lane.b32.xlu0 %v2862, 1
      %v2874 = vpop.permute.xlu0 %2873
      %2875 = vrot.lane.b32.xlu0 %v2863, 1
      %v2876 = vpop.permute.xlu0 %2875
      %2877 = vrot.lane.b32.xlu0 %v2864, 1
      %v2878 = vpop.permute.xlu0 %2877
      %2879 = vrot.lane.b32.xlu0 %v2865, 1
      %v2880 = vpop.permute.xlu0 %2879
      %v2881 = vrot.slane %v2872, 4
      %v2882 = vrot.slane %v2874, 4
      %v2883 = vrot.slane %v2876, 4
      %v2884 = vrot.slane %v2878, 4
      %v2885 = vrot.slane %v2880, 4
      %v2886 = vsel %vm278, %v2881, %v2882
      %v2887 = vsel %vm784, %v2872, %v2886
      %v2888 = vsel %vm278, %v2882, %v2883
      %v2889 = vsel %vm784, %v2874, %v2888
      %v2890 = vsel %vm278, %v2883, %v2884
      %v2891 = vsel %vm784, %v2876, %v2890
      %v2892 = vsel %vm278, %v2884, %v2885
      %v2893 = vsel %vm784, %v2878, %v2892
      %2898 = vst [vmem:[#allocation3 + $0x180] sm:$0xff] %v2887
      %2899 = vst [vmem:[#allocation3 + $0x188] sm:$0xff] %v2889
      %2900 = vst [vmem:[#allocation3 + $0x190] sm:$0xff] %v2891
      %2901 = vst [vmem:[#allocation3 + $0x198] sm:$0xff] %v2893
      %v2902 = vld [vmem:[#allocation2 + $0x4] sm:$0xff]
      %v2903 = vld [vmem:[#allocation2 + $0xc] sm:$0xff]
      %v2904 = vld [vmem:[#allocation2 + $0x14] sm:$0xff]
      %v2905 = vld [vmem:[#allocation2 + $0x1c] sm:$0xff]
      %2906 = vst [vmem:[#allocation3 + $0x1a0] sm:$0xff] %v2902
      %2907 = vst [vmem:[#allocation3 + $0x1a8] sm:$0xff] %v2903
      %2908 = vst [vmem:[#allocation3 + $0x1b0] sm:$0xff] %v2904
      %2909 = vst [vmem:[#allocation3 + $0x1b8] sm:$0xff] %v2905
      %v2910 = vld [vmem:[#allocation2 + $0x4] sm:$0xff]
      %v2911 = vld [vmem:[#allocation2 + $0xc] sm:$0xff]
      %v2912 = vld [vmem:[#allocation2 + $0x14] sm:$0xff]
      %v2913 = vld [vmem:[#allocation2 + $0x1c] sm:$0xff]
      %v2914 = vld [vmem:[#allocation2 + $0x24] sm:$0xf]
      %2920 = vrot.lane.b32.xlu0 %v2910, 127
      %v2921 = vpop.permute.xlu0 %2920
      %2922 = vrot.lane.b32.xlu0 %v2911, 127
      %v2923 = vpop.permute.xlu0 %2922
      %2924 = vrot.lane.b32.xlu0 %v2912, 127
      %v2925 = vpop.permute.xlu0 %2924
      %2926 = vrot.lane.b32.xlu0 %v2913, 127
      %v2927 = vpop.permute.xlu0 %2926
      %2928 = vrot.lane.b32.xlu0 %v2914, 127
      %v2929 = vpop.permute.xlu0 %2928
      %v2930 = vrot.slane %v2921, 4
      %v2931 = vrot.slane %v2923, 4
      %v2932 = vrot.slane %v2925, 4
      %v2933 = vrot.slane %v2927, 4
      %v2934 = vrot.slane %v2929, 4
      %v2935 = vsel %vm278, %v2930, %v2931
      %v2936 = vsel %vm834, %v2921, %v2935
      %v2937 = vsel %vm278, %v2931, %v2932
      %v2938 = vsel %vm834, %v2923, %v2937
      %v2939 = vsel %vm278, %v2932, %v2933
      %v2940 = vsel %vm834, %v2925, %v2939
      %v2941 = vsel %vm278, %v2933, %v2934
      %v2942 = vsel %vm834, %v2927, %v2941
      %2947 = vst [vmem:[#allocation3 + $0x1c0] sm:$0xff] %v2936
      %2948 = vst [vmem:[#allocation3 + $0x1c8] sm:$0xff] %v2938
      %2949 = vst [vmem:[#allocation3 + $0x1d0] sm:$0xff] %v2940
      %2950 = vst [vmem:[#allocation3 + $0x1d8] sm:$0xff] %v2942
      %v2951 = vld [vmem:[#allocation2 + $0x4] sm:$0xff]
      %v2952 = vld [vmem:[#allocation2 + $0xc] sm:$0xff]
      %v2953 = vld [vmem:[#allocation2 + $0x14] sm:$0xff]
      %v2954 = vld [vmem:[#allocation2 + $0x1c] sm:$0xff]
      %v2955 = vld [vmem:[#allocation2 + $0x24] sm:$0xf]
      %2961 = vrot.lane.b32.xlu0 %v2951, 119
      %v2962 = vpop.permute.xlu0 %2961
      %2963 = vrot.lane.b32.xlu0 %v2952, 119
      %v2964 = vpop.permute.xlu0 %2963
      %2965 = vrot.lane.b32.xlu0 %v2953, 119
      %v2966 = vpop.permute.xlu0 %2965
      %2967 = vrot.lane.b32.xlu0 %v2954, 119
      %v2968 = vpop.permute.xlu0 %2967
      %2969 = vrot.lane.b32.xlu0 %v2955, 119
      %v2970 = vpop.permute.xlu0 %2969
      %v2971 = vrot.slane %v2962, 4
      %v2972 = vrot.slane %v2964, 4
      %v2973 = vrot.slane %v2966, 4
      %v2974 = vrot.slane %v2968, 4
      %v2975 = vrot.slane %v2970, 4
      %v2976 = vsel %vm278, %v2971, %v2972
      %v2977 = vsel %vm876, %v2962, %v2976
      %v2978 = vsel %vm278, %v2972, %v2973
      %v2979 = vsel %vm876, %v2964, %v2978
      %v2980 = vsel %vm278, %v2973, %v2974
      %v2981 = vsel %vm876, %v2966, %v2980
      %v2982 = vsel %vm278, %v2974, %v2975
      %v2983 = vsel %vm876, %v2968, %v2982
      %2988 = vst [vmem:[#allocation3 + $0x1e0] sm:$0xff] %v2977
      %2989 = vst [vmem:[#allocation3 + $0x1e8] sm:$0xff] %v2979
      %2990 = vst [vmem:[#allocation3 + $0x1f0] sm:$0xff] %v2981
      %2991 = vst [vmem:[#allocation3 + $0x1f8] sm:$0xff] %v2983
      %v2992 = vld [vmem:[#allocation2 + $0x4] sm:$0xff]
      %v2993 = vld [vmem:[#allocation2 + $0xc] sm:$0xff]
      %v2994 = vld [vmem:[#allocation2 + $0x14] sm:$0xff]
      %v2995 = vld [vmem:[#allocation2 + $0x1c] sm:$0xff]
      %v2996 = vld [vmem:[#allocation2 + $0x24] sm:$0xf]
      %3002 = vrot.lane.b32.xlu0 %v2992, 118
      %v3003 = vpop.permute.xlu0 %3002
      %3004 = vrot.lane.b32.xlu0 %v2993, 118
      %v3005 = vpop.permute.xlu0 %3004
      %3006 = vrot.lane.b32.xlu0 %v2994, 118
      %v3007 = vpop.permute.xlu0 %3006
      %3008 = vrot.lane.b32.xlu0 %v2995, 118
      %v3009 = vpop.permute.xlu0 %3008
      %3010 = vrot.lane.b32.xlu0 %v2996, 118
      %v3011 = vpop.permute.xlu0 %3010
      %v3012 = vrot.slane %v3003, 4
      %v3013 = vrot.slane %v3005, 4
      %v3014 = vrot.slane %v3007, 4
      %v3015 = vrot.slane %v3009, 4
      %v3016 = vrot.slane %v3011, 4
      %v3017 = vsel %vm278, %v3012, %v3013
      %v3018 = vsel %vm918, %v3003, %v3017
      %v3019 = vsel %vm278, %v3013, %v3014
      %v3020 = vsel %vm918, %v3005, %v3019
      %v3021 = vsel %vm278, %v3014, %v3015
      %v3022 = vsel %vm918, %v3007, %v3021
      %v3023 = vsel %vm278, %v3015, %v3016
      %v3024 = vsel %vm918, %v3009, %v3023
      %3029 = vst [vmem:[#allocation3 + $0x200] sm:$0xff] %v3018
      %3030 = vst [vmem:[#allocation3 + $0x208] sm:$0xff] %v3020
      %3031 = vst [vmem:[#allocation3 + $0x210] sm:$0xff] %v3022
      %3032 = vst [vmem:[#allocation3 + $0x218] sm:$0xff] %v3024
      %v3033 = vld [vmem:[#allocation2 + $0x4] sm:$0xff]
      %v3034 = vld [vmem:[#allocation2 + $0xc] sm:$0xff]
      %v3035 = vld [vmem:[#allocation2 + $0x14] sm:$0xff]
      %v3036 = vld [vmem:[#allocation2 + $0x1c] sm:$0xff]
      %v3037 = vld [vmem:[#allocation2 + $0x24] sm:$0xf]
      %3043 = vrot.lane.b32.xlu0 %v3033, 117
      %v3044 = vpop.permute.xlu0 %3043
      %3045 = vrot.lane.b32.xlu0 %v3034, 117
      %v3046 = vpop.permute.xlu0 %3045
      %3047 = vrot.lane.b32.xlu0 %v3035, 117
      %v3048 = vpop.permute.xlu0 %3047
      %3049 = vrot.lane.b32.xlu0 %v3036, 117
      %v3050 = vpop.permute.xlu0 %3049
      %3051 = vrot.lane.b32.xlu0 %v3037, 117
      %v3052 = vpop.permute.xlu0 %3051
      %v3053 = vrot.slane %v3044, 4
      %v3054 = vrot.slane %v3046, 4
      %v3055 = vrot.slane %v3048, 4
      %v3056 = vrot.slane %v3050, 4
      %v3057 = vrot.slane %v3052, 4
      %v3058 = vsel %vm278, %v3053, %v3054
      %v3059 = vsel %vm960, %v3044, %v3058
      %v3060 = vsel %vm278, %v3054, %v3055
      %v3061 = vsel %vm960, %v3046, %v3060
      %v3062 = vsel %vm278, %v3055, %v3056
      %v3063 = vsel %vm960, %v3048, %v3062
      %v3064 = vsel %vm278, %v3056, %v3057
      %v3065 = vsel %vm960, %v3050, %v3064
      %3070 = vst [vmem:[#allocation3 + $0x220] sm:$0xff] %v3059
      %3071 = vst [vmem:[#allocation3 + $0x228] sm:$0xff] %v3061
      %3072 = vst [vmem:[#allocation3 + $0x230] sm:$0xff] %v3063
      %3073 = vst [vmem:[#allocation3 + $0x238] sm:$0xff] %v3065
      %v3074 = vld [vmem:[#allocation2 + $0x4] sm:$0xff]
      %v3075 = vld [vmem:[#allocation2 + $0xc] sm:$0xff]
      %v3076 = vld [vmem:[#allocation2 + $0x14] sm:$0xff]
      %v3077 = vld [vmem:[#allocation2 + $0x1c] sm:$0xff]
      %v3078 = vld [vmem:[#allocation2 + $0x24] sm:$0xf]
      %3084 = vrot.lane.b32.xlu0 %v3074, 39
      %v3085 = vpop.permute.xlu0 %3084
      %3086 = vrot.lane.b32.xlu0 %v3075, 39
      %v3087 = vpop.permute.xlu0 %3086
      %3088 = vrot.lane.b32.xlu0 %v3076, 39
      %v3089 = vpop.permute.xlu0 %3088
      %3090 = vrot.lane.b32.xlu0 %v3077, 39
      %v3091 = vpop.permute.xlu0 %3090
      %3092 = vrot.lane.b32.xlu0 %v3078, 39
      %v3093 = vpop.permute.xlu0 %3092
      %v3094 = vrot.slane %v3085, 4
      %v3095 = vrot.slane %v3087, 4
      %v3096 = vrot.slane %v3089, 4
      %v3097 = vrot.slane %v3091, 4
      %v3098 = vrot.slane %v3093, 4
      %v3099 = vsel %vm278, %v3094, %v3095
      %v3100 = vsel %vm1002, %v3085, %v3099
      %v3101 = vsel %vm278, %v3095, %v3096
      %v3102 = vsel %vm1002, %v3087, %v3101
      %v3103 = vsel %vm278, %v3096, %v3097
      %v3104 = vsel %vm1002, %v3089, %v3103
      %v3105 = vsel %vm278, %v3097, %v3098
      %v3106 = vsel %vm1002, %v3091, %v3105
      %3111 = vst [vmem:[#allocation3 + $0x240] sm:$0xff] %v3100
      %3112 = vst [vmem:[#allocation3 + $0x248] sm:$0xff] %v3102
      %3113 = vst [vmem:[#allocation3 + $0x250] sm:$0xff] %v3104
      %3114 = vst [vmem:[#allocation3 + $0x258] sm:$0xff] %v3106
      %v3115 = vld [vmem:[#allocation2 + $0x4] sm:$0xff]
      %v3116 = vld [vmem:[#allocation2 + $0xc] sm:$0xff]
      %v3117 = vld [vmem:[#allocation2 + $0x14] sm:$0xff]
      %v3118 = vld [vmem:[#allocation2 + $0x1c] sm:$0xff]
      %v3119 = vld [vmem:[#allocation2 + $0x24] sm:$0xf]
      %3125 = vrot.lane.b32.xlu0 %v3115, 38
      %v3126 = vpop.permute.xlu0 %3125
      %3127 = vrot.lane.b32.xlu0 %v3116, 38
      %v3128 = vpop.permute.xlu0 %3127
      %3129 = vrot.lane.b32.xlu0 %v3117, 38
      %v3130 = vpop.permute.xlu0 %3129
      %3131 = vrot.lane.b32.xlu0 %v3118, 38
      %v3132 = vpop.permute.xlu0 %3131
      %3133 = vrot.lane.b32.xlu0 %v3119, 38
      %v3134 = vpop.permute.xlu0 %3133
      %v3135 = vrot.slane %v3126, 4
      %v3136 = vrot.slane %v3128, 4
      %v3137 = vrot.slane %v3130, 4
      %v3138 = vrot.slane %v3132, 4
      %v3139 = vrot.slane %v3134, 4
      %v3140 = vsel %vm278, %v3135, %v3136
      %v3141 = vsel %vm1044, %v3126, %v3140
      %v3142 = vsel %vm278, %v3136, %v3137
      %v3143 = vsel %vm1044, %v3128, %v3142
      %v3144 = vsel %vm278, %v3137, %v3138
      %v3145 = vsel %vm1044, %v3130, %v3144
      %v3146 = vsel %vm278, %v3138, %v3139
      %v3147 = vsel %vm1044, %v3132, %v3146
      %3152 = vst [vmem:[#allocation3 + $0x260] sm:$0xff] %v3141
      %3153 = vst [vmem:[#allocation3 + $0x268] sm:$0xff] %v3143
      %3154 = vst [vmem:[#allocation3 + $0x270] sm:$0xff] %v3145
      %3155 = vst [vmem:[#allocation3 + $0x278] sm:$0xff] %v3147
      %v3156 = vld [vmem:[#allocation2 + $0x4] sm:$0xff]
      %v3157 = vld [vmem:[#allocation2 + $0xc] sm:$0xff]
      %v3158 = vld [vmem:[#allocation2 + $0x14] sm:$0xff]
      %v3159 = vld [vmem:[#allocation2 + $0x1c] sm:$0xff]
      %v3160 = vld [vmem:[#allocation2 + $0x24] sm:$0xf]
      %3166 = vrot.lane.b32.xlu0 %v3156, 37
      %v3167 = vpop.permute.xlu0 %3166
      %3168 = vrot.lane.b32.xlu0 %v3157, 37
      %v3169 = vpop.permute.xlu0 %3168
      %3170 = vrot.lane.b32.xlu0 %v3158, 37
      %v3171 = vpop.permute.xlu0 %3170
      %3172 = vrot.lane.b32.xlu0 %v3159, 37
      %v3173 = vpop.permute.xlu0 %3172
      %3174 = vrot.lane.b32.xlu0 %v3160, 37
      %v3175 = vpop.permute.xlu0 %3174
      %v3176 = vrot.slane %v3167, 4
      %v3177 = vrot.slane %v3169, 4
      %v3178 = vrot.slane %v3171, 4
      %v3179 = vrot.slane %v3173, 4
      %v3180 = vrot.slane %v3175, 4
      %v3181 = vsel %vm278, %v3176, %v3177
      %v3182 = vsel %vm1086, %v3167, %v3181
      %v3183 = vsel %vm278, %v3177, %v3178
      %v3184 = vsel %vm1086, %v3169, %v3183
      %v3185 = vsel %vm278, %v3178, %v3179
      %v3186 = vsel %vm1086, %v3171, %v3185
      %v3187 = vsel %vm278, %v3179, %v3180
      %v3188 = vsel %vm1086, %v3173, %v3187
      %3193 = vst [vmem:[#allocation3 + $0x280] sm:$0xff] %v3182
      %3194 = vst [vmem:[#allocation3 + $0x288] sm:$0xff] %v3184
      %3195 = vst [vmem:[#allocation3 + $0x290] sm:$0xff] %v3186
      %3196 = vst [vmem:[#allocation3 + $0x298] sm:$0xff] %v3188
      %v3197 = vld [vmem:[#allocation2 + $0x4] sm:$0xff]
      %v3198 = vld [vmem:[#allocation2 + $0xc] sm:$0xff]
      %v3199 = vld [vmem:[#allocation2 + $0x14] sm:$0xff]
      %v3200 = vld [vmem:[#allocation2 + $0x1c] sm:$0xff]
      %v3201 = vld [vmem:[#allocation2 + $0x24] sm:$0xf]
      %3207 = vrot.lane.b32.xlu0 %v3197, 29
      %v3208 = vpop.permute.xlu0 %3207
      %3209 = vrot.lane.b32.xlu0 %v3198, 29
      %v3210 = vpop.permute.xlu0 %3209
      %3211 = vrot.lane.b32.xlu0 %v3199, 29
      %v3212 = vpop.permute.xlu0 %3211
      %3213 = vrot.lane.b32.xlu0 %v3200, 29
      %v3214 = vpop.permute.xlu0 %3213
      %3215 = vrot.lane.b32.xlu0 %v3201, 29
      %v3216 = vpop.permute.xlu0 %3215
      %v3217 = vrot.slane %v3208, 4
      %v3218 = vrot.slane %v3210, 4
      %v3219 = vrot.slane %v3212, 4
      %v3220 = vrot.slane %v3214, 4
      %v3221 = vrot.slane %v3216, 4
      %v3222 = vsel %vm278, %v3217, %v3218
      %v3223 = vsel %vm1128, %v3208, %v3222
      %v3224 = vsel %vm278, %v3218, %v3219
      %v3225 = vsel %vm1128, %v3210, %v3224
      %v3226 = vsel %vm278, %v3219, %v3220
      %v3227 = vsel %vm1128, %v3212, %v3226
      %v3228 = vsel %vm278, %v3220, %v3221
      %v3229 = vsel %vm1128, %v3214, %v3228
      %3234 = vst [vmem:[#allocation3 + $0x2a0] sm:$0xff] %v3223
      %3235 = vst [vmem:[#allocation3 + $0x2a8] sm:$0xff] %v3225
      %3236 = vst [vmem:[#allocation3 + $0x2b0] sm:$0xff] %v3227
      %3237 = vst [vmem:[#allocation3 + $0x2b8] sm:$0xff] %v3229
      %v3238 = vld [vmem:[#allocation2 + $0x4] sm:$0xff]
      %v3239 = vld [vmem:[#allocation2 + $0xc] sm:$0xff]
      %v3240 = vld [vmem:[#allocation2 + $0x14] sm:$0xff]
      %v3241 = vld [vmem:[#allocation2 + $0x1c] sm:$0xff]
      %v3242 = vld [vmem:[#allocation2 + $0x24] sm:$0xf]
      %3248 = vrot.lane.b32.xlu0 %v3238, 28
      %v3249 = vpop.permute.xlu0 %3248
      %3250 = vrot.lane.b32.xlu0 %v3239, 28
      %v3251 = vpop.permute.xlu0 %3250
      %3252 = vrot.lane.b32.xlu0 %v3240, 28
      %v3253 = vpop.permute.xlu0 %3252
      %3254 = vrot.lane.b32.xlu0 %v3241, 28
      %v3255 = vpop.permute.xlu0 %3254
      %3256 = vrot.lane.b32.xlu0 %v3242, 28
      %v3257 = vpop.permute.xlu0 %3256
      %v3258 = vrot.slane %v3249, 4
      %v3259 = vrot.slane %v3251, 4
      %v3260 = vrot.slane %v3253, 4
      %v3261 = vrot.slane %v3255, 4
      %v3262 = vrot.slane %v3257, 4
      %v3263 = vsel %vm278, %v3258, %v3259
      %v3264 = vsel %vm1170, %v3249, %v3263
      %v3265 = vsel %vm278, %v3259, %v3260
      %v3266 = vsel %vm1170, %v3251, %v3265
      %v3267 = vsel %vm278, %v3260, %v3261
      %v3268 = vsel %vm1170, %v3253, %v3267
      %v3269 = vsel %vm278, %v3261, %v3262
      %v3270 = vsel %vm1170, %v3255, %v3269
      %3275 = vst [vmem:[#allocation3 + $0x2c0] sm:$0xff] %v3264
      %3276 = vst [vmem:[#allocation3 + $0x2c8] sm:$0xff] %v3266
      %3277 = vst [vmem:[#allocation3 + $0x2d0] sm:$0xff] %v3268
      %3278 = vst [vmem:[#allocation3 + $0x2d8] sm:$0xff] %v3270
      %v3279 = vld [vmem:[#allocation2 + $0x4] sm:$0xff]
      %v3280 = vld [vmem:[#allocation2 + $0xc] sm:$0xff]
      %v3281 = vld [vmem:[#allocation2 + $0x14] sm:$0xff]
      %v3282 = vld [vmem:[#allocation2 + $0x1c] sm:$0xff]
      %v3283 = vld [vmem:[#allocation2 + $0x24] sm:$0xf]
      %3289 = vrot.lane.b32.xlu0 %v3279, 27
      %v3290 = vpop.permute.xlu0 %3289
      %3291 = vrot.lane.b32.xlu0 %v3280, 27
      %v3292 = vpop.permute.xlu0 %3291
      %3293 = vrot.lane.b32.xlu0 %v3281, 27
      %v3294 = vpop.permute.xlu0 %3293
      %3295 = vrot.lane.b32.xlu0 %v3282, 27
      %v3296 = vpop.permute.xlu0 %3295
      %3297 = vrot.lane.b32.xlu0 %v3283, 27
      %v3298 = vpop.permute.xlu0 %3297
      %v3299 = vrot.slane %v3290, 4
      %v3300 = vrot.slane %v3292, 4
      %v3301 = vrot.slane %v3294, 4
      %v3302 = vrot.slane %v3296, 4
      %v3303 = vrot.slane %v3298, 4
      %v3304 = vsel %vm278, %v3299, %v3300
      %v3305 = vsel %vm1212, %v3290, %v3304
      %v3306 = vsel %vm278, %v3300, %v3301
      %v3307 = vsel %vm1212, %v3292, %v3306
      %v3308 = vsel %vm278, %v3301, %v3302
      %v3309 = vsel %vm1212, %v3294, %v3308
      %v3310 = vsel %vm278, %v3302, %v3303
      %v3311 = vsel %vm1212, %v3296, %v3310
      %3316 = vst [vmem:[#allocation3 + $0x2e0] sm:$0xff] %v3305
      %3317 = vst [vmem:[#allocation3 + $0x2e8] sm:$0xff] %v3307
      %3318 = vst [vmem:[#allocation3 + $0x2f0] sm:$0xff] %v3309
      %3319 = vst [vmem:[#allocation3 + $0x2f8] sm:$0xff] %v3311
      %v3320 = vld [vmem:[#allocation2 + $0x4] sm:$0xff]
      %v3321 = vld [vmem:[#allocation2 + $0xc] sm:$0xff]
      %v3322 = vld [vmem:[#allocation2 + $0x14] sm:$0xff]
      %v3323 = vld [vmem:[#allocation2 + $0x1c] sm:$0xff]
      %v3324 = vld [vmem:[#allocation2 + $0x24] sm:$0xf]
      %3330 = vrot.lane.b32.xlu0 %v3320, 19
      %v3331 = vpop.permute.xlu0 %3330
      %3332 = vrot.lane.b32.xlu0 %v3321, 19
      %v3333 = vpop.permute.xlu0 %3332
      %3334 = vrot.lane.b32.xlu0 %v3322, 19
      %v3335 = vpop.permute.xlu0 %3334
      %3336 = vrot.lane.b32.xlu0 %v3323, 19
      %v3337 = vpop.permute.xlu0 %3336
      %3338 = vrot.lane.b32.xlu0 %v3324, 19
      %v3339 = vpop.permute.xlu0 %3338
      %v3340 = vrot.slane %v3331, 4
      %v3341 = vrot.slane %v3333, 4
      %v3342 = vrot.slane %v3335, 4
      %v3343 = vrot.slane %v3337, 4
      %v3344 = vrot.slane %v3339, 4
      %v3345 = vsel %vm278, %v3340, %v3341
      %v3346 = vsel %vm1254, %v3331, %v3345
      %v3347 = vsel %vm278, %v3341, %v3342
      %v3348 = vsel %vm1254, %v3333, %v3347
      %v3349 = vsel %vm278, %v3342, %v3343
      %v3350 = vsel %vm1254, %v3335, %v3349
      %v3351 = vsel %vm278, %v3343, %v3344
      %v3352 = vsel %vm1254, %v3337, %v3351
      %3357 = vst [vmem:[#allocation3 + $0x300] sm:$0xff] %v3346
      %3358 = vst [vmem:[#allocation3 + $0x308] sm:$0xff] %v3348
      %3359 = vst [vmem:[#allocation3 + $0x310] sm:$0xff] %v3350
      %3360 = vst [vmem:[#allocation3 + $0x318] sm:$0xff] %v3352
      %v3361 = vld [vmem:[#allocation2 + $0x4] sm:$0xff]
      %v3362 = vld [vmem:[#allocation2 + $0xc] sm:$0xff]
      %v3363 = vld [vmem:[#allocation2 + $0x14] sm:$0xff]
      %v3364 = vld [vmem:[#allocation2 + $0x1c] sm:$0xff]
      %v3365 = vld [vmem:[#allocation2 + $0x24] sm:$0xf]
      %3371 = vrot.lane.b32.xlu0 %v3361, 18
      %v3372 = vpop.permute.xlu0 %3371
      %3373 = vrot.lane.b32.xlu0 %v3362, 18
      %v3374 = vpop.permute.xlu0 %3373
      %3375 = vrot.lane.b32.xlu0 %v3363, 18
      %v3376 = vpop.permute.xlu0 %3375
      %3377 = vrot.lane.b32.xlu0 %v3364, 18
      %v3378 = vpop.permute.xlu0 %3377
      %3379 = vrot.lane.b32.xlu0 %v3365, 18
      %v3380 = vpop.permute.xlu0 %3379
      %v3381 = vrot.slane %v3372, 4
      %v3382 = vrot.slane %v3374, 4
      %v3383 = vrot.slane %v3376, 4
      %v3384 = vrot.slane %v3378, 4
      %v3385 = vrot.slane %v3380, 4
      %v3386 = vsel %vm278, %v3381, %v3382
      %v3387 = vsel %vm1296, %v3372, %v3386
      %v3388 = vsel %vm278, %v3382, %v3383
      %v3389 = vsel %vm1296, %v3374, %v3388
      %v3390 = vsel %vm278, %v3383, %v3384
      %v3391 = vsel %vm1296, %v3376, %v3390
      %v3392 = vsel %vm278, %v3384, %v3385
      %v3393 = vsel %vm1296, %v3378, %v3392
      %3398 = vst [vmem:[#allocation3 + $0x320] sm:$0xff] %v3387
      %3399 = vst [vmem:[#allocation3 + $0x328] sm:$0xff] %v3389
      %3400 = vst [vmem:[#allocation3 + $0x330] sm:$0xff] %v3391
      %3401 = vst [vmem:[#allocation3 + $0x338] sm:$0xff] %v3393
      %v3402 = vld [vmem:[#allocation2 + $0x4] sm:$0xff]
      %v3403 = vld [vmem:[#allocation2 + $0xc] sm:$0xff]
      %v3404 = vld [vmem:[#allocation2 + $0x14] sm:$0xff]
      %v3405 = vld [vmem:[#allocation2 + $0x1c] sm:$0xff]
      %v3406 = vld [vmem:[#allocation2 + $0x24] sm:$0xf]
      %3412 = vrot.lane.b32.xlu0 %v3402, 17
      %v3413 = vpop.permute.xlu0 %3412
      %3414 = vrot.lane.b32.xlu0 %v3403, 17
      %v3415 = vpop.permute.xlu0 %3414
      %3416 = vrot.lane.b32.xlu0 %v3404, 17
      %v3417 = vpop.permute.xlu0 %3416
      %3418 = vrot.lane.b32.xlu0 %v3405, 17
      %v3419 = vpop.permute.xlu0 %3418
      %3420 = vrot.lane.b32.xlu0 %v3406, 17
      %v3421 = vpop.permute.xlu0 %3420
      %v3422 = vrot.slane %v3413, 4
      %v3423 = vrot.slane %v3415, 4
      %v3424 = vrot.slane %v3417, 4
      %v3425 = vrot.slane %v3419, 4
      %v3426 = vrot.slane %v3421, 4
      %v3427 = vsel %vm278, %v3422, %v3423
      %v3428 = vsel %vm1338, %v3413, %v3427
      %v3429 = vsel %vm278, %v3423, %v3424
      %v3430 = vsel %vm1338, %v3415, %v3429
      %v3431 = vsel %vm278, %v3424, %v3425
      %v3432 = vsel %vm1338, %v3417, %v3431
      %v3433 = vsel %vm278, %v3425, %v3426
      %v3434 = vsel %vm1338, %v3419, %v3433
      %3439 = vst [vmem:[#allocation3 + $0x340] sm:$0xff] %v3428
      %3440 = vst [vmem:[#allocation3 + $0x348] sm:$0xff] %v3430
      %3441 = vst [vmem:[#allocation3 + $0x350] sm:$0xff] %v3432
      %3442 = vst [vmem:[#allocation3 + $0x358] sm:$0xff] %v3434
      %v3443 = vld [vmem:[%s246 + $0x4] sm:$0xff]
      %v3444 = vld [vmem:[%s246 + $0xc] sm:$0xff]
      %v3445 = vld [vmem:[%s246 + $0x14] sm:$0xff]
      %v3446 = vld [vmem:[%s246 + $0x1c] sm:$0xff]
      %3447 = vst [vmem:[#allocation3 + $0x360] sm:$0xff] %v3443
      %3448 = vst [vmem:[#allocation3 + $0x368] sm:$0xff] %v3444
      %3449 = vst [vmem:[#allocation3 + $0x370] sm:$0xff] %v3445
      %3450 = vst [vmem:[#allocation3 + $0x378] sm:$0xff] %v3446
      %v3451 = vld [vmem:[%s2] sm:$0xff]
      %v3452 = vld [vmem:[#allocation3] sm:$0xff]
      %v3453 = vld [vmem:[#allocation3 + $0x8] sm:$0xff]
      %v3454 = vld [vmem:[#allocation3 + $0x10] sm:$0xff]
      %v3455 = vld [vmem:[#allocation3 + $0x18] sm:$0xff]
      %v3456 = vld [vmem:[#allocation3 + $0x20] sm:$0xff]
      %v3457 = vld [vmem:[#allocation3 + $0x28] sm:$0xff]
      %v3458 = vld [vmem:[#allocation3 + $0x30] sm:$0xff]
      %v3459 = vld [vmem:[#allocation3 + $0x38] sm:$0xff]
      %v3460 = vld [vmem:[#allocation3 + $0x40] sm:$0xff]
      %v3461 = vld [vmem:[#allocation3 + $0x48] sm:$0xff]
      %v3462 = vld [vmem:[#allocation3 + $0x50] sm:$0xff]
      %v3463 = vld [vmem:[#allocation3 + $0x58] sm:$0xff]
      %v3464 = vld [vmem:[#allocation3 + $0x60] sm:$0xff]
      %v3465 = vld [vmem:[#allocation3 + $0x68] sm:$0xff]
      %v3466 = vld [vmem:[#allocation3 + $0x70] sm:$0xff]
      %v3467 = vld [vmem:[#allocation3 + $0x78] sm:$0xff]
      %v3468 = vld [vmem:[#allocation3 + $0x80] sm:$0xff]
      %v3469 = vld [vmem:[#allocation3 + $0x88] sm:$0xff]
      %v3470 = vld [vmem:[#allocation3 + $0x90] sm:$0xff]
      %v3471 = vld [vmem:[#allocation3 + $0x98] sm:$0xff]
      %v3472 = vld [vmem:[#allocation3 + $0xa0] sm:$0xff]
      %v3473 = vld [vmem:[#allocation3 + $0xa8] sm:$0xff]
      %v3474 = vld [vmem:[#allocation3 + $0xb0] sm:$0xff]
      %v3475 = vld [vmem:[#allocation3 + $0xb8] sm:$0xff]
      %v3476 = vld [vmem:[#allocation3 + $0xc0] sm:$0xff]
      %v3477 = vld [vmem:[#allocation3 + $0xc8] sm:$0xff]
      %v3478 = vld [vmem:[#allocation3 + $0xd0] sm:$0xff]
      %v3479 = vld [vmem:[#allocation3 + $0xd8] sm:$0xff]
      %v3480 = vld [vmem:[#allocation3 + $0xe0] sm:$0xff]
      %v3481 = vld [vmem:[#allocation3 + $0xe8] sm:$0xff]
      %v3482 = vld [vmem:[#allocation3 + $0xf0] sm:$0xff]
      %v3483 = vld [vmem:[#allocation3 + $0xf8] sm:$0xff]
      %v3484 = vld [vmem:[#allocation3 + $0x100] sm:$0xff]
      %v3485 = vld [vmem:[#allocation3 + $0x108] sm:$0xff]
      %v3486 = vld [vmem:[#allocation3 + $0x110] sm:$0xff]
      %v3487 = vld [vmem:[#allocation3 + $0x118] sm:$0xff]
      %v3488 = vld [vmem:[#allocation3 + $0x120] sm:$0xff]
      %v3489 = vld [vmem:[#allocation3 + $0x128] sm:$0xff]
      %v3490 = vld [vmem:[#allocation3 + $0x130] sm:$0xff]
      %v3491 = vld [vmem:[#allocation3 + $0x138] sm:$0xff]
      %v3492 = vld [vmem:[#allocation3 + $0x140] sm:$0xff]
      %v3493 = vld [vmem:[#allocation3 + $0x148] sm:$0xff]
      %v3494 = vld [vmem:[#allocation3 + $0x150] sm:$0xff]
      %v3495 = vld [vmem:[#allocation3 + $0x158] sm:$0xff]
      %v3496 = vld [vmem:[#allocation3 + $0x160] sm:$0xff]
      %v3497 = vld [vmem:[#allocation3 + $0x168] sm:$0xff]
      %v3498 = vld [vmem:[#allocation3 + $0x170] sm:$0xff]
      %v3499 = vld [vmem:[#allocation3 + $0x178] sm:$0xff]
      %v3500 = vld [vmem:[#allocation3 + $0x180] sm:$0xff]
      %v3501 = vld [vmem:[#allocation3 + $0x188] sm:$0xff]
      %v3502 = vld [vmem:[#allocation3 + $0x190] sm:$0xff]
      %v3503 = vld [vmem:[#allocation3 + $0x198] sm:$0xff]
      %v3504 = vld [vmem:[#allocation3 + $0x1a0] sm:$0xff]
      %v3505 = vld [vmem:[#allocation3 + $0x1a8] sm:$0xff]
      %v3506 = vld [vmem:[#allocation3 + $0x1b0] sm:$0xff]
      %v3507 = vld [vmem:[#allocation3 + $0x1b8] sm:$0xff]
      %v3508 = vld [vmem:[#allocation3 + $0x1c0] sm:$0xff]
      %v3509 = vld [vmem:[#allocation3 + $0x1c8] sm:$0xff]
      %v3510 = vld [vmem:[#allocation3 + $0x1d0] sm:$0xff]
      %v3511 = vld [vmem:[#allocation3 + $0x1d8] sm:$0xff]
      %v3512 = vld [vmem:[#allocation3 + $0x1e0] sm:$0xff]
      %v3513 = vld [vmem:[#allocation3 + $0x1e8] sm:$0xff]
      %v3514 = vld [vmem:[#allocation3 + $0x1f0] sm:$0xff]
      %v3515 = vld [vmem:[#allocation3 + $0x1f8] sm:$0xff]
      %v3516 = vld [vmem:[#allocation3 + $0x200] sm:$0xff]
      %v3517 = vld [vmem:[#allocation3 + $0x208] sm:$0xff]
      %v3518 = vld [vmem:[#allocation3 + $0x210] sm:$0xff]
      %v3519 = vld [vmem:[#allocation3 + $0x218] sm:$0xff]
      %v3520 = vld [vmem:[#allocation3 + $0x220] sm:$0xff]
      %v3521 = vld [vmem:[#allocation3 + $0x228] sm:$0xff]
      %v3522 = vld [vmem:[#allocation3 + $0x230] sm:$0xff]
      %v3523 = vld [vmem:[#allocation3 + $0x238] sm:$0xff]
      %v3524 = vld [vmem:[#allocation3 + $0x240] sm:$0xff]
      %v3525 = vld [vmem:[#allocation3 + $0x248] sm:$0xff]
      %v3526 = vld [vmem:[#allocation3 + $0x250] sm:$0xff]
      %v3527 = vld [vmem:[#allocation3 + $0x258] sm:$0xff]
      %v3528 = vld [vmem:[#allocation3 + $0x260] sm:$0xff]
      %v3529 = vld [vmem:[#allocation3 + $0x268] sm:$0xff]
      %v3530 = vld [vmem:[#allocation3 + $0x270] sm:$0xff]
      %v3531 = vld [vmem:[#allocation3 + $0x278] sm:$0xff]
      %v3532 = vld [vmem:[#allocation3 + $0x280] sm:$0xff]
      %v3533 = vld [vmem:[#allocation3 + $0x288] sm:$0xff]
      %v3534 = vld [vmem:[#allocation3 + $0x290] sm:$0xff]
      %v3535 = vld [vmem:[#allocation3 + $0x298] sm:$0xff]
      %v3536 = vld [vmem:[#allocation3 + $0x2a0] sm:$0xff]
      %v3537 = vld [vmem:[#allocation3 + $0x2a8] sm:$0xff]
      %v3538 = vld [vmem:[#allocation3 + $0x2b0] sm:$0xff]
      %v3539 = vld [vmem:[#allocation3 + $0x2b8] sm:$0xff]
      %v3540 = vld [vmem:[#allocation3 + $0x2c0] sm:$0xff]
      %v3541 = vld [vmem:[#allocation3 + $0x2c8] sm:$0xff]
      %v3542 = vld [vmem:[#allocation3 + $0x2d0] sm:$0xff]
      %v3543 = vld [vmem:[#allocation3 + $0x2d8] sm:$0xff]
      %v3544 = vld [vmem:[#allocation3 + $0x2e0] sm:$0xff]
      %v3545 = vld [vmem:[#allocation3 + $0x2e8] sm:$0xff]
      %v3546 = vld [vmem:[#allocation3 + $0x2f0] sm:$0xff]
      %v3547 = vld [vmem:[#allocation3 + $0x2f8] sm:$0xff]
      %v3548 = vld [vmem:[#allocation3 + $0x300] sm:$0xff]
      %v3549 = vld [vmem:[#allocation3 + $0x308] sm:$0xff]
      %v3550 = vld [vmem:[#allocation3 + $0x310] sm:$0xff]
      %v3551 = vld [vmem:[#allocation3 + $0x318] sm:$0xff]
      %v3552 = vld [vmem:[#allocation3 + $0x320] sm:$0xff]
      %v3553 = vld [vmem:[#allocation3 + $0x328] sm:$0xff]
      %v3554 = vld [vmem:[#allocation3 + $0x330] sm:$0xff]
      %v3555 = vld [vmem:[#allocation3 + $0x338] sm:$0xff]
      %v3556 = vld [vmem:[#allocation3 + $0x340] sm:$0xff]
      %v3557 = vld [vmem:[#allocation3 + $0x348] sm:$0xff]
      %v3558 = vld [vmem:[#allocation3 + $0x350] sm:$0xff]
      %v3559 = vld [vmem:[#allocation3 + $0x358] sm:$0xff]
      %v3560 = vld [vmem:[#allocation3 + $0x360] sm:$0xff]
      %v3561 = vld [vmem:[#allocation3 + $0x368] sm:$0xff]
      %v3562 = vld [vmem:[#allocation3 + $0x370] sm:$0xff]
      %v3563 = vld [vmem:[#allocation3 + $0x378] sm:$0xff]
      %v3564 = vld [vmem:[%s4] sm:$0xff]
      %3566 = vset.pattern.permute.xlu0 0
      %3567 = vperm.xlu0 %3566, %v3564
      %v3568 = vpop.permute.xlu0 %3567
      %v3571 = vunpack.c.l.b16 %v3451
      %v3572 = vunpack.c.h.b16 %v3451
      %v3573 = vpack.c.b16 %v3571, %v3571
      %v3574 = vpack.c.b16 %v3572, %v3572
      %v3688 = vunpack.c.l.b16 %v3452
      %v3689 = vunpack.c.h.b16 %v3452
      %v3690 = vunpack.c.l.b16 %v3453
      %v3691 = vunpack.c.h.b16 %v3453
      %v3692 = vunpack.c.l.b16 %v3454
      %v3693 = vunpack.c.h.b16 %v3454
      %v3694 = vunpack.c.l.b16 %v3455
      %v3695 = vunpack.c.h.b16 %v3455
      %v3696 = vunpack.c.l.b16 %v3456
      %v3697 = vunpack.c.h.b16 %v3456
      %v3698 = vunpack.c.l.b16 %v3457
      %v3699 = vunpack.c.h.b16 %v3457
      %v3700 = vunpack.c.l.b16 %v3458
      %v3701 = vunpack.c.h.b16 %v3458
      %v3702 = vunpack.c.l.b16 %v3459
      %v3703 = vunpack.c.h.b16 %v3459
      %v3704 = vunpack.c.l.b16 %v3460
      %v3705 = vunpack.c.h.b16 %v3460
      %v3706 = vunpack.c.l.b16 %v3461
      %v3707 = vunpack.c.h.b16 %v3461
      %v3708 = vunpack.c.l.b16 %v3462
      %v3709 = vunpack.c.h.b16 %v3462
      %v3710 = vunpack.c.l.b16 %v3463
      %v3711 = vunpack.c.h.b16 %v3463
      %v3712 = vunpack.c.l.b16 %v3464
      %v3713 = vunpack.c.h.b16 %v3464
      %v3714 = vunpack.c.l.b16 %v3465
      %v3715 = vunpack.c.h.b16 %v3465
      %v3716 = vunpack.c.l.b16 %v3466
      %v3717 = vunpack.c.h.b16 %v3466
      %v3718 = vunpack.c.l.b16 %v3467
      %v3719 = vunpack.c.h.b16 %v3467
      %v3720 = vunpack.c.l.b16 %v3468
      %v3721 = vunpack.c.h.b16 %v3468
      %v3722 = vunpack.c.l.b16 %v3469
      %v3723 = vunpack.c.h.b16 %v3469
      %v3724 = vunpack.c.l.b16 %v3470
      %v3725 = vunpack.c.h.b16 %v3470
      %v3726 = vunpack.c.l.b16 %v3471
      %v3727 = vunpack.c.h.b16 %v3471
      %v3728 = vunpack.c.l.b16 %v3472
      %v3729 = vunpack.c.h.b16 %v3472
      %v3730 = vunpack.c.l.b16 %v3473
      %v3731 = vunpack.c.h.b16 %v3473
      %v3732 = vunpack.c.l.b16 %v3474
      %v3733 = vunpack.c.h.b16 %v3474
      %v3734 = vunpack.c.l.b16 %v3475
      %v3735 = vunpack.c.h.b16 %v3475
      %v3736 = vunpack.c.l.b16 %v3476
      %v3737 = vunpack.c.h.b16 %v3476
      %v3738 = vunpack.c.l.b16 %v3477
      %v3739 = vunpack.c.h.b16 %v3477
      %v3740 = vunpack.c.l.b16 %v3478
      %v3741 = vunpack.c.h.b16 %v3478
      %v3742 = vunpack.c.l.b16 %v3479
      %v3743 = vunpack.c.h.b16 %v3479
      %v3744 = vunpack.c.l.b16 %v3480
      %v3745 = vunpack.c.h.b16 %v3480
      %v3746 = vunpack.c.l.b16 %v3481
      %v3747 = vunpack.c.h.b16 %v3481
      %v3748 = vunpack.c.l.b16 %v3482
      %v3749 = vunpack.c.h.b16 %v3482
      %v3750 = vunpack.c.l.b16 %v3483
      %v3751 = vunpack.c.h.b16 %v3483
      %v3752 = vunpack.c.l.b16 %v3484
      %v3753 = vunpack.c.h.b16 %v3484
      %v3754 = vunpack.c.l.b16 %v3485
      %v3755 = vunpack.c.h.b16 %v3485
      %v3756 = vunpack.c.l.b16 %v3486
      %v3757 = vunpack.c.h.b16 %v3486
      %v3758 = vunpack.c.l.b16 %v3487
      %v3759 = vunpack.c.h.b16 %v3487
      %v3760 = vunpack.c.l.b16 %v3488
      %v3761 = vunpack.c.h.b16 %v3488
      %v3762 = vunpack.c.l.b16 %v3489
      %v3763 = vunpack.c.h.b16 %v3489
      %v3764 = vunpack.c.l.b16 %v3490
      %v3765 = vunpack.c.h.b16 %v3490
      %v3766 = vunpack.c.l.b16 %v3491
      %v3767 = vunpack.c.h.b16 %v3491
      %v3768 = vunpack.c.l.b16 %v3492
      %v3769 = vunpack.c.h.b16 %v3492
      %v3770 = vunpack.c.l.b16 %v3493
      %v3771 = vunpack.c.h.b16 %v3493
      %v3772 = vunpack.c.l.b16 %v3494
      %v3773 = vunpack.c.h.b16 %v3494
      %v3774 = vunpack.c.l.b16 %v3495
      %v3775 = vunpack.c.h.b16 %v3495
      %v3776 = vunpack.c.l.b16 %v3496
      %v3777 = vunpack.c.h.b16 %v3496
      %v3778 = vunpack.c.l.b16 %v3497
      %v3779 = vunpack.c.h.b16 %v3497
      %v3780 = vunpack.c.l.b16 %v3498
      %v3781 = vunpack.c.h.b16 %v3498
      %v3782 = vunpack.c.l.b16 %v3499
      %v3783 = vunpack.c.h.b16 %v3499
      %v3784 = vunpack.c.l.b16 %v3500
      %v3785 = vunpack.c.h.b16 %v3500
      %v3786 = vunpack.c.l.b16 %v3501
      %v3787 = vunpack.c.h.b16 %v3501
      %v3788 = vunpack.c.l.b16 %v3502
      %v3789 = vunpack.c.h.b16 %v3502
      %v3790 = vunpack.c.l.b16 %v3503
      %v3791 = vunpack.c.h.b16 %v3503
      %v3792 = vunpack.c.l.b16 %v3504
      %v3793 = vunpack.c.h.b16 %v3504
      %v3794 = vunpack.c.l.b16 %v3505
      %v3795 = vunpack.c.h.b16 %v3505
      %v3796 = vunpack.c.l.b16 %v3506
      %v3797 = vunpack.c.h.b16 %v3506
      %v3798 = vunpack.c.l.b16 %v3507
      %v3799 = vunpack.c.h.b16 %v3507
      %v3800 = vunpack.c.l.b16 %v3508
      %v3801 = vunpack.c.h.b16 %v3508
      %v3802 = vunpack.c.l.b16 %v3509
      %v3803 = vunpack.c.h.b16 %v3509
      %v3804 = vunpack.c.l.b16 %v3510
      %v3805 = vunpack.c.h.b16 %v3510
      %v3806 = vunpack.c.l.b16 %v3511
      %v3807 = vunpack.c.h.b16 %v3511
      %v3808 = vunpack.c.l.b16 %v3512
      %v3809 = vunpack.c.h.b16 %v3512
      %v3810 = vunpack.c.l.b16 %v3513
      %v3811 = vunpack.c.h.b16 %v3513
      %v3812 = vunpack.c.l.b16 %v3514
      %v3813 = vunpack.c.h.b16 %v3514
      %v3814 = vunpack.c.l.b16 %v3515
      %v3815 = vunpack.c.h.b16 %v3515
      %v3816 = vunpack.c.l.b16 %v3516
      %v3817 = vunpack.c.h.b16 %v3516
      %v3818 = vunpack.c.l.b16 %v3517
      %v3819 = vunpack.c.h.b16 %v3517
      %v3820 = vunpack.c.l.b16 %v3518
      %v3821 = vunpack.c.h.b16 %v3518
      %v3822 = vunpack.c.l.b16 %v3519
      %v3823 = vunpack.c.h.b16 %v3519
      %v3824 = vunpack.c.l.b16 %v3520
      %v3825 = vunpack.c.h.b16 %v3520
      %v3826 = vunpack.c.l.b16 %v3521
      %v3827 = vunpack.c.h.b16 %v3521
      %v3828 = vunpack.c.l.b16 %v3522
      %v3829 = vunpack.c.h.b16 %v3522
      %v3830 = vunpack.c.l.b16 %v3523
      %v3831 = vunpack.c.h.b16 %v3523
      %v3832 = vunpack.c.l.b16 %v3524
      %v3833 = vunpack.c.h.b16 %v3524
      %v3834 = vunpack.c.l.b16 %v3525
      %v3835 = vunpack.c.h.b16 %v3525
      %v3836 = vunpack.c.l.b16 %v3526
      %v3837 = vunpack.c.h.b16 %v3526
      %v3838 = vunpack.c.l.b16 %v3527
      %v3839 = vunpack.c.h.b16 %v3527
      %v3840 = vunpack.c.l.b16 %v3528
      %v3841 = vunpack.c.h.b16 %v3528
      %v3842 = vunpack.c.l.b16 %v3529
      %v3843 = vunpack.c.h.b16 %v3529
      %v3844 = vunpack.c.l.b16 %v3530
      %v3845 = vunpack.c.h.b16 %v3530
      %v3846 = vunpack.c.l.b16 %v3531
      %v3847 = vunpack.c.h.b16 %v3531
      %v3848 = vunpack.c.l.b16 %v3532
      %v3849 = vunpack.c.h.b16 %v3532
      %v3850 = vunpack.c.l.b16 %v3533
      %v3851 = vunpack.c.h.b16 %v3533
      %v3852 = vunpack.c.l.b16 %v3534
      %v3853 = vunpack.c.h.b16 %v3534
      %v3854 = vunpack.c.l.b16 %v3535
      %v3855 = vunpack.c.h.b16 %v3535
      %v3856 = vunpack.c.l.b16 %v3536
      %v3857 = vunpack.c.h.b16 %v3536
      %v3858 = vunpack.c.l.b16 %v3537
      %v3859 = vunpack.c.h.b16 %v3537
      %v3860 = vunpack.c.l.b16 %v3538
      %v3861 = vunpack.c.h.b16 %v3538
      %v3862 = vunpack.c.l.b16 %v3539
      %v3863 = vunpack.c.h.b16 %v3539
      %v3864 = vunpack.c.l.b16 %v3540
      %v3865 = vunpack.c.h.b16 %v3540
      %v3866 = vunpack.c.l.b16 %v3541
      %v3867 = vunpack.c.h.b16 %v3541
      %v3868 = vunpack.c.l.b16 %v3542
      %v3869 = vunpack.c.h.b16 %v3542
      %v3870 = vunpack.c.l.b16 %v3543
      %v3871 = vunpack.c.h.b16 %v3543
      %v3872 = vunpack.c.l.b16 %v3544
      %v3873 = vunpack.c.h.b16 %v3544
      %v3874 = vunpack.c.l.b16 %v3545
      %v3875 = vunpack.c.h.b16 %v3545
      %v3876 = vunpack.c.l.b16 %v3546
      %v3877 = vunpack.c.h.b16 %v3546
      %v3878 = vunpack.c.l.b16 %v3547
      %v3879 = vunpack.c.h.b16 %v3547
      %v3880 = vunpack.c.l.b16 %v3548
      %v3881 = vunpack.c.h.b16 %v3548
      %v3882 = vunpack.c.l.b16 %v3549
      %v3883 = vunpack.c.h.b16 %v3549
      %v3884 = vunpack.c.l.b16 %v3550
      %v3885 = vunpack.c.h.b16 %v3550
      %v3886 = vunpack.c.l.b16 %v3551
      %v3887 = vunpack.c.h.b16 %v3551
      %v3888 = vunpack.c.l.b16 %v3552
      %v3889 = vunpack.c.h.b16 %v3552
      %v3890 = vunpack.c.l.b16 %v3553
      %v3891 = vunpack.c.h.b16 %v3553
      %v3892 = vunpack.c.l.b16 %v3554
      %v3893 = vunpack.c.h.b16 %v3554
      %v3894 = vunpack.c.l.b16 %v3555
      %v3895 = vunpack.c.h.b16 %v3555
      %v3896 = vunpack.c.l.b16 %v3556
      %v3897 = vunpack.c.h.b16 %v3556
      %v3898 = vunpack.c.l.b16 %v3557
      %v3899 = vunpack.c.h.b16 %v3557
      %v3900 = vunpack.c.l.b16 %v3558
      %v3901 = vunpack.c.h.b16 %v3558
      %v3902 = vunpack.c.l.b16 %v3559
      %v3903 = vunpack.c.h.b16 %v3559
      %v3904 = vunpack.c.l.b16 %v3560
      %v3905 = vunpack.c.h.b16 %v3560
      %v3906 = vunpack.c.l.b16 %v3561
      %v3907 = vunpack.c.h.b16 %v3561
      %v3908 = vunpack.c.l.b16 %v3562
      %v3909 = vunpack.c.h.b16 %v3562
      %v3910 = vunpack.c.l.b16 %v3563
      %v3911 = vunpack.c.h.b16 %v3563
      %v3912 = vpack.c.b16 %v3696, %v3688
      %v3913 = vpack.c.b16 %v3697, %v3689
      %v3914 = vpack.c.b16 %v3698, %v3690
      %v3915 = vpack.c.b16 %v3699, %v3691
      %v3916 = vpack.c.b16 %v3700, %v3692
      %v3917 = vpack.c.b16 %v3701, %v3693
      %v3918 = vpack.c.b16 %v3702, %v3694
      %v3919 = vpack.c.b16 %v3703, %v3695
      %v3920 = vpack.c.b16 %v3712, %v3704
      %v3921 = vpack.c.b16 %v3713, %v3705
      %v3922 = vpack.c.b16 %v3714, %v3706
      %v3923 = vpack.c.b16 %v3715, %v3707
      %v3924 = vpack.c.b16 %v3716, %v3708
      %v3925 = vpack.c.b16 %v3717, %v3709
      %v3926 = vpack.c.b16 %v3718, %v3710
      %v3927 = vpack.c.b16 %v3719, %v3711
      %v3928 = vpack.c.b16 %v3728, %v3720
      %v3929 = vpack.c.b16 %v3729, %v3721
      %v3930 = vpack.c.b16 %v3730, %v3722
      %v3931 = vpack.c.b16 %v3731, %v3723
      %v3932 = vpack.c.b16 %v3732, %v3724
      %v3933 = vpack.c.b16 %v3733, %v3725
      %v3934 = vpack.c.b16 %v3734, %v3726
      %v3935 = vpack.c.b16 %v3735, %v3727
      %v3936 = vpack.c.b16 %v3744, %v3736
      %v3937 = vpack.c.b16 %v3745, %v3737
      %v3938 = vpack.c.b16 %v3746, %v3738
      %v3939 = vpack.c.b16 %v3747, %v3739
      %v3940 = vpack.c.b16 %v3748, %v3740
      %v3941 = vpack.c.b16 %v3749, %v3741
      %v3942 = vpack.c.b16 %v3750, %v3742
      %v3943 = vpack.c.b16 %v3751, %v3743
      %v3944 = vpack.c.b16 %v3760, %v3752
      %v3945 = vpack.c.b16 %v3761, %v3753
      %v3946 = vpack.c.b16 %v3762, %v3754
      %v3947 = vpack.c.b16 %v3763, %v3755
      %v3948 = vpack.c.b16 %v3764, %v3756
      %v3949 = vpack.c.b16 %v3765, %v3757
      %v3950 = vpack.c.b16 %v3766, %v3758
      %v3951 = vpack.c.b16 %v3767, %v3759
      %v3952 = vpack.c.b16 %v3776, %v3768
      %v3953 = vpack.c.b16 %v3777, %v3769
      %v3954 = vpack.c.b16 %v3778, %v3770
      %v3955 = vpack.c.b16 %v3779, %v3771
      %v3956 = vpack.c.b16 %v3780, %v3772
      %v3957 = vpack.c.b16 %v3781, %v3773
      %v3958 = vpack.c.b16 %v3782, %v3774
      %v3959 = vpack.c.b16 %v3783, %v3775
      %v3960 = vpack.c.b16 %v3792, %v3784
      %v3961 = vpack.c.b16 %v3793, %v3785
      %v3962 = vpack.c.b16 %v3794, %v3786
      %v3963 = vpack.c.b16 %v3795, %v3787
      %v3964 = vpack.c.b16 %v3796, %v3788
      %v3965 = vpack.c.b16 %v3797, %v3789
      %v3966 = vpack.c.b16 %v3798, %v3790
      %v3967 = vpack.c.b16 %v3799, %v3791
      %v3968 = vpack.c.b16 %v3808, %v3800
      %v3969 = vpack.c.b16 %v3809, %v3801
      %v3970 = vpack.c.b16 %v3810, %v3802
      %v3971 = vpack.c.b16 %v3811, %v3803
      %v3972 = vpack.c.b16 %v3812, %v3804
      %v3973 = vpack.c.b16 %v3813, %v3805
      %v3974 = vpack.c.b16 %v3814, %v3806
      %v3975 = vpack.c.b16 %v3815, %v3807
      %v3976 = vpack.c.b16 %v3824, %v3816
      %v3977 = vpack.c.b16 %v3825, %v3817
      %v3978 = vpack.c.b16 %v3826, %v3818
      %v3979 = vpack.c.b16 %v3827, %v3819
      %v3980 = vpack.c.b16 %v3828, %v3820
      %v3981 = vpack.c.b16 %v3829, %v3821
      %v3982 = vpack.c.b16 %v3830, %v3822
      %v3983 = vpack.c.b16 %v3831, %v3823
      %v3984 = vpack.c.b16 %v3840, %v3832
      %v3985 = vpack.c.b16 %v3841, %v3833
      %v3986 = vpack.c.b16 %v3842, %v3834
      %v3987 = vpack.c.b16 %v3843, %v3835
      %v3988 = vpack.c.b16 %v3844, %v3836
      %v3989 = vpack.c.b16 %v3845, %v3837
      %v3990 = vpack.c.b16 %v3846, %v3838
      %v3991 = vpack.c.b16 %v3847, %v3839
      %v3992 = vpack.c.b16 %v3856, %v3848
      %v3993 = vpack.c.b16 %v3857, %v3849
      %v3994 = vpack.c.b16 %v3858, %v3850
      %v3995 = vpack.c.b16 %v3859, %v3851
      %v3996 = vpack.c.b16 %v3860, %v3852
      %v3997 = vpack.c.b16 %v3861, %v3853
      %v3998 = vpack.c.b16 %v3862, %v3854
      %v3999 = vpack.c.b16 %v3863, %v3855
      %v4000 = vpack.c.b16 %v3872, %v3864
      %v4001 = vpack.c.b16 %v3873, %v3865
      %v4002 = vpack.c.b16 %v3874, %v3866
      %v4003 = vpack.c.b16 %v3875, %v3867
      %v4004 = vpack.c.b16 %v3876, %v3868
      %v4005 = vpack.c.b16 %v3877, %v3869
      %v4006 = vpack.c.b16 %v3878, %v3870
      %v4007 = vpack.c.b16 %v3879, %v3871
      %v4008 = vpack.c.b16 %v3888, %v3880
      %v4009 = vpack.c.b16 %v3889, %v3881
      %v4010 = vpack.c.b16 %v3890, %v3882
      %v4011 = vpack.c.b16 %v3891, %v3883
      %v4012 = vpack.c.b16 %v3892, %v3884
      %v4013 = vpack.c.b16 %v3893, %v3885
      %v4014 = vpack.c.b16 %v3894, %v3886
      %v4015 = vpack.c.b16 %v3895, %v3887
      %v4016 = vpack.c.b16 %v3904, %v3896
      %v4017 = vpack.c.b16 %v3905, %v3897
      %v4018 = vpack.c.b16 %v3906, %v3898
      %v4019 = vpack.c.b16 %v3907, %v3899
      %v4020 = vpack.c.b16 %v3908, %v3900
      %v4021 = vpack.c.b16 %v3909, %v3901
      %v4022 = vpack.c.b16 %v3910, %v3902
      %v4023 = vpack.c.b16 %v3911, %v3903
      %vm4136 = vcmask 785408
      %v4138 = vsel %vm4136, %v3574, 0
      %4140 = vmatprep.subr.bf16.mxu0 %v3969
      %4141 = vmatpush1.bf16.msra.mxu0 %v3968
      %4142 = vmatprep.subr.bf16.mxu0 %v3961
      %4143 = vmatpush1.bf16.msra.mxu0 %v3960
      %4144 = vmatprep.subr.bf16.mxu0 %v3953
      %4145 = vmatpush1.bf16.msra.mxu0 %v3952
      %4146 = vmatprep.subr.bf16.mxu0 %v3945
      %4147 = vmatpush1.bf16.msra.mxu0 %v3944
      %4148 = vmatprep.subr.bf16.mxu0 %v3937
      %4149 = vmatpush1.bf16.msra.mxu0 %v3936
      %4150 = vmatprep.subr.bf16.mxu0 %v3929
      %4151 = vmatpush1.bf16.msra.mxu0 %v3928
      %4152 = vmatprep.subr.bf16.mxu0 %v3921
      %4153 = vmatpush1.bf16.msra.mxu0 %v3920
      %4154 = vmatprep.subr.bf16.mxu0 %v3913
      %4155 = vmatpush1.bf16.msra.mxu0 %v3912
      %4156 = vmatprep.subr.bf16.mxu0 0
      %4157 = vmatpush2.bf16.msra.mxu0 0
      %4158 = vmatprep.subr.bf16.mxu0 0
      %4159 = vmatpush2.bf16.msra.mxu0 0
      %4160 = vmatprep.subr.bf16.mxu0 %v4017
      %4161 = vmatpush2.bf16.msra.mxu0 %v4016
      %4162 = vmatprep.subr.bf16.mxu0 %v4009
      %4163 = vmatpush2.bf16.msra.mxu0 %v4008
      %4164 = vmatprep.subr.bf16.mxu0 %v4001
      %4165 = vmatpush2.bf16.msra.mxu0 %v4000
      %4166 = vmatprep.subr.bf16.mxu0 %v3993
      %4167 = vmatpush2.bf16.msra.mxu0 %v3992
      %4168 = vmatprep.subr.bf16.mxu0 %v3985
      %4169 = vmatpush2.bf16.msra.mxu0 %v3984
      %4170 = vmatprep.subr.bf16.mxu0 %v3977
      %4171 = vmatpush2.bf16.msra.mxu0 %v3976
      %4172 = vmatprep.mubr.bf16.mxu0 %v4138
      %4173 = vmatmul.mubr.bf16.gmra.mxu0 %v3573
      %v4174 = vpop.f32.mrf.mxu0
      %v4175 = vadd.f32 %v3568, %v4174
      %v4176 = vpop.f32.mrf.mxu0
      %v4177 = vadd.f32 %v3568, %v4176
      %v4178 = vpop.f32.mrf.mxu0
      %v4179 = vpop.f32.mrf.mxu0
      %4180 = vdwg.mxu0
      %4181 = vmatprep.subr.bf16.mxu0 %v3971
      %4182 = vmatpush1.bf16.msra.mxu0 %v3970
      %4183 = vmatprep.subr.bf16.mxu0 %v3963
      %4184 = vmatpush1.bf16.msra.mxu0 %v3962
      %4185 = vmatprep.subr.bf16.mxu0 %v3955
      %4186 = vmatpush1.bf16.msra.mxu0 %v3954
      %4187 = vmatprep.subr.bf16.mxu0 %v3947
      %4188 = vmatpush1.bf16.msra.mxu0 %v3946
      %4189 = vmatprep.subr.bf16.mxu0 %v3939
      %4190 = vmatpush1.bf16.msra.mxu0 %v3938
      %4191 = vmatprep.subr.bf16.mxu0 %v3931
      %4192 = vmatpush1.bf16.msra.mxu0 %v3930
      %4193 = vmatprep.subr.bf16.mxu0 %v3923
      %4194 = vmatpush1.bf16.msra.mxu0 %v3922
      %4195 = vmatprep.subr.bf16.mxu0 %v3915
      %4196 = vmatpush1.bf16.msra.mxu0 %v3914
      %4197 = vmatprep.subr.bf16.mxu0 0
      %4198 = vmatpush2.bf16.msra.mxu0 0
      %4199 = vmatprep.subr.bf16.mxu0 0
      %4200 = vmatpush2.bf16.msra.mxu0 0
      %4201 = vmatprep.subr.bf16.mxu0 %v4019
      %4202 = vmatpush2.bf16.msra.mxu0 %v4018
      %4203 = vmatprep.subr.bf16.mxu0 %v4011
      %4204 = vmatpush2.bf16.msra.mxu0 %v4010
      %4205 = vmatprep.subr.bf16.mxu0 %v4003
      %4206 = vmatpush2.bf16.msra.mxu0 %v4002
      %4207 = vmatprep.subr.bf16.mxu0 %v3995
      %4208 = vmatpush2.bf16.msra.mxu0 %v3994
      %4209 = vmatprep.subr.bf16.mxu0 %v3987
      %4210 = vmatpush2.bf16.msra.mxu0 %v3986
      %4211 = vmatprep.subr.bf16.mxu0 %v3979
      %4212 = vmatpush2.bf16.msra.mxu0 %v3978
      %4213 = vmatprep.mubr.bf16.mxu0 %v4138
      %4214 = vmatmul.mubr.bf16.gmra.mxu0 %v3573
      %v4215 = vpop.f32.mrf.mxu0
      %v4216 = vadd.f32 %v3568, %v4215
      %v4217 = vpop.f32.mrf.mxu0
      %v4218 = vadd.f32 %v3568, %v4217
      %v4219 = vpop.f32.mrf.mxu0
      %v4220 = vpop.f32.mrf.mxu0
      %4221 = vdwg.mxu0
      %4222 = vmatprep.subr.bf16.mxu0 %v3973
      %4223 = vmatpush1.bf16.msra.mxu0 %v3972
      %4224 = vmatprep.subr.bf16.mxu0 %v3965
      %4225 = vmatpush1.bf16.msra.mxu0 %v3964
      %4226 = vmatprep.subr.bf16.mxu0 %v3957
      %4227 = vmatpush1.bf16.msra.mxu0 %v3956
      %4228 = vmatprep.subr.bf16.mxu0 %v3949
      %4229 = vmatpush1.bf16.msra.mxu0 %v3948
      %4230 = vmatprep.subr.bf16.mxu0 %v3941
      %4231 = vmatpush1.bf16.msra.mxu0 %v3940
      %4232 = vmatprep.subr.bf16.mxu0 %v3933
      %4233 = vmatpush1.bf16.msra.mxu0 %v3932
      %4234 = vmatprep.subr.bf16.mxu0 %v3925
      %4235 = vmatpush1.bf16.msra.mxu0 %v3924
      %4236 = vmatprep.subr.bf16.mxu0 %v3917
      %4237 = vmatpush1.bf16.msra.mxu0 %v3916
      %4238 = vmatprep.subr.bf16.mxu0 0
      %4239 = vmatpush2.bf16.msra.mxu0 0
      %4240 = vmatprep.subr.bf16.mxu0 0
      %4241 = vmatpush2.bf16.msra.mxu0 0
      %4242 = vmatprep.subr.bf16.mxu0 %v4021
      %4243 = vmatpush2.bf16.msra.mxu0 %v4020
      %4244 = vmatprep.subr.bf16.mxu0 %v4013
      %4245 = vmatpush2.bf16.msra.mxu0 %v4012
      %4246 = vmatprep.subr.bf16.mxu0 %v4005
      %4247 = vmatpush2.bf16.msra.mxu0 %v4004
      %4248 = vmatprep.subr.bf16.mxu0 %v3997
      %4249 = vmatpush2.bf16.msra.mxu0 %v3996
      %4250 = vmatprep.subr.bf16.mxu0 %v3989
      %4251 = vmatpush2.bf16.msra.mxu0 %v3988
      %4252 = vmatprep.subr.bf16.mxu0 %v3981
      %4253 = vmatpush2.bf16.msra.mxu0 %v3980
      %4254 = vmatprep.mubr.bf16.mxu0 %v4138
      %4255 = vmatmul.mubr.bf16.gmra.mxu0 %v3573
      %v4256 = vpop.f32.mrf.mxu0
      %v4257 = vadd.f32 %v3568, %v4256
      %v4258 = vpop.f32.mrf.mxu0
      %v4259 = vadd.f32 %v3568, %v4258
      %v4260 = vpop.f32.mrf.mxu0
      %v4261 = vpop.f32.mrf.mxu0
      %4262 = vdwg.mxu0
      %4263 = vmatprep.subr.bf16.mxu0 %v3975
      %4264 = vmatpush1.bf16.msra.mxu0 %v3974
      %4265 = vmatprep.subr.bf16.mxu0 %v3967
      %4266 = vmatpush1.bf16.msra.mxu0 %v3966
      %4267 = vmatprep.subr.bf16.mxu0 %v3959
      %4268 = vmatpush1.bf16.msra.mxu0 %v3958
      %4269 = vmatprep.subr.bf16.mxu0 %v3951
      %4270 = vmatpush1.bf16.msra.mxu0 %v3950
      %4271 = vmatprep.subr.bf16.mxu0 %v3943
      %4272 = vmatpush1.bf16.msra.mxu0 %v3942
      %4273 = vmatprep.subr.bf16.mxu0 %v3935
      %4274 = vmatpush1.bf16.msra.mxu0 %v3934
      %4275 = vmatprep.subr.bf16.mxu0 %v3927
      %4276 = vmatpush1.bf16.msra.mxu0 %v3926
      %4277 = vmatprep.subr.bf16.mxu0 %v3919
      %4278 = vmatpush1.bf16.msra.mxu0 %v3918
      %4279 = vmatprep.subr.bf16.mxu0 0
      %4280 = vmatpush2.bf16.msra.mxu0 0
      %4281 = vmatprep.subr.bf16.mxu0 0
      %4282 = vmatpush2.bf16.msra.mxu0 0
      %4283 = vmatprep.subr.bf16.mxu0 %v4023
      %4284 = vmatpush2.bf16.msra.mxu0 %v4022
      %4285 = vmatprep.subr.bf16.mxu0 %v4015
      %4286 = vmatpush2.bf16.msra.mxu0 %v4014
      %4287 = vmatprep.subr.bf16.mxu0 %v4007
      %4288 = vmatpush2.bf16.msra.mxu0 %v4006
      %4289 = vmatprep.subr.bf16.mxu0 %v3999
      %4290 = vmatpush2.bf16.msra.mxu0 %v3998
      %4291 = vmatprep.subr.bf16.mxu0 %v3991
      %4292 = vmatpush2.bf16.msra.mxu0 %v3990
      %4293 = vmatprep.subr.bf16.mxu0 %v3983
      %4294 = vmatpush2.bf16.msra.mxu0 %v3982
      %4295 = vmatprep.mubr.bf16.mxu0 %v4138
      %4296 = vmatmul.mubr.bf16.gmra.mxu0 %v3573
      %v4297 = vpop.f32.mrf.mxu0
      %v4298 = vadd.f32 %v3568, %v4297
      %v4299 = vpop.f32.mrf.mxu0
      %v4300 = vadd.f32 %v3568, %v4299
      %v4301 = vpop.f32.mrf.mxu0
      %v4302 = vpop.f32.mrf.mxu0
      %4303 = vdwg.mxu0
      %v4304 = vmax.f32 %v4175, 0.0
      %v4305 = vmax.f32 %v4177, 0.0
      %v4306 = vmax.f32 %v4216, 0.0
      %v4307 = vmax.f32 %v4218, 0.0
      %v4308 = vmax.f32 %v4257, 0.0
      %v4309 = vmax.f32 %v4259, 0.0
      %v4310 = vmax.f32 %v4298, 0.0
      %v4311 = vmax.f32 %v4300, 0.0
      %4312 = vst [vmem:[%s251] sm:$0xff] %v4304
      %4313 = vst [vmem:[%s251 + $0x8] sm:$0xff] %v4305
      %4314 = vst [vmem:[%s251 + $0x10] sm:$0xff] %v4306
      %4315 = vst [vmem:[%s251 + $0x18] sm:$0xff] %v4307
      %4316 = vst [vmem:[%s251 + $0x20] sm:$0xff] %v4308
      %4317 = vst [vmem:[%s251 + $0x28] sm:$0xff] %v4309
      %4318 = vst [vmem:[%s251 + $0x30] sm:$0xff] %v4310
      %4319 = vst [vmem:[%s251 + $0x38] sm:$0xff] %v4311
      %p4320 = scmp.lt.s32.totalorder %s17, 1
      %s4321 = scalar_select %p4320, %s17, 1
      %s4322 = smul.addr %s4321, 8
      %s4323 = smul.addr %s4322, 8
      %s4324 = scalar_lea.vmem %s6, %s4323
      // Predicated region
      $region45: #{unit_res_basic_forward.1} parent=43 // pred_check
        %p4325 = pneg %p166
      $region46: #{unit_res_basic_forward.1} parent=43 // pred_check_branch
        %4327 = sbr.rel (%p4325) target = $region48
      $region47: #{unit_res_basic_forward.1} parent=43 // pred_region
        _
      $region48: #{unit_res_basic_forward.1} parent=43 // pred_fallthru
        _
    $region44: #{unit_res_basic_forward.1} parent=5 // pred_fallthru
      _
    %p4328 = scmp.le.s32.totalorder 2, %s12
    // Predicated region
    $region49: #{unit_res_basic_forward.1} parent=5 // pred_check
      %p4329 = pneg %p4328
    $region50: #{unit_res_basic_forward.1} parent=5 // pred_check_branch
      %4331 = sbr.rel (%p4329) target = $region52
    $region51: #{unit_res_basic_forward.1} parent=5 // pred_region
      %s4332 = ssub.s32 %s12, 2
      // Predicated region
      $region53: #{unit_res_basic_forward.1} parent=51 // pred_check
        %p4333 = pneg %p172
      $region54: #{unit_res_basic_forward.1} parent=51 // pred_check_branch
        %4335 = sbr.rel (%p4333) target = $region56
      $region55: #{unit_res_basic_forward.1} parent=51 // pred_region
        %p4336 = scmp.lt.s32.totalorder %s18, 1
        %s4337 = scalar_select %p4336, %s18, 1
        %s4338 = smul.addr %s4337, 8
        %s4339 = smul.addr %s4338, 8
        %s4340 = scalar_lea.vmem %s6, %s4339
      $region56: #{unit_res_basic_forward.1} parent=51 // pred_fallthru
        _
    $region52: #{unit_res_basic_forward.1} parent=5 // pred_fallthru
      _
  $region6: #{unit_res_basic_forward.1} parent=0 // loop_footer
    %s16 = sadd.s32 1, %s12
  $region7: #{unit_res_basic_forward.1} parent=0 // loop_footer_branch
    %11 = sbr.rel target = $region3
  $region8: #{unit_res_basic_forward.1} parent=0 // loop_exit
    _

</llo_original>
